<compile_context>
chip_gen: v6e
topology: v6e:2x2x1
jax: 0.10.0
libtpu: 0.0.40
codegen_flags: <defaults>
</compile_context>

<pallas_src>
import jax
import jax.numpy as jnp
from jax.experimental import pallas as pl
from jax.experimental.pallas import tpu as pltpu

_CONCAT_MAX_CIN = 128   # concatenate the 3 dx taps (K = 3*Cin) only while Cin <= this


# ----------------------------------------------------------------------------
# Parameter helpers
# ----------------------------------------------------------------------------
def fold_bn(gamma, beta, mean, var, eps=1e-5):
    scale = gamma / jnp.sqrt(var + eps)
    return (scale.reshape(1, -1).astype(jnp.float32),
            (beta - mean * scale).reshape(1, -1).astype(jnp.float32))


def _batch_block(n, h, w, cin, ho, wo, cout, budget_bytes=6 * 1024 * 1024):
    """Images per grid step, budgeted against VMEM (input / taps / f32 accumulators),
    while keeping the grid >= 2 steps when possible (both v7x TensorCores)."""
    per_img = 12 * h * w * cin + 24 * ho * wo * cout      # rough live bytes per image
    bb = max(1, min(n, budget_bytes // max(per_img, 1)))
    if n >= 2:
        bb = min(bb, max(1, n // 2))                      # keep >= 2 parallel grid steps
    while n % bb:                                         # grid must be integral
        bb -= 1
    return bb


# ----------------------------------------------------------------------------
# In-kernel helpers (batched values, channels-last)
# ----------------------------------------------------------------------------
def _rows(x):
    """(B, H, W, C) -> (B*H, W, C): leading-dim merge only (layout-trivial)."""
    b, h, w, c = x.shape
    return x.reshape(b * h, w, c)


def _mm(t, w):
    """Matmul contracting the last dim of `t` (2D/3D) with the first dim of `w`; f32 acc."""
    return jax.lax.dot_general(
        t, w, dimension_numbers=(((t.ndim - 1,), (0,)), ((), ())),
        preferred_element_type=jnp.float32)


def _pad_hw(x):
    """Zero-pad H and W by 1 on each side, once; 3x3 taps are static slices of this."""
    b, h, w, c = x.shape
    zr = jnp.zeros((b, 1, w, c), x.dtype)
    xp = jnp.concatenate([zr, x, zr], axis=1)
    zc = jnp.zeros((b, h + 2, 1, c), x.dtype)
    return jnp.concatenate([zc, xp, zc], axis=2)


def _conv3x3_s1(x, w_ref):
    """3x3 conv, stride 1, pad 1 over a whole (B,H,W,Cin) block.  Weight layout picks the
    MXU shaping:
      rank 2: (9*Cin, Cout)     -> 1 matmul,  K = 9*Cin (stem)
      rank 3: (3, 3*Cin, Cout)  -> 3 matmuls, K = 3*Cin (small Cin)
      rank 4: (3, 3, Cin, Cout) -> 9 matmuls, K = Cin   (large Cin, no 3x taps buffer)
    Returns f32 (B*H, W, Cout)."""
    b, h, w, cin = x.shape
    xp = _pad_hw(x)
    tap = lambda dy, dx: xp[:, dy:dy + h, dx:dx + w, :]
    rank = len(w_ref.shape)
    if rank == 2:
        taps = jnp.concatenate([tap(dy, dx) for dy in range(3) for dx in range(3)], axis=-1)
        return _mm(_rows(taps), w_ref[...])
    acc = None
    for dy in range(3):
        if rank == 3:
            taps = jnp.concatenate([tap(dy, dx) for dx in range(3)], axis=-1)
            p = _mm(_rows(taps), w_ref[dy])
        else:
            p = None
            for dx in range(3):
                q = _mm(_rows(tap(dy, dx)), w_ref[dy, dx])
                p = q if p is None else p + q
        acc = p if acc is None else acc + p
    return acc


def _conv3x3_s2(v, w_ref):
    """3x3 conv, stride 2, pad 1 -- computed only at the (even) output positions.
    v: (B, Ho, 2, Wo, 2*Cin) parity-split input (free host-side reshape of (B,H,W,Cin));
       v[b, p, r, q, s*Cin:(s+1)*Cin] == x[b, 2p+r, 2q+s, :].
    w_ref: (3, 3*Cin, Cout).  Returns (f32 (B*Ho, Wo, Cout), ree) with
    ree == x[:, ::2, ::2, :] reused as the 1x1 shortcut-conv input."""
    assert len(w_ref.shape) == 3, "stride-2 conv expects concat-layout (3, 3*Cin, Cout) weights"
    b, ho, _, wo, c2 = v.shape
    cin = c2 // 2
    ve, vo = v[:, :, 0], v[:, :, 1]                  # even / odd input rows
    ree, reo = ve[..., :cin], ve[..., cin:]          # x[2i, 2j]   / x[2i, 2j+1]
    roe, roo = vo[..., :cin], vo[..., cin:]          # x[2i+1, 2j] / x[2i+1, 2j+1]

    def pad_tl(t):                                   # one zero row (top) + one zero col (left)
        bs, p, q, c = t.shape
        t = jnp.concatenate([jnp.zeros((bs, 1, q, c), t.dtype), t], axis=1)
        return jnp.concatenate([jnp.zeros((bs, p + 1, 1, c), t.dtype), t], axis=2)

    roo_p, roe_p, reo_p = pad_tl(roo), pad_tl(roe), pad_tl(reo)
    sh = lambda tp, up, left: tp[:, 1 - up:1 - up + ho, 1 - left:1 - left + wo, :]

    # out[i,j] = sum_{dy,dx} x[2i+dy-1, 2j+dx-1] * w[dy,dx]; taps per kernel row:
    tap_rows = (
        (sh(roo_p, 1, 1), sh(roe_p, 1, 0), sh(roo_p, 1, 0)),   # input row 2i-1
        (sh(reo_p, 0, 1), ree,             reo),               # input row 2i
        (sh(roo_p, 0, 1), roe,             roo),               # input row 2i+1
    )
    acc = None
    for dy in range(3):
        taps = jnp.concatenate(tap_rows[dy], axis=-1)          # (B, Ho, Wo, 3*Cin)
        p = _mm(_rows(taps), w_ref[dy])
        acc = p if acc is None else acc + p
    return acc, ree


# ----------------------------------------------------------------------------
# Fused residual block kernel (optionally with stem in front / avgpool+FC head behind)
# ----------------------------------------------------------------------------
def _make_block_kernel(*, stride, has_stem, has_down, has_head, hw_out):
    ho, wo = hw_out

    def kernel(*refs):
        i = 0
        x_ref = refs[i]; i += 1
        if has_stem:
            w0, s0, b0 = refs[i:i + 3]; i += 3
        w1, s1, b1, w2, s2, b2 = refs[i:i + 6]; i += 6
        if has_down:
            wd, sd, bd = refs[i:i + 3]; i += 3
        if has_head:
            fw, fb = refs[i:i + 2]; i += 2
        o_ref = refs[i]

        bb = x_ref.shape[0]
        c1, c2 = s1.shape[-1], s2.shape[-1]

        # ---- first conv (+ optional fused stem), whole (bb, ...) block at once ----
        if stride == 1:
            xv = x_ref[...]                                    # (bb, H, W, Cin) bf16
            if has_stem:                                       # stem conv1 + bn1 + relu
                a0 = _conv3x3_s1(xv, w0)                       # (bb*H, W, 64) f32
                xv = jnp.maximum(a0 * s0[0, :] + b0[0, :], 0.0).astype(jnp.bfloat16)
                xv = xv.reshape(bb, ho, wo, s0.shape[-1])
            a1 = _conv3x3_s1(xv, w1)                           # (bb*Ho, Wo, C1) f32
            sc_in = _rows(xv)                                  # shortcut input (bf16)
        else:                                                  # stride-2 first conv
            a1, ree = _conv3x3_s2(x_ref[...], w1)
            sc_in = _rows(ree)

        # ---- BN + ReLU, second conv, BN ----
        h = jnp.maximum(a1 * s1[0, :] + b1[0, :], 0.0).astype(jnp.bfloat16)
        a2 = _conv3x3_s1(h.reshape(bb, ho, wo, c1), w2)        # (bb*Ho, Wo, C2) f32
        y = a2 * s2[0, :] + b2[0, :]

        # ---- shortcut + residual add + ReLU ----
        if has_down:                                           # 1x1 conv + bn shortcut
            sc = _mm(sc_in, wd[...]) * sd[0, :] + bd[0, :]
        else:                                                  # identity shortcut
            sc = sc_in.astype(jnp.float32)
        out = jnp.maximum(y + sc, 0.0)                         # (bb*Ho, Wo, C2) f32

        if has_head:                                           # fused AdaptiveAvgPool + FC
            pooled = jnp.mean(out.reshape(bb, ho, wo, c2), axis=(1, 2))       # (bb, C2)
            logits = jnp.dot(pooled, fw[...], preferred_element_type=jnp.float32) + fb[0, :]
            o_ref[...] = logits[None].astype(o_ref.dtype)      # (1, bb, NCP)
        else:
            o_ref[...] = out.reshape(bb, ho, wo, c2).astype(o_ref.dtype)

    return kernel


def fused_block(x, blk, stem=None, head=None):
    """One residual BasicBlock (+ optional fused stem / avgpool-FC head) as one pallas_call."""
    stride = blk['stride']
    n, h, w, cin = x.shape
    ho, wo = h // stride, w // stride
    cout = blk['bn2_s'].shape[-1]
    has_stem, has_down, has_head = stem is not None, blk['down'], head is not None
    assert not (has_stem and stride != 1)
    bb = _batch_block(n, h, w, cin, ho, wo, cout)

    if stride == 1:
        x_in = x
        x_spec = pl.BlockSpec((bb, h, w, cin), lambda i: (i, 0, 0, 0))
    else:
        # free (row-major) parity split: (N,H,W,C) -> (N,H/2,2,W/2,2C)
        x_in = x.reshape(n, ho, 2, wo, 2 * cin)
        x_spec = pl.BlockSpec((bb, ho, 2, wo, 2 * cin), lambda i: (i, 0, 0, 0, 0))

    args, specs = [x_in], [x_spec]

    def add_full(a):                  # whole-array operand (weights / folded BN / FC)
        args.append(a)
        specs.append(pl.BlockSpec(a.shape, lambda i, nd=a.ndim: (0,) * nd))

    if has_stem:
        for a in stem:
            add_full(a)
    for k in ('w1', 'bn1_s', 'bn1_b', 'w2', 'bn2_s', 'bn2_b'):
        add_full(blk[k])
    if has_down:
        for k in ('wd', 'bnd_s', 'bnd_b'):
            add_full(blk[k])
    if has_head:
        for a in head:
            add_full(a)

    if has_head:
        ncp = head[0].shape[-1]
        out_shape = jax.ShapeDtypeStruct((n // bb, bb, ncp), jnp.float32)
        out_spec = pl.BlockSpec((1, bb, ncp), lambda i: (i, 0, 0))
    else:
        out_shape = jax.ShapeDtypeStruct((n, ho, wo, cout), jnp.bfloat16)
        out_spec = pl.BlockSpec((bb, ho, wo, cout), lambda i: (i, 0, 0, 0))

    out = pl.pallas_call(
        _make_block_kernel(stride=stride, has_stem=has_stem, has_down=has_down,
                           has_head=has_head, hw_out=(ho, wo)),
        out_shape=out_shape,
        grid=(n // bb,),
        in_specs=specs,
        out_specs=out_spec,
        compiler_params=pltpu.CompilerParams(
            dimension_semantics=("parallel",),
            vmem_limit_bytes=32 * 1024 * 1024),
    )(*args)
    if has_head:
        out = out.reshape(n, ncp)
    return out


# ----------------------------------------------------------------------------
# Model: parameter init + forward
# ----------------------------------------------------------------------------
def init_params(key, n_size=1, num_classes=100):
    keys = iter(jax.random.split(key, 64))

    def conv3x3_w(cin, cout, full_concat=False):
        fan_in = 9 * cin
        wgt = (jax.random.normal(next(keys), (3, 3, cin, cout), jnp.float32)
               * jnp.sqrt(2.0 / fan_in))
        if full_concat:                      # stem: one K = 9*cin matmul
            wgt = wgt.reshape(9 * cin, cout)
        elif cin <= _CONCAT_MAX_CIN:         # 3 matmuls, K = 3*cin
            wgt = wgt.reshape(3, 3 * cin, cout)
        # else keep (3, 3, cin, cout): 9 matmuls with K = cin
        return wgt.astype(jnp.bfloat16)

    def bn(c):
        return fold_bn(jnp.ones((c,), jnp.float32), jnp.zeros((c,), jnp.float32),
                       jnp.zeros((c,), jnp.float32), jnp.ones((c,), jnp.float32))

    p = {'conv1_w': conv3x3_w(3, 64, full_concat=True)}
    p['bn1_s'], p['bn1_b'] = bn(64)

    blocks, inplane = [], 64
    for planes, stride0 in ((64, 1), (128, 2), (256, 2)):      # layer1 / layer2 / layer3
        for s in [stride0] + [1] * (n_size - 1):
            blk = {'stride': s, 'down': (s != 1 or inplane != planes),
                   'w1': conv3x3_w(inplane, planes),
                   'w2': conv3x3_w(planes, planes)}
            blk['bn1_s'], blk['bn1_b'] = bn(planes)
            blk['bn2_s'], blk['bn2_b'] = bn(planes)
            if blk['down']:
                blk['wd'] = (jax.random.normal(next(keys), (inplane, planes), jnp.float32)
                             * jnp.sqrt(2.0 / inplane)).astype(jnp.bfloat16)
                blk['bnd_s'], blk['bnd_b'] = bn(planes)
            blocks.append(blk)
            inplane = planes
    p['blocks'] = blocks

    ncp = ((num_classes + 127) // 128) * 128   # pad FC to a 128-lane multiple (dense stores)
    fw = jax.random.normal(next(keys), (256, num_classes), jnp.float32) / jnp.sqrt(256.0)
    p['fc_w'] = jnp.zeros((256, ncp), jnp.float32).at[:, :num_classes].set(fw)
    p['fc_b'] = jnp.zeros((1, ncp), jnp.float32)
    p['num_classes'] = num_classes
    return p


def forward(params, x_nchw):
    # PyTorch NCHW -> NHWC once at the boundary; bf16 activations between block kernels.
    x = jnp.transpose(x_nchw, (0, 2, 3, 1)).astype(jnp.bfloat16)
    stem = (params['conv1_w'], params['bn1_s'], params['bn1_b'])
    head = (params['fc_w'], params['fc_b'])
    blocks = params['blocks']
    for bi, blk in enumerate(blocks):
        x = fused_block(x, blk,
                        stem=stem if bi == 0 else None,
                        head=head if bi == len(blocks) - 1 else None)
    # TODO(synk): dropout (p=0.0 default) is skipped.
    return x[:, :params['num_classes']]


if __name__ == "__main__":
    key = jax.random.PRNGKey(0)
    kp, kx = jax.random.split(key)
    num_classes = 100
    params = init_params(kp, n_size=1, num_classes=num_classes)

    # small CIFAR-like input, PyTorch NCHW layout: [batch=2, C=3, H=16, W=16]
    x = jax.random.normal(kx, (2, 3, 16, 16), jnp.float32)

    out = forward(params, x)
    jax.block_until_ready(out)
    assert out.shape == (2, num_classes), out.shape
    assert bool(jnp.all(jnp.isfinite(out)))
    print("KERNEL_OK")
</pallas_src>

<mosaic_0001>
module attributes {stable_mosaic.version = 11 : i64} {
  func.func @kernel(%arg0: i32, %arg1: memref<1x16x16x3xbf16, #tpu.memory_space<vmem>>, %arg2: memref<27x64xbf16, #tpu.memory_space<vmem>>, %arg3: memref<1x64xf32, #tpu.memory_space<vmem>>, %arg4: memref<1x64xf32, #tpu.memory_space<vmem>>, %arg5: memref<3x192x64xbf16, #tpu.memory_space<vmem>>, %arg6: memref<1x64xf32, #tpu.memory_space<vmem>>, %arg7: memref<1x64xf32, #tpu.memory_space<vmem>>, %arg8: memref<3x192x64xbf16, #tpu.memory_space<vmem>>, %arg9: memref<1x64xf32, #tpu.memory_space<vmem>>, %arg10: memref<1x64xf32, #tpu.memory_space<vmem>>, %arg11: memref<1x16x16x64xbf16, #tpu.memory_space<vmem>>) attributes {dimension_semantics = [#tpu.dimension_semantics<parallel>], iteration_bounds = array<i64: 2>, scalar_prefetch = 0 : i64, scratch_operands = 0 : i64, tpu.core_type = #tpu.core_type<tc>, window_params = [{transform_indices = @transform_0, window_bounds = array<i64: 1, 16, 16, 3>}, {pipeline_mode = #tpu.pipeline_mode<synchronous>, transform_indices = @transform_1, window_bounds = array<i64: 27, 64>}, {pipeline_mode = #tpu.pipeline_mode<synchronous>, transform_indices = @transform_2, window_bounds = array<i64: 1, 64>}, {pipeline_mode = #tpu.pipeline_mode<synchronous>, transform_indices = @transform_3, window_bounds = array<i64: 1, 64>}, {pipeline_mode = #tpu.pipeline_mode<synchronous>, transform_indices = @transform_4, window_bounds = array<i64: 3, 192, 64>}, {pipeline_mode = #tpu.pipeline_mode<synchronous>, transform_indices = @transform_5, window_bounds = array<i64: 1, 64>}, {pipeline_mode = #tpu.pipeline_mode<synchronous>, transform_indices = @transform_6, window_bounds = array<i64: 1, 64>}, {pipeline_mode = #tpu.pipeline_mode<synchronous>, transform_indices = @transform_7, window_bounds = array<i64: 3, 192, 64>}, {pipeline_mode = #tpu.pipeline_mode<synchronous>, transform_indices = @transform_8, window_bounds = array<i64: 1, 64>}, {pipeline_mode = #tpu.pipeline_mode<synchronous>, transform_indices = @transform_9, window_bounds = array<i64: 1, 64>}, {transform_indices = @transform_10, window_bounds = array<i64: 1, 16, 16, 64>}]} {
    %c0 = arith.constant 0 : index
    %c0_0 = arith.constant 0 : index
    %c0_1 = arith.constant 0 : index
    %c0_2 = arith.constant 0 : index
    %0 = vector.load %arg1[%c0, %c0_0, %c0_1, %c0_2] : memref<1x16x16x3xbf16, #tpu.memory_space<vmem>>, vector<1x16x16x3xbf16>
    %cst = arith.constant 0.000000e+00 : bf16
    %1 = vector.broadcast %cst : bf16 to vector<1x1x16x3xbf16>
    %2 = tpu.concatenate %1, %0, %1 in 1 : vector<1x1x16x3xbf16>, vector<1x16x16x3xbf16>, vector<1x1x16x3xbf16> -> vector<1x18x16x3xbf16>
    %cst_3 = arith.constant 0.000000e+00 : bf16
    %3 = vector.broadcast %cst_3 : bf16 to vector<1x18x1x3xbf16>
    %4 = tpu.concatenate %3, %2, %3 in 2 : vector<1x18x1x3xbf16>, vector<1x18x16x3xbf16>, vector<1x18x1x3xbf16> -> vector<1x18x18x3xbf16>
    %5 = vector.extract_strided_slice %4 {offsets = [0, 0, 0, 0], sizes = [1, 16, 16, 3], strides = [1, 1, 1, 1]} : vector<1x18x18x3xbf16> to vector<1x16x16x3xbf16>
    %6 = vector.extract_strided_slice %4 {offsets = [0, 0, 1, 0], sizes = [1, 16, 16, 3], strides = [1, 1, 1, 1]} : vector<1x18x18x3xbf16> to vector<1x16x16x3xbf16>
    %7 = vector.extract_strided_slice %4 {offsets = [0, 0, 2, 0], sizes = [1, 16, 16, 3], strides = [1, 1, 1, 1]} : vector<1x18x18x3xbf16> to vector<1x16x16x3xbf16>
    %8 = vector.extract_strided_slice %4 {offsets = [0, 1, 0, 0], sizes = [1, 16, 16, 3], strides = [1, 1, 1, 1]} : vector<1x18x18x3xbf16> to vector<1x16x16x3xbf16>
    %9 = vector.extract_strided_slice %4 {offsets = [0, 1, 1, 0], sizes = [1, 16, 16, 3], strides = [1, 1, 1, 1]} : vector<1x18x18x3xbf16> to vector<1x16x16x3xbf16>
    %10 = vector.extract_strided_slice %4 {offsets = [0, 1, 2, 0], sizes = [1, 16, 16, 3], strides = [1, 1, 1, 1]} : vector<1x18x18x3xbf16> to vector<1x16x16x3xbf16>
    %11 = vector.extract_strided_slice %4 {offsets = [0, 2, 0, 0], sizes = [1, 16, 16, 3], strides = [1, 1, 1, 1]} : vector<1x18x18x3xbf16> to vector<1x16x16x3xbf16>
    %12 = vector.extract_strided_slice %4 {offsets = [0, 2, 1, 0], sizes = [1, 16, 16, 3], strides = [1, 1, 1, 1]} : vector<1x18x18x3xbf16> to vector<1x16x16x3xbf16>
    %13 = vector.extract_strided_slice %4 {offsets = [0, 2, 2, 0], sizes = [1, 16, 16, 3], strides = [1, 1, 1, 1]} : vector<1x18x18x3xbf16> to vector<1x16x16x3xbf16>
    %14 = tpu.concatenate %5, %6, %7, %8, %9, %10, %11, %12, %13 in 3 : vector<1x16x16x3xbf16>, vector<1x16x16x3xbf16>, vector<1x16x16x3xbf16>, vector<1x16x16x3xbf16>, vector<1x16x16x3xbf16>, vector<1x16x16x3xbf16>, vector<1x16x16x3xbf16>, vector<1x16x16x3xbf16>, vector<1x16x16x3xbf16> -> vector<1x16x16x27xbf16>
    %15 = vector.shape_cast %14 : vector<1x16x16x27xbf16> to vector<16x16x27xbf16>
    %c0_4 = arith.constant 0 : index
    %c0_5 = arith.constant 0 : index
    %16 = vector.load %arg2[%c0_4, %c0_5] : memref<27x64xbf16, #tpu.memory_space<vmem>>, vector<27x64xbf16>
    %cst_6 = arith.constant dense<0.000000e+00> : vector<16x16x64xf32>
    %17 = tpu.matmul %15, %16, %cst_6 {dimension_numbers = #tpu.dot_dimension_numbers<[2], [0], [0, 1], [1], [0, 0, 0, 1, 1, 1], [], []>} : vector<16x16x27xbf16>, vector<27x64xbf16>, vector<16x16x64xf32> -> vector<16x16x64xf32>
    %c0_7 = arith.constant 0 : index
    %c0_8 = arith.constant 0 : index
    %18 = vector.load %arg3[%c0_7, %c0_8] : memref<1x64xf32, #tpu.memory_space<vmem>>, vector<1x64xf32>
    %19 = vector.shape_cast %18 : vector<1x64xf32> to vector<64xf32>
    %20 = vector.shape_cast %19 : vector<64xf32> to vector<1x1x64xf32>
    %21 = vector.broadcast %20 : vector<1x1x64xf32> to vector<16x16x64xf32>
    %22 = arith.mulf %17, %21 : vector<16x16x64xf32>
    %c0_9 = arith.constant 0 : index
    %c0_10 = arith.constant 0 : index
    %23 = vector.load %arg4[%c0_9, %c0_10] : memref<1x64xf32, #tpu.memory_space<vmem>>, vector<1x64xf32>
    %24 = vector.shape_cast %23 : vector<1x64xf32> to vector<64xf32>
    %25 = vector.shape_cast %24 : vector<64xf32> to vector<1x1x64xf32>
    %26 = vector.broadcast %25 : vector<1x1x64xf32> to vector<16x16x64xf32>
    %27 = arith.addf %22, %26 : vector<16x16x64xf32>
    %cst_11 = arith.constant 0.000000e+00 : f32
    %28 = vector.broadcast %cst_11 : f32 to vector<16x16x64xf32>
    %29 = arith.maximumf %27, %28 : vector<16x16x64xf32>
    %30 = arith.truncf %29 : vector<16x16x64xf32> to vector<16x16x64xbf16>
    %31 = vector.shape_cast %30 : vector<16x16x64xbf16> to vector<1x16x16x64xbf16>
    %cst_12 = arith.constant 0.000000e+00 : bf16
    %32 = vector.broadcast %cst_12 : bf16 to vector<1x1x16x64xbf16>
    %33 = tpu.concatenate %32, %31, %32 in 1 : vector<1x1x16x64xbf16>, vector<1x16x16x64xbf16>, vector<1x1x16x64xbf16> -> vector<1x18x16x64xbf16>
    %cst_13 = arith.constant 0.000000e+00 : bf16
    %34 = vector.broadcast %cst_13 : bf16 to vector<1x18x1x64xbf16>
    %35 = tpu.concatenate %34, %33, %34 in 2 : vector<1x18x1x64xbf16>, vector<1x18x16x64xbf16>, vector<1x18x1x64xbf16> -> vector<1x18x18x64xbf16>
    %36 = vector.extract_strided_slice %35 {offsets = [0, 0, 0, 0], sizes = [1, 16, 16, 64], strides = [1, 1, 1, 1]} : vector<1x18x18x64xbf16> to vector<1x16x16x64xbf16>
    %37 = vector.extract_strided_slice %35 {offsets = [0, 0, 1, 0], sizes = [1, 16, 16, 64], strides = [1, 1, 1, 1]} : vector<1x18x18x64xbf16> to vector<1x16x16x64xbf16>
    %38 = vector.extract_strided_slice %35 {offsets = [0, 0, 2, 0], sizes = [1, 16, 16, 64], strides = [1, 1, 1, 1]} : vector<1x18x18x64xbf16> to vector<1x16x16x64xbf16>
    %39 = tpu.concatenate %36, %37, %38 in 3 : vector<1x16x16x64xbf16>, vector<1x16x16x64xbf16>, vector<1x16x16x64xbf16> -> vector<1x16x16x192xbf16>
    %40 = vector.shape_cast %39 : vector<1x16x16x192xbf16> to vector<16x16x192xbf16>
    %c0_14 = arith.constant 0 : index
    %c0_15 = arith.constant 0 : index
    %c0_16 = arith.constant 0 : index
    %41 = vector.load %arg5[%c0_14, %c0_15, %c0_16] : memref<3x192x64xbf16, #tpu.memory_space<vmem>>, vector<1x192x64xbf16>
    %42 = vector.shape_cast %41 : vector<1x192x64xbf16> to vector<192x64xbf16>
    %cst_17 = arith.constant dense<0.000000e+00> : vector<16x16x64xf32>
    %43 = tpu.matmul %40, %42, %cst_17 {dimension_numbers = #tpu.dot_dimension_numbers<[2], [0], [0, 1], [1], [0, 0, 0, 1, 1, 1], [], []>} : vector<16x16x192xbf16>, vector<192x64xbf16>, vector<16x16x64xf32> -> vector<16x16x64xf32>
    %44 = vector.extract_strided_slice %35 {offsets = [0, 1, 0, 0], sizes = [1, 16, 16, 64], strides = [1, 1, 1, 1]} : vector<1x18x18x64xbf16> to vector<1x16x16x64xbf16>
    %45 = vector.extract_strided_slice %35 {offsets = [0, 1, 1, 0], sizes = [1, 16, 16, 64], strides = [1, 1, 1, 1]} : vector<1x18x18x64xbf16> to vector<1x16x16x64xbf16>
    %46 = vector.extract_strided_slice %35 {offsets = [0, 1, 2, 0], sizes = [1, 16, 16, 64], strides = [1, 1, 1, 1]} : vector<1x18x18x64xbf16> to vector<1x16x16x64xbf16>
    %47 = tpu.concatenate %44, %45, %46 in 3 : vector<1x16x16x64xbf16>, vector<1x16x16x64xbf16>, vector<1x16x16x64xbf16> -> vector<1x16x16x192xbf16>
    %48 = vector.shape_cast %47 : vector<1x16x16x192xbf16> to vector<16x16x192xbf16>
    %c1 = arith.constant 1 : index
    %c0_18 = arith.constant 0 : index
    %c0_19 = arith.constant 0 : index
    %49 = vector.load %arg5[%c1, %c0_18, %c0_19] : memref<3x192x64xbf16, #tpu.memory_space<vmem>>, vector<1x192x64xbf16>
    %50 = vector.shape_cast %49 : vector<1x192x64xbf16> to vector<192x64xbf16>
    %cst_20 = arith.constant dense<0.000000e+00> : vector<16x16x64xf32>
    %51 = tpu.matmul %48, %50, %cst_20 {dimension_numbers = #tpu.dot_dimension_numbers<[2], [0], [0, 1], [1], [0, 0, 0, 1, 1, 1], [], []>} : vector<16x16x192xbf16>, vector<192x64xbf16>, vector<16x16x64xf32> -> vector<16x16x64xf32>
    %52 = arith.addf %43, %51 : vector<16x16x64xf32>
    %53 = vector.extract_strided_slice %35 {offsets = [0, 2, 0, 0], sizes = [1, 16, 16, 64], strides = [1, 1, 1, 1]} : vector<1x18x18x64xbf16> to vector<1x16x16x64xbf16>
    %54 = vector.extract_strided_slice %35 {offsets = [0, 2, 1, 0], sizes = [1, 16, 16, 64], strides = [1, 1, 1, 1]} : vector<1x18x18x64xbf16> to vector<1x16x16x64xbf16>
    %55 = vector.extract_strided_slice %35 {offsets = [0, 2, 2, 0], sizes = [1, 16, 16, 64], strides = [1, 1, 1, 1]} : vector<1x18x18x64xbf16> to vector<1x16x16x64xbf16>
    %56 = tpu.concatenate %53, %54, %55 in 3 : vector<1x16x16x64xbf16>, vector<1x16x16x64xbf16>, vector<1x16x16x64xbf16> -> vector<1x16x16x192xbf16>
    %57 = vector.shape_cast %56 : vector<1x16x16x192xbf16> to vector<16x16x192xbf16>
    %c2 = arith.constant 2 : index
    %c0_21 = arith.constant 0 : index
    %c0_22 = arith.constant 0 : index
    %58 = vector.load %arg5[%c2, %c0_21, %c0_22] : memref<3x192x64xbf16, #tpu.memory_space<vmem>>, vector<1x192x64xbf16>
    %59 = vector.shape_cast %58 : vector<1x192x64xbf16> to vector<192x64xbf16>
    %cst_23 = arith.constant dense<0.000000e+00> : vector<16x16x64xf32>
    %60 = tpu.matmul %57, %59, %cst_23 {dimension_numbers = #tpu.dot_dimension_numbers<[2], [0], [0, 1], [1], [0, 0, 0, 1, 1, 1], [], []>} : vector<16x16x192xbf16>, vector<192x64xbf16>, vector<16x16x64xf32> -> vector<16x16x64xf32>
    %61 = arith.addf %52, %60 : vector<16x16x64xf32>
    %62 = vector.shape_cast %31 : vector<1x16x16x64xbf16> to vector<16x16x64xbf16>
    %c0_24 = arith.constant 0 : index
    %c0_25 = arith.constant 0 : index
    %63 = vector.load %arg6[%c0_24, %c0_25] : memref<1x64xf32, #tpu.memory_space<vmem>>, vector<1x64xf32>
    %64 = vector.shape_cast %63 : vector<1x64xf32> to vector<64xf32>
    %65 = vector.shape_cast %64 : vector<64xf32> to vector<1x1x64xf32>
    %66 = vector.broadcast %65 : vector<1x1x64xf32> to vector<16x16x64xf32>
    %67 = arith.mulf %61, %66 : vector<16x16x64xf32>
    %c0_26 = arith.constant 0 : index
    %c0_27 = arith.constant 0 : index
    %68 = vector.load %arg7[%c0_26, %c0_27] : memref<1x64xf32, #tpu.memory_space<vmem>>, vector<1x64xf32>
    %69 = vector.shape_cast %68 : vector<1x64xf32> to vector<64xf32>
    %70 = vector.shape_cast %69 : vector<64xf32> to vector<1x1x64xf32>
    %71 = vector.broadcast %70 : vector<1x1x64xf32> to vector<16x16x64xf32>
    %72 = arith.addf %67, %71 : vector<16x16x64xf32>
    %cst_28 = arith.constant 0.000000e+00 : f32
    %73 = vector.broadcast %cst_28 : f32 to vector<16x16x64xf32>
    %74 = arith.maximumf %72, %73 : vector<16x16x64xf32>
    %75 = arith.truncf %74 : vector<16x16x64xf32> to vector<16x16x64xbf16>
    %76 = vector.shape_cast %75 : vector<16x16x64xbf16> to vector<1x16x16x64xbf16>
    %cst_29 = arith.constant 0.000000e+00 : bf16
    %77 = vector.broadcast %cst_29 : bf16 to vector<1x1x16x64xbf16>
    %78 = tpu.concatenate %77, %76, %77 in 1 : vector<1x1x16x64xbf16>, vector<1x16x16x64xbf16>, vector<1x1x16x64xbf16> -> vector<1x18x16x64xbf16>
    %cst_30 = arith.constant 0.000000e+00 : bf16
    %79 = vector.broadcast %cst_30 : bf16 to vector<1x18x1x64xbf16>
    %80 = tpu.concatenate %79, %78, %79 in 2 : vector<1x18x1x64xbf16>, vector<1x18x16x64xbf16>, vector<1x18x1x64xbf16> -> vector<1x18x18x64xbf16>
    %81 = vector.extract_strided_slice %80 {offsets = [0, 0, 0, 0], sizes = [1, 16, 16, 64], strides = [1, 1, 1, 1]} : vector<1x18x18x64xbf16> to vector<1x16x16x64xbf16>
    %82 = vector.extract_strided_slice %80 {offsets = [0, 0, 1, 0], sizes = [1, 16, 16, 64], strides = [1, 1, 1, 1]} : vector<1x18x18x64xbf16> to vector<1x16x16x64xbf16>
    %83 = vector.extract_strided_slice %80 {offsets = [0, 0, 2, 0], sizes = [1, 16, 16, 64], strides = [1, 1, 1, 1]} : vector<1x18x18x64xbf16> to vector<1x16x16x64xbf16>
    %84 = tpu.concatenate %81, %82, %83 in 3 : vector<1x16x16x64xbf16>, vector<1x16x16x64xbf16>, vector<1x16x16x64xbf16> -> vector<1x16x16x192xbf16>
    %85 = vector.shape_cast %84 : vector<1x16x16x192xbf16> to vector<16x16x192xbf16>
    %c0_31 = arith.constant 0 : index
    %c0_32 = arith.constant 0 : index
    %c0_33 = arith.constant 0 : index
    %86 = vector.load %arg8[%c0_31, %c0_32, %c0_33] : memref<3x192x64xbf16, #tpu.memory_space<vmem>>, vector<1x192x64xbf16>
    %87 = vector.shape_cast %86 : vector<1x192x64xbf16> to vector<192x64xbf16>
    %cst_34 = arith.constant dense<0.000000e+00> : vector<16x16x64xf32>
    %88 = tpu.matmul %85, %87, %cst_34 {dimension_numbers = #tpu.dot_dimension_numbers<[2], [0], [0, 1], [1], [0, 0, 0, 1, 1, 1], [], []>} : vector<16x16x192xbf16>, vector<192x64xbf16>, vector<16x16x64xf32> -> vector<16x16x64xf32>
    %89 = vector.extract_strided_slice %80 {offsets = [0, 1, 0, 0], sizes = [1, 16, 16, 64], strides = [1, 1, 1, 1]} : vector<1x18x18x64xbf16> to vector<1x16x16x64xbf16>
    %90 = vector.extract_strided_slice %80 {offsets = [0, 1, 1, 0], sizes = [1, 16, 16, 64], strides = [1, 1, 1, 1]} : vector<1x18x18x64xbf16> to vector<1x16x16x64xbf16>
    %91 = vector.extract_strided_slice %80 {offsets = [0, 1, 2, 0], sizes = [1, 16, 16, 64], strides = [1, 1, 1, 1]} : vector<1x18x18x64xbf16> to vector<1x16x16x64xbf16>
    %92 = tpu.concatenate %89, %90, %91 in 3 : vector<1x16x16x64xbf16>, vector<1x16x16x64xbf16>, vector<1x16x16x64xbf16> -> vector<1x16x16x192xbf16>
    %93 = vector.shape_cast %92 : vector<1x16x16x192xbf16> to vector<16x16x192xbf16>
    %c1_35 = arith.constant 1 : index
    %c0_36 = arith.constant 0 : index
    %c0_37 = arith.constant 0 : index
    %94 = vector.load %arg8[%c1_35, %c0_36, %c0_37] : memref<3x192x64xbf16, #tpu.memory_space<vmem>>, vector<1x192x64xbf16>
    %95 = vector.shape_cast %94 : vector<1x192x64xbf16> to vector<192x64xbf16>
    %cst_38 = arith.constant dense<0.000000e+00> : vector<16x16x64xf32>
    %96 = tpu.matmul %93, %95, %cst_38 {dimension_numbers = #tpu.dot_dimension_numbers<[2], [0], [0, 1], [1], [0, 0, 0, 1, 1, 1], [], []>} : vector<16x16x192xbf16>, vector<192x64xbf16>, vector<16x16x64xf32> -> vector<16x16x64xf32>
    %97 = arith.addf %88, %96 : vector<16x16x64xf32>
    %98 = vector.extract_strided_slice %80 {offsets = [0, 2, 0, 0], sizes = [1, 16, 16, 64], strides = [1, 1, 1, 1]} : vector<1x18x18x64xbf16> to vector<1x16x16x64xbf16>
    %99 = vector.extract_strided_slice %80 {offsets = [0, 2, 1, 0], sizes = [1, 16, 16, 64], strides = [1, 1, 1, 1]} : vector<1x18x18x64xbf16> to vector<1x16x16x64xbf16>
    %100 = vector.extract_strided_slice %80 {offsets = [0, 2, 2, 0], sizes = [1, 16, 16, 64], strides = [1, 1, 1, 1]} : vector<1x18x18x64xbf16> to vector<1x16x16x64xbf16>
    %101 = tpu.concatenate %98, %99, %100 in 3 : vector<1x16x16x64xbf16>, vector<1x16x16x64xbf16>, vector<1x16x16x64xbf16> -> vector<1x16x16x192xbf16>
    %102 = vector.shape_cast %101 : vector<1x16x16x192xbf16> to vector<16x16x192xbf16>
    %c2_39 = arith.constant 2 : index
    %c0_40 = arith.constant 0 : index
    %c0_41 = arith.constant 0 : index
    %103 = vector.load %arg8[%c2_39, %c0_40, %c0_41] : memref<3x192x64xbf16, #tpu.memory_space<vmem>>, vector<1x192x64xbf16>
    %104 = vector.shape_cast %103 : vector<1x192x64xbf16> to vector<192x64xbf16>
    %cst_42 = arith.constant dense<0.000000e+00> : vector<16x16x64xf32>
    %105 = tpu.matmul %102, %104, %cst_42 {dimension_numbers = #tpu.dot_dimension_numbers<[2], [0], [0, 1], [1], [0, 0, 0, 1, 1, 1], [], []>} : vector<16x16x192xbf16>, vector<192x64xbf16>, vector<16x16x64xf32> -> vector<16x16x64xf32>
    %106 = arith.addf %97, %105 : vector<16x16x64xf32>
    %c0_43 = arith.constant 0 : index
    %c0_44 = arith.constant 0 : index
    %107 = vector.load %arg9[%c0_43, %c0_44] : memref<1x64xf32, #tpu.memory_space<vmem>>, vector<1x64xf32>
    %108 = vector.shape_cast %107 : vector<1x64xf32> to vector<64xf32>
    %109 = vector.shape_cast %108 : vector<64xf32> to vector<1x1x64xf32>
    %110 = vector.broadcast %109 : vector<1x1x64xf32> to vector<16x16x64xf32>
    %111 = arith.mulf %106, %110 : vector<16x16x64xf32>
    %c0_45 = arith.constant 0 : index
    %c0_46 = arith.constant 0 : index
    %112 = vector.load %arg10[%c0_45, %c0_46] : memref<1x64xf32, #tpu.memory_space<vmem>>, vector<1x64xf32>
    %113 = vector.shape_cast %112 : vector<1x64xf32> to vector<64xf32>
    %114 = vector.shape_cast %113 : vector<64xf32> to vector<1x1x64xf32>
    %115 = vector.broadcast %114 : vector<1x1x64xf32> to vector<16x16x64xf32>
    %116 = arith.addf %111, %115 : vector<16x16x64xf32>
    %117 = arith.extf %62 : vector<16x16x64xbf16> to vector<16x16x64xf32>
    %118 = arith.addf %116, %117 : vector<16x16x64xf32>
    %cst_47 = arith.constant 0.000000e+00 : f32
    %119 = vector.broadcast %cst_47 : f32 to vector<16x16x64xf32>
    %120 = arith.maximumf %118, %119 : vector<16x16x64xf32>
    %121 = vector.shape_cast %120 : vector<16x16x64xf32> to vector<1x16x16x64xf32>
    %122 = arith.truncf %121 : vector<1x16x16x64xf32> to vector<1x16x16x64xbf16>
    %c0_48 = arith.constant 0 : index
    %c0_49 = arith.constant 0 : index
    %c0_50 = arith.constant 0 : index
    %c0_51 = arith.constant 0 : index
    %123 = vector.load %arg11[%c0_48, %c0_49, %c0_50, %c0_51] : memref<1x16x16x64xbf16, #tpu.memory_space<vmem>>, vector<1x16x16x64xbf16>
    tpu.vector_store %arg11[%c0_48, %c0_49, %c0_50, %c0_51], %122 {strides = array<i32>} : memref<1x16x16x64xbf16, #tpu.memory_space<vmem>>, vector<1x16x16x64xbf16>,
    return
  }
  func.func @transform_0(%arg0: i32) -> (i32, i32, i32, i32) {
    %c0_i32 = arith.constant 0 : i32
    %c0_i32_0 = arith.constant 0 : i32
    %c0_i32_1 = arith.constant 0 : i32
    %c0_i32_2 = arith.constant 0 : i32
    return %arg0, %c0_i32, %c0_i32_0, %c0_i32_1 : i32, i32, i32, i32
  }
  func.func @transform_1(%arg0: i32) -> (i32, i32) {
    %c0_i32 = arith.constant 0 : i32
    %c0_i32_0 = arith.constant 0 : i32
    %c0_i32_1 = arith.constant 0 : i32
    return %c0_i32, %c0_i32_0 : i32, i32
  }
  func.func @transform_2(%arg0: i32) -> (i32, i32) {
    %c0_i32 = arith.constant 0 : i32
    %c0_i32_0 = arith.constant 0 : i32
    %c0_i32_1 = arith.constant 0 : i32
    return %c0_i32, %c0_i32_0 : i32, i32
  }
  func.func @transform_3(%arg0: i32) -> (i32, i32) {
    %c0_i32 = arith.constant 0 : i32
    %c0_i32_0 = arith.constant 0 : i32
    %c0_i32_1 = arith.constant 0 : i32
    return %c0_i32, %c0_i32_0 : i32, i32
  }
  func.func @transform_4(%arg0: i32) -> (i32, i32, i32) {
    %c0_i32 = arith.constant 0 : i32
    %c0_i32_0 = arith.constant 0 : i32
    %c0_i32_1 = arith.constant 0 : i32
    %c0_i32_2 = arith.constant 0 : i32
    return %c0_i32, %c0_i32_0, %c0_i32_1 : i32, i32, i32
  }
  func.func @transform_5(%arg0: i32) -> (i32, i32) {
    %c0_i32 = arith.constant 0 : i32
    %c0_i32_0 = arith.constant 0 : i32
    %c0_i32_1 = arith.constant 0 : i32
    return %c0_i32, %c0_i32_0 : i32, i32
  }
  func.func @transform_6(%arg0: i32) -> (i32, i32) {
    %c0_i32 = arith.constant 0 : i32
    %c0_i32_0 = arith.constant 0 : i32
    %c0_i32_1 = arith.constant 0 : i32
    return %c0_i32, %c0_i32_0 : i32, i32
  }
  func.func @transform_7(%arg0: i32) -> (i32, i32, i32) {
    %c0_i32 = arith.constant 0 : i32
    %c0_i32_0 = arith.constant 0 : i32
    %c0_i32_1 = arith.constant 0 : i32
    %c0_i32_2 = arith.constant 0 : i32
    return %c0_i32, %c0_i32_0, %c0_i32_1 : i32, i32, i32
  }
  func.func @transform_8(%arg0: i32) -> (i32, i32) {
    %c0_i32 = arith.constant 0 : i32
    %c0_i32_0 = arith.constant 0 : i32
    %c0_i32_1 = arith.constant 0 : i32
    return %c0_i32, %c0_i32_0 : i32, i32
  }
  func.func @transform_9(%arg0: i32) -> (i32, i32) {
    %c0_i32 = arith.constant 0 : i32
    %c0_i32_0 = arith.constant 0 : i32
    %c0_i32_1 = arith.constant 0 : i32
    return %c0_i32, %c0_i32_0 : i32, i32
  }
  func.func @transform_10(%arg0: i32) -> (i32, i32, i32, i32) {
    %c0_i32 = arith.constant 0 : i32
    %c0_i32_0 = arith.constant 0 : i32
    %c0_i32_1 = arith.constant 0 : i32
    %c0_i32_2 = arith.constant 0 : i32
    return %arg0, %c0_i32, %c0_i32_0, %c0_i32_1 : i32, i32, i32, i32
  }
}

</mosaic_0001>

<llo_original>
// kernel: tpu_custom_call.1
$region0: #{tpu_custom_call.1}
  #allocation0 [shape = 'u32[]', space=smem, size = 0x4, offset = 0x4, fixed_abs, tag = 'smem constant byte address 0x4 - core index']
  #allocation1 [shape = 'u32[144,128]{1,0:T(1,128)}', space=vmem, size = 0x12000, scoped, tag = 'internal scratch']
  %s0 = inlined_call_operand.vmem [shape: bf16[2,16,16,3], index: 0, kind: input, shape index: {}]
  %s1 = inlined_call_operand.vmem [shape: bf16[27,64], index: 1, kind: input, shape index: {}]
  %s2 = inlined_call_operand.vmem [shape: f32[1,64], index: 2, kind: input, shape index: {}]
  %s3 = inlined_call_operand.vmem [shape: f32[1,64], index: 3, kind: input, shape index: {}]
  %s4 = inlined_call_operand.vmem [shape: bf16[3,192,64], index: 4, kind: input, shape index: {}]
  %s5 = inlined_call_operand.vmem [shape: f32[1,64], index: 5, kind: input, shape index: {}]
  %s6 = inlined_call_operand.vmem [shape: f32[1,64], index: 6, kind: input, shape index: {}]
  %s7 = inlined_call_operand.vmem [shape: bf16[3,192,64], index: 7, kind: input, shape index: {}]
  %s8 = inlined_call_operand.vmem [shape: f32[1,64], index: 8, kind: input, shape index: {}]
  %s9 = inlined_call_operand.vmem [shape: f32[1,64], index: 9, kind: input, shape index: {}]
  %s10 = inlined_call_operand.hbm [shape: bf16[2,16,16,64], index: 10, kind: output, shape index: {}]
  %s11 = sld [smem:[#allocation0]]
  $region73: #{tpu_custom_call.1} parent=0
    _
  %s13 = ssub.s32 1, %s11
  %s14 = scalar_select 0, %s13, %s11
  $region1: #{tpu_custom_call.1} parent=0
    #allocation2 [shape = 'u8[131072]{0}', space=vmem, size = 0x20000, scoped, tag = 'output window, operand 0']
    #allocation3 [shape = 's32[2]{0}', space=sflag, size = 0x8, scoped, tag = 'scoped memory for tpu_custom_call.1']
    %15 = vsyncpa [#allocation3], 0
    %s16 = scalar_lea.sflag [#allocation3], 1
    %17 = vsyncpa %s16, 0
    loop: start=0, step=1, limit=4
    $region2: #{tpu_custom_call.1} parent=1 // loop_pre_header
      _
    $region3: #{tpu_custom_call.1} parent=1 // loop_header
      %s19 = sphi 0, %s23
      %p20 = scmp.ge.s32.totalorder %s19, 4
      %s29 = sphi 0, %s31
      %s32 = sphi 0, %s29
      %s33 = sphi 0, %s32
      %s49 = sphi 0, %s33
      %s53 = sphi 0, %s53
      %s55 = sphi 0, %s53
      %s56 = sphi 0, %s55
      %s70 = sphi 0, %s56
      %s74 = sphi 0, %s74
      %s76 = sphi 0, %s74
      %s77 = sphi 0, %s76
      %s91 = sphi 0, %s77
      %s95 = sphi 0, %s95
      %s97 = sphi 0, %s95
      %s98 = sphi 0, %s97
      %s112 = sphi 0, %s98
      %s116 = sphi 0, %s116
      %s118 = sphi 0, %s116
      %s119 = sphi 0, %s118
      %s133 = sphi 0, %s119
      %s137 = sphi 0, %s137
      %s139 = sphi 0, %s137
      %s140 = sphi 0, %s139
      %s154 = sphi 0, %s140
      %s158 = sphi 0, %s158
      %s160 = sphi 0, %s158
      %s161 = sphi 0, %s160
      %s175 = sphi 0, %s161
      %s179 = sphi 0, %s179
      %s181 = sphi 0, %s179
      %s182 = sphi 0, %s181
      %s196 = sphi 0, %s182
      %s200 = sphi 0, %s200
      %s202 = sphi 0, %s200
      %s203 = sphi 0, %s202
      %s217 = sphi 0, %s203
      %s221 = sphi 0, %s221
      %s223 = sphi 0, %s221
      %s224 = sphi 0, %s223
      %s238 = sphi 0, %s224
      %s244 = sphi 0, %s246
      %s247 = sphi 0, %s244
      %s248 = sphi 0, %s247
      %s264 = sphi 0, %s248
    $region4: #{tpu_custom_call.1} parent=1 // loop_header_branch
      %22 = sbr.rel (%p20) target = $region8
    $region5: #{tpu_custom_call.1} parent=1 // loop_body
      %s24 = ssub.s32 %s19, 1
      %s25 = ssub.s32 %s19, 2
      %s26 = sadd.s32 %s19, 1
      %s27 = ssub.s32 %s19, %s26
      %p28 = scmp.eq.s32.totalorder %s27, 0
      %s30 = sadd.s32 %s29, 1
      %s31 = scalar_select %p28, %s29, %s30
      %p34 = pneg %p28
      %p35 = scmp.eq.s32.totalorder %s19, 1
      %p36 = por %p34, %p35
      %p37 = scmp.ne.s32.totalorder %s29, %s32
      %p38 = scmp.eq.s32.totalorder %s19, 0
      %p39 = por %p37, %p38
      %p40 = scmp.ne.s32.totalorder %s29, %s32
      %p41 = scmp.eq.s32.totalorder %s24, 1
      %p42 = por %p40, %p41
      %p43 = scmp.ne.s32.totalorder %s32, %s33
      %p44 = scmp.eq.s32.totalorder %s24, 0
      %p45 = por %p43, %p44
      %p46 = scmp.ne.s32.totalorder %s32, %s33
      %p47 = scmp.eq.s32.totalorder %s25, 1
      %p48 = por %p46, %p47
      %p50 = scmp.ne.s32.totalorder %s33, %s49
      %p51 = scmp.eq.s32.totalorder %s25, 0
      %p52 = por %p50, %p51
      %s54 = sadd.s32 %s53, 1
      %p57 = scmp.eq.s32.totalorder %s19, 1
      %p58 = scmp.ne.s32.totalorder %s53, %s55
      %p59 = scmp.eq.s32.totalorder %s19, 0
      %p60 = por %p58, %p59
      %p61 = scmp.ne.s32.totalorder %s53, %s55
      %p62 = scmp.eq.s32.totalorder %s24, 1
      %p63 = por %p61, %p62
      %p64 = scmp.ne.s32.totalorder %s55, %s56
      %p65 = scmp.eq.s32.totalorder %s24, 0
      %p66 = por %p64, %p65
      %p67 = scmp.ne.s32.totalorder %s55, %s56
      %p68 = scmp.eq.s32.totalorder %s25, 1
      %p69 = por %p67, %p68
      %p71 = scmp.ne.s32.totalorder %s56, %s70
      %p72 = scmp.eq.s32.totalorder %s25, 0
      %p73 = por %p71, %p72
      %s75 = sadd.s32 %s74, 1
      %p78 = scmp.eq.s32.totalorder %s19, 1
      %p79 = scmp.ne.s32.totalorder %s74, %s76
      %p80 = scmp.eq.s32.totalorder %s19, 0
      %p81 = por %p79, %p80
      %p82 = scmp.ne.s32.totalorder %s74, %s76
      %p83 = scmp.eq.s32.totalorder %s24, 1
      %p84 = por %p82, %p83
      %p85 = scmp.ne.s32.totalorder %s76, %s77
      %p86 = scmp.eq.s32.totalorder %s24, 0
      %p87 = por %p85, %p86
      %p88 = scmp.ne.s32.totalorder %s76, %s77
      %p89 = scmp.eq.s32.totalorder %s25, 1
      %p90 = por %p88, %p89
      %p92 = scmp.ne.s32.totalorder %s77, %s91
      %p93 = scmp.eq.s32.totalorder %s25, 0
      %p94 = por %p92, %p93
      %s96 = sadd.s32 %s95, 1
      %p99 = scmp.eq.s32.totalorder %s19, 1
      %p100 = scmp.ne.s32.totalorder %s95, %s97
      %p101 = scmp.eq.s32.totalorder %s19, 0
      %p102 = por %p100, %p101
      %p103 = scmp.ne.s32.totalorder %s95, %s97
      %p104 = scmp.eq.s32.totalorder %s24, 1
      %p105 = por %p103, %p104
      %p106 = scmp.ne.s32.totalorder %s97, %s98
      %p107 = scmp.eq.s32.totalorder %s24, 0
      %p108 = por %p106, %p107
      %p109 = scmp.ne.s32.totalorder %s97, %s98
      %p110 = scmp.eq.s32.totalorder %s25, 1
      %p111 = por %p109, %p110
      %p113 = scmp.ne.s32.totalorder %s98, %s112
      %p114 = scmp.eq.s32.totalorder %s25, 0
      %p115 = por %p113, %p114
      %s117 = sadd.s32 %s116, 1
      %p120 = scmp.eq.s32.totalorder %s19, 1
      %p121 = scmp.ne.s32.totalorder %s116, %s118
      %p122 = scmp.eq.s32.totalorder %s19, 0
      %p123 = por %p121, %p122
      %p124 = scmp.ne.s32.totalorder %s116, %s118
      %p125 = scmp.eq.s32.totalorder %s24, 1
      %p126 = por %p124, %p125
      %p127 = scmp.ne.s32.totalorder %s118, %s119
      %p128 = scmp.eq.s32.totalorder %s24, 0
      %p129 = por %p127, %p128
      %p130 = scmp.ne.s32.totalorder %s118, %s119
      %p131 = scmp.eq.s32.totalorder %s25, 1
      %p132 = por %p130, %p131
      %p134 = scmp.ne.s32.totalorder %s119, %s133
      %p135 = scmp.eq.s32.totalorder %s25, 0
      %p136 = por %p134, %p135
      %s138 = sadd.s32 %s137, 1
      %p141 = scmp.eq.s32.totalorder %s19, 1
      %p142 = scmp.ne.s32.totalorder %s137, %s139
      %p143 = scmp.eq.s32.totalorder %s19, 0
      %p144 = por %p142, %p143
      %p145 = scmp.ne.s32.totalorder %s137, %s139
      %p146 = scmp.eq.s32.totalorder %s24, 1
      %p147 = por %p145, %p146
      %p148 = scmp.ne.s32.totalorder %s139, %s140
      %p149 = scmp.eq.s32.totalorder %s24, 0
      %p150 = por %p148, %p149
      %p151 = scmp.ne.s32.totalorder %s139, %s140
      %p152 = scmp.eq.s32.totalorder %s25, 1
      %p153 = por %p151, %p152
      %p155 = scmp.ne.s32.totalorder %s140, %s154
      %p156 = scmp.eq.s32.totalorder %s25, 0
      %p157 = por %p155, %p156
      %s159 = sadd.s32 %s158, 1
      %p162 = scmp.eq.s32.totalorder %s19, 1
      %p163 = scmp.ne.s32.totalorder %s158, %s160
      %p164 = scmp.eq.s32.totalorder %s19, 0
      %p165 = por %p163, %p164
      %p166 = scmp.ne.s32.totalorder %s158, %s160
      %p167 = scmp.eq.s32.totalorder %s24, 1
      %p168 = por %p166, %p167
      %p169 = scmp.ne.s32.totalorder %s160, %s161
      %p170 = scmp.eq.s32.totalorder %s24, 0
      %p171 = por %p169, %p170
      %p172 = scmp.ne.s32.totalorder %s160, %s161
      %p173 = scmp.eq.s32.totalorder %s25, 1
      %p174 = por %p172, %p173
      %p176 = scmp.ne.s32.totalorder %s161, %s175
      %p177 = scmp.eq.s32.totalorder %s25, 0
      %p178 = por %p176, %p177
      %s180 = sadd.s32 %s179, 1
      %p183 = scmp.eq.s32.totalorder %s19, 1
      %p184 = scmp.ne.s32.totalorder %s179, %s181
      %p185 = scmp.eq.s32.totalorder %s19, 0
      %p186 = por %p184, %p185
      %p187 = scmp.ne.s32.totalorder %s179, %s181
      %p188 = scmp.eq.s32.totalorder %s24, 1
      %p189 = por %p187, %p188
      %p190 = scmp.ne.s32.totalorder %s181, %s182
      %p191 = scmp.eq.s32.totalorder %s24, 0
      %p192 = por %p190, %p191
      %p193 = scmp.ne.s32.totalorder %s181, %s182
      %p194 = scmp.eq.s32.totalorder %s25, 1
      %p195 = por %p193, %p194
      %p197 = scmp.ne.s32.totalorder %s182, %s196
      %p198 = scmp.eq.s32.totalorder %s25, 0
      %p199 = por %p197, %p198
      %s201 = sadd.s32 %s200, 1
      %p204 = scmp.eq.s32.totalorder %s19, 1
      %p205 = scmp.ne.s32.totalorder %s200, %s202
      %p206 = scmp.eq.s32.totalorder %s19, 0
      %p207 = por %p205, %p206
      %p208 = scmp.ne.s32.totalorder %s200, %s202
      %p209 = scmp.eq.s32.totalorder %s24, 1
      %p210 = por %p208, %p209
      %p211 = scmp.ne.s32.totalorder %s202, %s203
      %p212 = scmp.eq.s32.totalorder %s24, 0
      %p213 = por %p211, %p212
      %p214 = scmp.ne.s32.totalorder %s202, %s203
      %p215 = scmp.eq.s32.totalorder %s25, 1
      %p216 = por %p214, %p215
      %p218 = scmp.ne.s32.totalorder %s203, %s217
      %p219 = scmp.eq.s32.totalorder %s25, 0
      %p220 = por %p218, %p219
      %s222 = sadd.s32 %s221, 1
      %p225 = scmp.eq.s32.totalorder %s19, 1
      %p226 = scmp.ne.s32.totalorder %s221, %s223
      %p227 = scmp.eq.s32.totalorder %s19, 0
      %p228 = por %p226, %p227
      %p229 = scmp.ne.s32.totalorder %s221, %s223
      %p230 = scmp.eq.s32.totalorder %s24, 1
      %p231 = por %p229, %p230
      %p232 = scmp.ne.s32.totalorder %s223, %s224
      %p233 = scmp.eq.s32.totalorder %s24, 0
      %p234 = por %p232, %p233
      %p235 = scmp.ne.s32.totalorder %s223, %s224
      %p236 = scmp.eq.s32.totalorder %s25, 1
      %p237 = por %p235, %p236
      %p239 = scmp.ne.s32.totalorder %s224, %s238
      %p240 = scmp.eq.s32.totalorder %s25, 0
      %p241 = por %p239, %p240
      %s242 = ssub.s32 %s19, %s26
      %p243 = scmp.eq.s32.totalorder %s242, 0
      %s245 = sadd.s32 %s244, 1
      %s246 = scalar_select %p243, %s244, %s245
      %p249 = pneg %p243
      %p250 = scmp.eq.s32.totalorder %s19, 1
      %p251 = por %p249, %p250
      %p252 = scmp.ne.s32.totalorder %s244, %s247
      %p253 = scmp.eq.s32.totalorder %s19, 0
      %p254 = por %p252, %p253
      %p255 = scmp.ne.s32.totalorder %s244, %s247
      %p256 = scmp.eq.s32.totalorder %s24, 1
      %p257 = por %p255, %p256
      %p258 = scmp.ne.s32.totalorder %s247, %s248
      %p259 = scmp.eq.s32.totalorder %s24, 0
      %p260 = por %p258, %p259
      %p261 = scmp.ne.s32.totalorder %s247, %s248
      %p262 = scmp.eq.s32.totalorder %s25, 1
      %p263 = por %p261, %p262
      %p265 = scmp.ne.s32.totalorder %s248, %s264
      %p266 = scmp.eq.s32.totalorder %s25, 0
      %p267 = por %p265, %p266
      %p268 = scmp.le.s32.totalorder 1, %s19
      %p269 = scmp.lt.s32.totalorder %s19, 3
      %p270 = pnand %p268, %p269
      %p271 = pneg %p270
      // Predicated region
      $region9: #{tpu_custom_call.1} parent=5 // pred_check
        _
      $region10: #{tpu_custom_call.1} parent=5 // pred_check_branch
        %273 = sbr.rel (%p270) target = $region12
      $region11: #{tpu_custom_call.1} parent=5 // pred_region
        %s274 = ssub.s32 %s19, 1
        // Predicated region
        $region13: #{tpu_custom_call.1} parent=11 // pred_check
          %p275 = pneg %p66
        $region14: #{tpu_custom_call.1} parent=11 // pred_check_branch
          %277 = sbr.rel (%p275) target = $region16
        $region15: #{tpu_custom_call.1} parent=11 // pred_region
          _
        $region16: #{tpu_custom_call.1} parent=11 // pred_fallthru
          _
        // Predicated region
        $region17: #{tpu_custom_call.1} parent=11 // pred_check
          %p278 = pneg %p87
        $region18: #{tpu_custom_call.1} parent=11 // pred_check_branch
          %280 = sbr.rel (%p278) target = $region20
        $region19: #{tpu_custom_call.1} parent=11 // pred_region
          _
        $region20: #{tpu_custom_call.1} parent=11 // pred_fallthru
          _
        // Predicated region
        $region21: #{tpu_custom_call.1} parent=11 // pred_check
          %p281 = pneg %p108
        $region22: #{tpu_custom_call.1} parent=11 // pred_check_branch
          %283 = sbr.rel (%p281) target = $region24
        $region23: #{tpu_custom_call.1} parent=11 // pred_region
          _
        $region24: #{tpu_custom_call.1} parent=11 // pred_fallthru
          _
        // Predicated region
        $region25: #{tpu_custom_call.1} parent=11 // pred_check
          %p284 = pneg %p129
        $region26: #{tpu_custom_call.1} parent=11 // pred_check_branch
          %286 = sbr.rel (%p284) target = $region28
        $region27: #{tpu_custom_call.1} parent=11 // pred_region
          _
        $region28: #{tpu_custom_call.1} parent=11 // pred_fallthru
          _
        // Predicated region
        $region29: #{tpu_custom_call.1} parent=11 // pred_check
          %p287 = pneg %p150
        $region30: #{tpu_custom_call.1} parent=11 // pred_check_branch
          %289 = sbr.rel (%p287) target = $region32
        $region31: #{tpu_custom_call.1} parent=11 // pred_region
          _
        $region32: #{tpu_custom_call.1} parent=11 // pred_fallthru
          _
        // Predicated region
        $region33: #{tpu_custom_call.1} parent=11 // pred_check
          %p290 = pneg %p171
        $region34: #{tpu_custom_call.1} parent=11 // pred_check_branch
          %292 = sbr.rel (%p290) target = $region36
        $region35: #{tpu_custom_call.1} parent=11 // pred_region
          _
        $region36: #{tpu_custom_call.1} parent=11 // pred_fallthru
          _
        // Predicated region
        $region37: #{tpu_custom_call.1} parent=11 // pred_check
          %p293 = pneg %p192
        $region38: #{tpu_custom_call.1} parent=11 // pred_check_branch
          %295 = sbr.rel (%p293) target = $region40
        $region39: #{tpu_custom_call.1} parent=11 // pred_region
          _
        $region40: #{tpu_custom_call.1} parent=11 // pred_fallthru
          _
        // Predicated region
        $region41: #{tpu_custom_call.1} parent=11 // pred_check
          %p296 = pneg %p213
        $region42: #{tpu_custom_call.1} parent=11 // pred_check_branch
          %298 = sbr.rel (%p296) target = $region44
        $region43: #{tpu_custom_call.1} parent=11 // pred_region
          _
        $region44: #{tpu_custom_call.1} parent=11 // pred_fallthru
          _
        // Predicated region
        $region45: #{tpu_custom_call.1} parent=11 // pred_check
          %p299 = pneg %p234
        $region46: #{tpu_custom_call.1} parent=11 // pred_check_branch
          %301 = sbr.rel (%p299) target = $region48
        $region47: #{tpu_custom_call.1} parent=11 // pred_region
          _
        $region48: #{tpu_custom_call.1} parent=11 // pred_fallthru
          _
      $region12: #{tpu_custom_call.1} parent=5 // pred_fallthru
        _
      %p302 = scmp.lt.s32.totalorder %s19, 2
      // Predicated region
      $region49: #{tpu_custom_call.1} parent=5 // pred_check
        %p303 = pneg %p302
      $region50: #{tpu_custom_call.1} parent=5 // pred_check_branch
        %305 = sbr.rel (%p303) target = $region52
      $region51: #{tpu_custom_call.1} parent=5 // pred_region
        // Predicated region
        $region53: #{tpu_custom_call.1} parent=51 // pred_check
          %p306 = pneg %p39
        $region54: #{tpu_custom_call.1} parent=51 // pred_check_branch
          %308 = sbr.rel (%p306) target = $region56
        $region55: #{tpu_custom_call.1} parent=51 // pred_region
          %p309 = scmp.lt.s32.totalorder %s19, 1
          %s310 = scalar_select %p309, %s19, 1
          %s311 = smul.addr %s310, 32
          %s312 = smul.addr %s311, 4
          %s313 = scalar_lea.vmem %s0, %s312
        $region56: #{tpu_custom_call.1} parent=51 // pred_fallthru
          _
      $region52: #{tpu_custom_call.1} parent=5 // pred_fallthru
        _
      %p314 = scmp.le.s32.totalorder 1, %s19
      %p315 = scmp.lt.s32.totalorder %s19, 3
      %p316 = pnand %p314, %p315
      %p317 = pneg %p316
      // Predicated region
      $region57: #{tpu_custom_call.1} parent=5 // pred_check
        _
      $region58: #{tpu_custom_call.1} parent=5 // pred_check_branch
        %319 = sbr.rel (%p316) target = $region60
      $region59: #{tpu_custom_call.1} parent=5 // pred_region
        %s320 = ssub.s32 %s19, 1
        %p321 = scmp.lt.s32.totalorder %s24, 1
        %s322 = scalar_select %p321, %s24, 1
        %s323 = smul.addr %s322, 32
        %s324 = smul.addr %s323, 4
        %s325 = scalar_lea.vmem %s0, %s324
        %p326 = pneg %p45
        %p327 = pneg %p42
        %p328 = pneg %p66
        %p329 = pneg %p63
        %p330 = pneg %p87
        %p331 = pneg %p84
        %p332 = pneg %p108
        %p333 = pneg %p105
        %p334 = pneg %p129
        %p335 = pneg %p126
        %p336 = pneg %p150
        %p337 = pneg %p147
        %p338 = pneg %p171
        %p339 = pneg %p168
        %p340 = pneg %p192
        %p341 = pneg %p189
        %p342 = pneg %p213
        %p343 = pneg %p210
        %p344 = pneg %p234
        %p345 = pneg %p231
        %p346 = pneg %p260
        %p347 = pneg %p257
        %s348 = sand.u32 %s247, 1
        %s349 = scalar_lea.sflag [#allocation3], %s348
        %s350 = sand.u32 %s247, 1
        %s351 = smul.addr %s350, 128
        %s352 = scalar_lea.vmem [#allocation2], %s351
        %p353 = scmp.lt.s32.totalorder %s24, 1
        %s354 = scalar_select %p353, %s24, 1
        %s355 = smul.addr %s354, 32
        %s356 = smul.addr %s355, 4
        %s357 = scalar_lea.vmem %s0, %s356
        %v359 = vld [vmem:[%s357] sm:$0xf]
        %v360 = vld [vmem:[%s357 + $0x4] sm:$0xf]
        %v361 = vld [vmem:[%s357 + $0x8] sm:$0xf]
        %v362 = vld [vmem:[%s357 + $0xc] sm:$0xf]
        %v363 = vld [vmem:[%s357 + $0x10] sm:$0xf]
        %v364 = vld [vmem:[%s357 + $0x14] sm:$0xf]
        %v365 = vld [vmem:[%s357 + $0x18] sm:$0xf]
        %v366 = vld [vmem:[%s357 + $0x1c] sm:$0xf]
        %v367 = vld [vmem:[%s357 + $0x20] sm:$0xf]
        %v368 = vld [vmem:[%s357 + $0x24] sm:$0xf]
        %v369 = vld [vmem:[%s357 + $0x28] sm:$0xf]
        %v370 = vld [vmem:[%s357 + $0x2c] sm:$0xf]
        %v371 = vld [vmem:[%s357 + $0x30] sm:$0xf]
        %v372 = vld [vmem:[%s357 + $0x34] sm:$0xf]
        %v373 = vld [vmem:[%s357 + $0x38] sm:$0xf]
        %v374 = vld [vmem:[%s357 + $0x3c] sm:$0xf]
        %v375 = vld [vmem:[%s357 + $0x40] sm:$0xf]
        %v376 = vld [vmem:[%s357 + $0x44] sm:$0xf]
        %v377 = vld [vmem:[%s357 + $0x48] sm:$0xf]
        %v378 = vld [vmem:[%s357 + $0x4c] sm:$0xf]
        %v379 = vld [vmem:[%s357 + $0x50] sm:$0xf]
        %v380 = vld [vmem:[%s357 + $0x54] sm:$0xf]
        %v381 = vld [vmem:[%s357 + $0x58] sm:$0xf]
        %v382 = vld [vmem:[%s357 + $0x5c] sm:$0xf]
        %v383 = vld [vmem:[%s357 + $0x60] sm:$0xf]
        %v384 = vld [vmem:[%s357 + $0x64] sm:$0xf]
        %v385 = vld [vmem:[%s357 + $0x68] sm:$0xf]
        %v386 = vld [vmem:[%s357 + $0x6c] sm:$0xf]
        %v387 = vld [vmem:[%s357 + $0x70] sm:$0xf]
        %v388 = vld [vmem:[%s357 + $0x74] sm:$0xf]
        %v389 = vld [vmem:[%s357 + $0x78] sm:$0xf]
        %v390 = vld [vmem:[%s357 + $0x7c] sm:$0xf]
        %v423 = vunpack.c.l.b16 %v359
        %v424 = vunpack.c.l.b16 %v360
        %v425 = vunpack.c.l.b16 %v361
        %v426 = vunpack.c.l.b16 %v362
        %v427 = vunpack.c.l.b16 %v363
        %v428 = vunpack.c.l.b16 %v364
        %v429 = vunpack.c.l.b16 %v365
        %v430 = vunpack.c.l.b16 %v366
        %v431 = vunpack.c.l.b16 %v367
        %v432 = vunpack.c.l.b16 %v368
        %v433 = vunpack.c.l.b16 %v369
        %v434 = vunpack.c.l.b16 %v370
        %v435 = vunpack.c.l.b16 %v371
        %v436 = vunpack.c.l.b16 %v372
        %v437 = vunpack.c.l.b16 %v373
        %v438 = vunpack.c.l.b16 %v374
        %v439 = vunpack.c.l.b16 %v375
        %v440 = vunpack.c.l.b16 %v376
        %v441 = vunpack.c.l.b16 %v377
        %v442 = vunpack.c.l.b16 %v378
        %v443 = vunpack.c.l.b16 %v379
        %v444 = vunpack.c.l.b16 %v380
        %v445 = vunpack.c.l.b16 %v381
        %v446 = vunpack.c.l.b16 %v382
        %v447 = vunpack.c.l.b16 %v383
        %v448 = vunpack.c.l.b16 %v384
        %v449 = vunpack.c.l.b16 %v385
        %v450 = vunpack.c.l.b16 %v386
        %v451 = vunpack.c.l.b16 %v387
        %v452 = vunpack.c.l.b16 %v388
        %v453 = vunpack.c.l.b16 %v389
        %v454 = vunpack.c.l.b16 %v390
        %v455 = vpack.c.b16 %v424, %v423
        %v456 = vpack.c.b16 %v426, %v425
        %v457 = vpack.c.b16 %v428, %v427
        %v458 = vpack.c.b16 %v430, %v429
        %v459 = vpack.c.b16 %v432, %v431
        %v460 = vpack.c.b16 %v434, %v433
        %v461 = vpack.c.b16 %v436, %v435
        %v462 = vpack.c.b16 %v438, %v437
        %v463 = vpack.c.b16 %v440, %v439
        %v464 = vpack.c.b16 %v442, %v441
        %v465 = vpack.c.b16 %v444, %v443
        %v466 = vpack.c.b16 %v446, %v445
        %v467 = vpack.c.b16 %v448, %v447
        %v468 = vpack.c.b16 %v450, %v449
        %v469 = vpack.c.b16 %v452, %v451
        %v470 = vpack.c.b16 %v454, %v453
        %v472 = vshrl.u32 0, 16
        %v474 = vrot.slane %v472, 7
        %v475 = vshll.u32 0, 16
        %v477 = vor.u32 %v474, %v475
        %v479 = vshrl.u32 %v455, 16
        %v481 = vrot.slane %v479, 7
        %v482 = vshll.u32 %v455, 16
        %v484 = vor.u32 %v481, %v482
        %v486 = vshrl.u32 %v456, 16
        %v488 = vrot.slane %v486, 7
        %v489 = vshll.u32 %v456, 16
        %v491 = vor.u32 %v488, %v489
        %v493 = vshrl.u32 %v457, 16
        %v495 = vrot.slane %v493, 7
        %v496 = vshll.u32 %v457, 16
        %v498 = vor.u32 %v495, %v496
        %v500 = vshrl.u32 %v458, 16
        %v502 = vrot.slane %v500, 7
        %v503 = vshll.u32 %v458, 16
        %v505 = vor.u32 %v502, %v503
        %v507 = vshrl.u32 %v459, 16
        %v509 = vrot.slane %v507, 7
        %v510 = vshll.u32 %v459, 16
        %v512 = vor.u32 %v509, %v510
        %v514 = vshrl.u32 %v460, 16
        %v516 = vrot.slane %v514, 7
        %v517 = vshll.u32 %v460, 16
        %v519 = vor.u32 %v516, %v517
        %v521 = vshrl.u32 %v461, 16
        %v523 = vrot.slane %v521, 7
        %v524 = vshll.u32 %v461, 16
        %v526 = vor.u32 %v523, %v524
        %v528 = vshrl.u32 %v462, 16
        %v530 = vrot.slane %v528, 7
        %v531 = vshll.u32 %v462, 16
        %v533 = vor.u32 %v530, %v531
        %v535 = vshrl.u32 %v463, 16
        %v537 = vrot.slane %v535, 7
        %v538 = vshll.u32 %v463, 16
        %v540 = vor.u32 %v537, %v538
        %v542 = vshrl.u32 %v464, 16
        %v544 = vrot.slane %v542, 7
        %v545 = vshll.u32 %v464, 16
        %v547 = vor.u32 %v544, %v545
        %v549 = vshrl.u32 %v465, 16
        %v551 = vrot.slane %v549, 7
        %v552 = vshll.u32 %v465, 16
        %v554 = vor.u32 %v551, %v552
        %v556 = vshrl.u32 %v466, 16
        %v558 = vrot.slane %v556, 7
        %v559 = vshll.u32 %v466, 16
        %v561 = vor.u32 %v558, %v559
        %v563 = vshrl.u32 %v467, 16
        %v565 = vrot.slane %v563, 7
        %v566 = vshll.u32 %v467, 16
        %v568 = vor.u32 %v565, %v566
        %v570 = vshrl.u32 %v468, 16
        %v572 = vrot.slane %v570, 7
        %v573 = vshll.u32 %v468, 16
        %v575 = vor.u32 %v572, %v573
        %v577 = vshrl.u32 %v469, 16
        %v579 = vrot.slane %v577, 7
        %v580 = vshll.u32 %v469, 16
        %v582 = vor.u32 %v579, %v580
        %v584 = vshrl.u32 %v470, 16
        %v586 = vrot.slane %v584, 7
        %v587 = vshll.u32 %v470, 16
        %v589 = vor.u32 %v586, %v587
        %vm624 = vcmask 1040384
        %vm625 = vsmask.f32 256
        %vm626 = vmand %vm624, %vm625
        %v627 = vsel %vm626, 0, %v477
        %v628 = vsel %vm626, 0, %v484
        %v629 = vsel %vm626, 0, %v491
        %v630 = vsel %vm626, 0, %v498
        %v631 = vsel %vm626, 0, %v505
        %v632 = vsel %vm626, 0, %v512
        %v633 = vsel %vm626, 0, %v519
        %v634 = vsel %vm626, 0, %v526
        %v635 = vsel %vm626, 0, %v533
        %v636 = vsel %vm626, 0, %v540
        %v637 = vsel %vm626, 0, %v547
        %v638 = vsel %vm626, 0, %v554
        %v639 = vsel %vm626, 0, %v561
        %v640 = vsel %vm626, 0, %v568
        %v641 = vsel %vm626, 0, %v575
        %v642 = vsel %vm626, 0, %v582
        %v643 = vsel %vm626, 0, %v589
        %v644 = vsel %vm626, %v474, 0
        %v645 = vsel %vm626, %v481, 0
        %v646 = vsel %vm626, %v488, 0
        %v647 = vsel %vm626, %v495, 0
        %v648 = vsel %vm626, %v502, 0
        %v649 = vsel %vm626, %v509, 0
        %v650 = vsel %vm626, %v516, 0
        %v651 = vsel %vm626, %v523, 0
        %v652 = vsel %vm626, %v530, 0
        %v653 = vsel %vm626, %v537, 0
        %v654 = vsel %vm626, %v544, 0
        %v655 = vsel %vm626, %v551, 0
        %v656 = vsel %vm626, %v558, 0
        %v657 = vsel %vm626, %v565, 0
        %v658 = vsel %vm626, %v572, 0
        %v659 = vsel %vm626, %v579, 0
        %v660 = vsel %vm626, %v586, 0
        %vm661 = vsmask.f32 7424
        %v663 = vshrl.u32 %v627, 16
        %v665 = vshll.u32 %v627, 16
        %v667 = vrot.slane %v665, 1
        %v668 = vor.u32 %v663, %v667
        %v670 = vshll.u32 %v644, 16
        %v672 = vrot.slane %v670, 1
        %v673 = vsel %vm661, %v668, %v672
        %v675 = vshrl.u32 %v628, 16
        %v677 = vshll.u32 %v628, 16
        %v679 = vrot.slane %v677, 1
        %v680 = vor.u32 %v675, %v679
        %v682 = vshll.u32 %v645, 16
        %v684 = vrot.slane %v682, 1
        %v685 = vsel %vm661, %v680, %v684
        %v687 = vshrl.u32 %v629, 16
        %v689 = vshll.u32 %v629, 16
        %v691 = vrot.slane %v689, 1
        %v692 = vor.u32 %v687, %v691
        %v694 = vshll.u32 %v646, 16
        %v696 = vrot.slane %v694, 1
        %v697 = vsel %vm661, %v692, %v696
        %v699 = vshrl.u32 %v630, 16
        %v701 = vshll.u32 %v630, 16
        %v703 = vrot.slane %v701, 1
        %v704 = vor.u32 %v699, %v703
        %v706 = vshll.u32 %v647, 16
        %v708 = vrot.slane %v706, 1
        %v709 = vsel %vm661, %v704, %v708
        %v711 = vshrl.u32 %v631, 16
        %v713 = vshll.u32 %v631, 16
        %v715 = vrot.slane %v713, 1
        %v716 = vor.u32 %v711, %v715
        %v718 = vshll.u32 %v648, 16
        %v720 = vrot.slane %v718, 1
        %v721 = vsel %vm661, %v716, %v720
        %v723 = vshrl.u32 %v632, 16
        %v725 = vshll.u32 %v632, 16
        %v727 = vrot.slane %v725, 1
        %v728 = vor.u32 %v723, %v727
        %v730 = vshll.u32 %v649, 16
        %v732 = vrot.slane %v730, 1
        %v733 = vsel %vm661, %v728, %v732
        %v735 = vshrl.u32 %v633, 16
        %v737 = vshll.u32 %v633, 16
        %v739 = vrot.slane %v737, 1
        %v740 = vor.u32 %v735, %v739
        %v742 = vshll.u32 %v650, 16
        %v744 = vrot.slane %v742, 1
        %v745 = vsel %vm661, %v740, %v744
        %v747 = vshrl.u32 %v634, 16
        %v749 = vshll.u32 %v634, 16
        %v751 = vrot.slane %v749, 1
        %v752 = vor.u32 %v747, %v751
        %v754 = vshll.u32 %v651, 16
        %v756 = vrot.slane %v754, 1
        %v757 = vsel %vm661, %v752, %v756
        %v759 = vshrl.u32 %v635, 16
        %v761 = vshll.u32 %v635, 16
        %v763 = vrot.slane %v761, 1
        %v764 = vor.u32 %v759, %v763
        %v766 = vshll.u32 %v652, 16
        %v768 = vrot.slane %v766, 1
        %v769 = vsel %vm661, %v764, %v768
        %v771 = vshrl.u32 %v636, 16
        %v773 = vshll.u32 %v636, 16
        %v775 = vrot.slane %v773, 1
        %v776 = vor.u32 %v771, %v775
        %v778 = vshll.u32 %v653, 16
        %v780 = vrot.slane %v778, 1
        %v781 = vsel %vm661, %v776, %v780
        %v783 = vshrl.u32 %v637, 16
        %v785 = vshll.u32 %v637, 16
        %v787 = vrot.slane %v785, 1
        %v788 = vor.u32 %v783, %v787
        %v790 = vshll.u32 %v654, 16
        %v792 = vrot.slane %v790, 1
        %v793 = vsel %vm661, %v788, %v792
        %v795 = vshrl.u32 %v638, 16
        %v797 = vshll.u32 %v638, 16
        %v799 = vrot.slane %v797, 1
        %v800 = vor.u32 %v795, %v799
        %v802 = vshll.u32 %v655, 16
        %v804 = vrot.slane %v802, 1
        %v805 = vsel %vm661, %v800, %v804
        %v807 = vshrl.u32 %v639, 16
        %v809 = vshll.u32 %v639, 16
        %v811 = vrot.slane %v809, 1
        %v812 = vor.u32 %v807, %v811
        %v814 = vshll.u32 %v656, 16
        %v816 = vrot.slane %v814, 1
        %v817 = vsel %vm661, %v812, %v816
        %v819 = vshrl.u32 %v640, 16
        %v821 = vshll.u32 %v640, 16
        %v823 = vrot.slane %v821, 1
        %v824 = vor.u32 %v819, %v823
        %v826 = vshll.u32 %v657, 16
        %v828 = vrot.slane %v826, 1
        %v829 = vsel %vm661, %v824, %v828
        %v831 = vshrl.u32 %v641, 16
        %v833 = vshll.u32 %v641, 16
        %v835 = vrot.slane %v833, 1
        %v836 = vor.u32 %v831, %v835
        %v838 = vshll.u32 %v658, 16
        %v840 = vrot.slane %v838, 1
        %v841 = vsel %vm661, %v836, %v840
        %v843 = vshrl.u32 %v642, 16
        %v845 = vshll.u32 %v642, 16
        %v847 = vrot.slane %v845, 1
        %v848 = vor.u32 %v843, %v847
        %v850 = vshll.u32 %v659, 16
        %v852 = vrot.slane %v850, 1
        %v853 = vsel %vm661, %v848, %v852
        %854 = vrot.lane.b32.xlu0 %v673, 3
        %v855 = vpop.permute.xlu0 %854
        %856 = vrot.lane.b32.xlu0 %v685, 3
        %v857 = vpop.permute.xlu0 %856
        %858 = vrot.lane.b32.xlu0 %v697, 3
        %v859 = vpop.permute.xlu0 %858
        %860 = vrot.lane.b32.xlu0 %v709, 3
        %v861 = vpop.permute.xlu0 %860
        %862 = vrot.lane.b32.xlu0 %v721, 3
        %v863 = vpop.permute.xlu0 %862
        %864 = vrot.lane.b32.xlu0 %v733, 3
        %v865 = vpop.permute.xlu0 %864
        %866 = vrot.lane.b32.xlu0 %v745, 3
        %v867 = vpop.permute.xlu0 %866
        %868 = vrot.lane.b32.xlu0 %v757, 3
        %v869 = vpop.permute.xlu0 %868
        %870 = vrot.lane.b32.xlu0 %v769, 3
        %v871 = vpop.permute.xlu0 %870
        %872 = vrot.lane.b32.xlu0 %v781, 3
        %v873 = vpop.permute.xlu0 %872
        %874 = vrot.lane.b32.xlu0 %v793, 3
        %v875 = vpop.permute.xlu0 %874
        %876 = vrot.lane.b32.xlu0 %v805, 3
        %v877 = vpop.permute.xlu0 %876
        %878 = vrot.lane.b32.xlu0 %v817, 3
        %v879 = vpop.permute.xlu0 %878
        %880 = vrot.lane.b32.xlu0 %v829, 3
        %v881 = vpop.permute.xlu0 %880
        %882 = vrot.lane.b32.xlu0 %v841, 3
        %v883 = vpop.permute.xlu0 %882
        %884 = vrot.lane.b32.xlu0 %v853, 3
        %v885 = vpop.permute.xlu0 %884
        %vm918 = vcmask 1046528
        %v919 = vrot.slane %v627, 1
        %v920 = vrot.slane %v644, 1
        %v921 = vsel %vm918, %v919, %v920
        %v922 = vrot.slane %v628, 1
        %v923 = vrot.slane %v645, 1
        %v924 = vsel %vm918, %v922, %v923
        %v925 = vrot.slane %v629, 1
        %v926 = vrot.slane %v646, 1
        %v927 = vsel %vm918, %v925, %v926
        %v928 = vrot.slane %v630, 1
        %v929 = vrot.slane %v647, 1
        %v930 = vsel %vm918, %v928, %v929
        %v931 = vrot.slane %v631, 1
        %v932 = vrot.slane %v648, 1
        %v933 = vsel %vm918, %v931, %v932
        %v934 = vrot.slane %v632, 1
        %v935 = vrot.slane %v649, 1
        %v936 = vsel %vm918, %v934, %v935
        %v937 = vrot.slane %v633, 1
        %v938 = vrot.slane %v650, 1
        %v939 = vsel %vm918, %v937, %v938
        %v940 = vrot.slane %v634, 1
        %v941 = vrot.slane %v651, 1
        %v942 = vsel %vm918, %v940, %v941
        %v943 = vrot.slane %v635, 1
        %v944 = vrot.slane %v652, 1
        %v945 = vsel %vm918, %v943, %v944
        %v946 = vrot.slane %v636, 1
        %v947 = vrot.slane %v653, 1
        %v948 = vsel %vm918, %v946, %v947
        %v949 = vrot.slane %v637, 1
        %v950 = vrot.slane %v654, 1
        %v951 = vsel %vm918, %v949, %v950
        %v952 = vrot.slane %v638, 1
        %v953 = vrot.slane %v655, 1
        %v954 = vsel %vm918, %v952, %v953
        %v955 = vrot.slane %v639, 1
        %v956 = vrot.slane %v656, 1
        %v957 = vsel %vm918, %v955, %v956
        %v958 = vrot.slane %v640, 1
        %v959 = vrot.slane %v657, 1
        %v960 = vsel %vm918, %v958, %v959
        %v961 = vrot.slane %v641, 1
        %v962 = vrot.slane %v658, 1
        %v963 = vsel %vm918, %v961, %v962
        %v964 = vrot.slane %v642, 1
        %v965 = vrot.slane %v659, 1
        %v966 = vsel %vm918, %v964, %v965
        %967 = vrot.lane.b32.xlu0 %v921, 6
        %v968 = vpop.permute.xlu0 %967
        %969 = vrot.lane.b32.xlu0 %v924, 6
        %v970 = vpop.permute.xlu0 %969
        %971 = vrot.lane.b32.xlu0 %v927, 6
        %v972 = vpop.permute.xlu0 %971
        %973 = vrot.lane.b32.xlu0 %v930, 6
        %v974 = vpop.permute.xlu0 %973
        %975 = vrot.lane.b32.xlu0 %v933, 6
        %v976 = vpop.permute.xlu0 %975
        %977 = vrot.lane.b32.xlu0 %v936, 6
        %v978 = vpop.permute.xlu0 %977
        %979 = vrot.lane.b32.xlu0 %v939, 6
        %v980 = vpop.permute.xlu0 %979
        %981 = vrot.lane.b32.xlu0 %v942, 6
        %v982 = vpop.permute.xlu0 %981
        %983 = vrot.lane.b32.xlu0 %v945, 6
        %v984 = vpop.permute.xlu0 %983
        %985 = vrot.lane.b32.xlu0 %v948, 6
        %v986 = vpop.permute.xlu0 %985
        %987 = vrot.lane.b32.xlu0 %v951, 6
        %v988 = vpop.permute.xlu0 %987
        %989 = vrot.lane.b32.xlu0 %v954, 6
        %v990 = vpop.permute.xlu0 %989
        %991 = vrot.lane.b32.xlu0 %v957, 6
        %v992 = vpop.permute.xlu0 %991
        %993 = vrot.lane.b32.xlu0 %v960, 6
        %v994 = vpop.permute.xlu0 %993
        %995 = vrot.lane.b32.xlu0 %v963, 6
        %v996 = vpop.permute.xlu0 %995
        %997 = vrot.lane.b32.xlu0 %v966, 6
        %v998 = vpop.permute.xlu0 %997
        %1000 = vrot.lane.b32.xlu0 %v628, 9
        %v1001 = vpop.permute.xlu0 %1000
        %1002 = vrot.lane.b32.xlu0 %v629, 9
        %v1003 = vpop.permute.xlu0 %1002
        %1004 = vrot.lane.b32.xlu0 %v630, 9
        %v1005 = vpop.permute.xlu0 %1004
        %1006 = vrot.lane.b32.xlu0 %v631, 9
        %v1007 = vpop.permute.xlu0 %1006
        %1008 = vrot.lane.b32.xlu0 %v632, 9
        %v1009 = vpop.permute.xlu0 %1008
        %1010 = vrot.lane.b32.xlu0 %v633, 9
        %v1011 = vpop.permute.xlu0 %1010
        %1012 = vrot.lane.b32.xlu0 %v634, 9
        %v1013 = vpop.permute.xlu0 %1012
        %1014 = vrot.lane.b32.xlu0 %v635, 9
        %v1015 = vpop.permute.xlu0 %1014
        %1016 = vrot.lane.b32.xlu0 %v636, 9
        %v1017 = vpop.permute.xlu0 %1016
        %1018 = vrot.lane.b32.xlu0 %v637, 9
        %v1019 = vpop.permute.xlu0 %1018
        %1020 = vrot.lane.b32.xlu0 %v638, 9
        %v1021 = vpop.permute.xlu0 %1020
        %1022 = vrot.lane.b32.xlu0 %v639, 9
        %v1023 = vpop.permute.xlu0 %1022
        %1024 = vrot.lane.b32.xlu0 %v640, 9
        %v1025 = vpop.permute.xlu0 %1024
        %1026 = vrot.lane.b32.xlu0 %v641, 9
        %v1027 = vpop.permute.xlu0 %1026
        %1028 = vrot.lane.b32.xlu0 %v642, 9
        %v1029 = vpop.permute.xlu0 %1028
        %1030 = vrot.lane.b32.xlu0 %v643, 9
        %v1031 = vpop.permute.xlu0 %1030
        %v1033 = vshrl.u32 %v643, 16
        %v1035 = vshll.u32 %v643, 16
        %v1037 = vrot.slane %v1035, 1
        %v1038 = vor.u32 %v1033, %v1037
        %v1040 = vshll.u32 %v660, 16
        %v1042 = vrot.slane %v1040, 1
        %v1043 = vsel %vm661, %v1038, %v1042
        %1044 = vrot.lane.b32.xlu0 %v685, 12
        %v1045 = vpop.permute.xlu0 %1044
        %1046 = vrot.lane.b32.xlu0 %v697, 12
        %v1047 = vpop.permute.xlu0 %1046
        %1048 = vrot.lane.b32.xlu0 %v709, 12
        %v1049 = vpop.permute.xlu0 %1048
        %1050 = vrot.lane.b32.xlu0 %v721, 12
        %v1051 = vpop.permute.xlu0 %1050
        %1052 = vrot.lane.b32.xlu0 %v733, 12
        %v1053 = vpop.permute.xlu0 %1052
        %1054 = vrot.lane.b32.xlu0 %v745, 12
        %v1055 = vpop.permute.xlu0 %1054
        %1056 = vrot.lane.b32.xlu0 %v757, 12
        %v1057 = vpop.permute.xlu0 %1056
        %1058 = vrot.lane.b32.xlu0 %v769, 12
        %v1059 = vpop.permute.xlu0 %1058
        %1060 = vrot.lane.b32.xlu0 %v781, 12
        %v1061 = vpop.permute.xlu0 %1060
        %1062 = vrot.lane.b32.xlu0 %v793, 12
        %v1063 = vpop.permute.xlu0 %1062
        %1064 = vrot.lane.b32.xlu0 %v805, 12
        %v1065 = vpop.permute.xlu0 %1064
        %1066 = vrot.lane.b32.xlu0 %v817, 12
        %v1067 = vpop.permute.xlu0 %1066
        %1068 = vrot.lane.b32.xlu0 %v829, 12
        %v1069 = vpop.permute.xlu0 %1068
        %1070 = vrot.lane.b32.xlu0 %v841, 12
        %v1071 = vpop.permute.xlu0 %1070
        %1072 = vrot.lane.b32.xlu0 %v853, 12
        %v1073 = vpop.permute.xlu0 %1072
        %1074 = vrot.lane.b32.xlu0 %v1043, 12
        %v1075 = vpop.permute.xlu0 %1074
        %v1077 = vrot.slane %v643, 1
        %v1078 = vrot.slane %v660, 1
        %v1079 = vsel %vm918, %v1077, %v1078
        %1080 = vrot.lane.b32.xlu0 %v924, 15
        %v1081 = vpop.permute.xlu0 %1080
        %1082 = vrot.lane.b32.xlu0 %v927, 15
        %v1083 = vpop.permute.xlu0 %1082
        %1084 = vrot.lane.b32.xlu0 %v930, 15
        %v1085 = vpop.permute.xlu0 %1084
        %1086 = vrot.lane.b32.xlu0 %v933, 15
        %v1087 = vpop.permute.xlu0 %1086
        %1088 = vrot.lane.b32.xlu0 %v936, 15
        %v1089 = vpop.permute.xlu0 %1088
        %1090 = vrot.lane.b32.xlu0 %v939, 15
        %v1091 = vpop.permute.xlu0 %1090
        %1092 = vrot.lane.b32.xlu0 %v942, 15
        %v1093 = vpop.permute.xlu0 %1092
        %1094 = vrot.lane.b32.xlu0 %v945, 15
        %v1095 = vpop.permute.xlu0 %1094
        %1096 = vrot.lane.b32.xlu0 %v948, 15
        %v1097 = vpop.permute.xlu0 %1096
        %1098 = vrot.lane.b32.xlu0 %v951, 15
        %v1099 = vpop.permute.xlu0 %1098
        %1100 = vrot.lane.b32.xlu0 %v954, 15
        %v1101 = vpop.permute.xlu0 %1100
        %1102 = vrot.lane.b32.xlu0 %v957, 15
        %v1103 = vpop.permute.xlu0 %1102
        %1104 = vrot.lane.b32.xlu0 %v960, 15
        %v1105 = vpop.permute.xlu0 %1104
        %1106 = vrot.lane.b32.xlu0 %v963, 15
        %v1107 = vpop.permute.xlu0 %1106
        %1108 = vrot.lane.b32.xlu0 %v966, 15
        %v1109 = vpop.permute.xlu0 %1108
        %1110 = vrot.lane.b32.xlu0 %v1079, 15
        %v1111 = vpop.permute.xlu0 %1110
        %1112 = vrot.lane.b32.xlu0 %v629, 18
        %v1113 = vpop.permute.xlu0 %1112
        %1114 = vrot.lane.b32.xlu0 %v630, 18
        %v1115 = vpop.permute.xlu0 %1114
        %1116 = vrot.lane.b32.xlu0 %v631, 18
        %v1117 = vpop.permute.xlu0 %1116
        %1118 = vrot.lane.b32.xlu0 %v632, 18
        %v1119 = vpop.permute.xlu0 %1118
        %1120 = vrot.lane.b32.xlu0 %v633, 18
        %v1121 = vpop.permute.xlu0 %1120
        %1122 = vrot.lane.b32.xlu0 %v634, 18
        %v1123 = vpop.permute.xlu0 %1122
        %1124 = vrot.lane.b32.xlu0 %v635, 18
        %v1125 = vpop.permute.xlu0 %1124
        %1126 = vrot.lane.b32.xlu0 %v636, 18
        %v1127 = vpop.permute.xlu0 %1126
        %1128 = vrot.lane.b32.xlu0 %v637, 18
        %v1129 = vpop.permute.xlu0 %1128
        %1130 = vrot.lane.b32.xlu0 %v638, 18
        %v1131 = vpop.permute.xlu0 %1130
        %1132 = vrot.lane.b32.xlu0 %v639, 18
        %v1133 = vpop.permute.xlu0 %1132
        %1134 = vrot.lane.b32.xlu0 %v640, 18
        %v1135 = vpop.permute.xlu0 %1134
        %1136 = vrot.lane.b32.xlu0 %v641, 18
        %v1137 = vpop.permute.xlu0 %1136
        %1138 = vrot.lane.b32.xlu0 %v642, 18
        %v1139 = vpop.permute.xlu0 %1138
        %1140 = vrot.lane.b32.xlu0 %v643, 18
        %v1141 = vpop.permute.xlu0 %1140
        %1142 = vrot.lane.b32.xlu0 %v627, 18
        %v1143 = vpop.permute.xlu0 %1142
        %1144 = vrot.lane.b32.xlu0 %v697, 21
        %v1145 = vpop.permute.xlu0 %1144
        %1146 = vrot.lane.b32.xlu0 %v709, 21
        %v1147 = vpop.permute.xlu0 %1146
        %1148 = vrot.lane.b32.xlu0 %v721, 21
        %v1149 = vpop.permute.xlu0 %1148
        %1150 = vrot.lane.b32.xlu0 %v733, 21
        %v1151 = vpop.permute.xlu0 %1150
        %1152 = vrot.lane.b32.xlu0 %v745, 21
        %v1153 = vpop.permute.xlu0 %1152
        %1154 = vrot.lane.b32.xlu0 %v757, 21
        %v1155 = vpop.permute.xlu0 %1154
        %1156 = vrot.lane.b32.xlu0 %v769, 21
        %v1157 = vpop.permute.xlu0 %1156
        %1158 = vrot.lane.b32.xlu0 %v781, 21
        %v1159 = vpop.permute.xlu0 %1158
        %1160 = vrot.lane.b32.xlu0 %v793, 21
        %v1161 = vpop.permute.xlu0 %1160
        %1162 = vrot.lane.b32.xlu0 %v805, 21
        %v1163 = vpop.permute.xlu0 %1162
        %1164 = vrot.lane.b32.xlu0 %v817, 21
        %v1165 = vpop.permute.xlu0 %1164
        %1166 = vrot.lane.b32.xlu0 %v829, 21
        %v1167 = vpop.permute.xlu0 %1166
        %1168 = vrot.lane.b32.xlu0 %v841, 21
        %v1169 = vpop.permute.xlu0 %1168
        %1170 = vrot.lane.b32.xlu0 %v853, 21
        %v1171 = vpop.permute.xlu0 %1170
        %1172 = vrot.lane.b32.xlu0 %v1043, 21
        %v1173 = vpop.permute.xlu0 %1172
        %1174 = vrot.lane.b32.xlu0 %v673, 21
        %v1175 = vpop.permute.xlu0 %1174
        %1176 = vrot.lane.b32.xlu0 %v927, 24
        %v1177 = vpop.permute.xlu0 %1176
        %1178 = vrot.lane.b32.xlu0 %v930, 24
        %v1179 = vpop.permute.xlu0 %1178
        %1180 = vrot.lane.b32.xlu0 %v933, 24
        %v1181 = vpop.permute.xlu0 %1180
        %1182 = vrot.lane.b32.xlu0 %v936, 24
        %v1183 = vpop.permute.xlu0 %1182
        %1184 = vrot.lane.b32.xlu0 %v939, 24
        %v1185 = vpop.permute.xlu0 %1184
        %1186 = vrot.lane.b32.xlu0 %v942, 24
        %v1187 = vpop.permute.xlu0 %1186
        %1188 = vrot.lane.b32.xlu0 %v945, 24
        %v1189 = vpop.permute.xlu0 %1188
        %1190 = vrot.lane.b32.xlu0 %v948, 24
        %v1191 = vpop.permute.xlu0 %1190
        %1192 = vrot.lane.b32.xlu0 %v951, 24
        %v1193 = vpop.permute.xlu0 %1192
        %1194 = vrot.lane.b32.xlu0 %v954, 24
        %v1195 = vpop.permute.xlu0 %1194
        %1196 = vrot.lane.b32.xlu0 %v957, 24
        %v1197 = vpop.permute.xlu0 %1196
        %1198 = vrot.lane.b32.xlu0 %v960, 24
        %v1199 = vpop.permute.xlu0 %1198
        %1200 = vrot.lane.b32.xlu0 %v963, 24
        %v1201 = vpop.permute.xlu0 %1200
        %1202 = vrot.lane.b32.xlu0 %v966, 24
        %v1203 = vpop.permute.xlu0 %1202
        %1204 = vrot.lane.b32.xlu0 %v1079, 24
        %v1205 = vpop.permute.xlu0 %1204
        %1206 = vrot.lane.b32.xlu0 %v921, 24
        %v1207 = vpop.permute.xlu0 %1206
        %vm1208 = vcmask 23552
        %v1210 = vsel %vm1208, %v627, %v855
        %v1212 = vsel %vm1208, %v628, %v857
        %v1214 = vsel %vm1208, %v629, %v859
        %v1216 = vsel %vm1208, %v630, %v861
        %v1218 = vsel %vm1208, %v631, %v863
        %v1220 = vsel %vm1208, %v632, %v865
        %v1222 = vsel %vm1208, %v633, %v867
        %v1224 = vsel %vm1208, %v634, %v869
        %v1226 = vsel %vm1208, %v635, %v871
        %v1228 = vsel %vm1208, %v636, %v873
        %v1230 = vsel %vm1208, %v637, %v875
        %v1232 = vsel %vm1208, %v638, %v877
        %v1234 = vsel %vm1208, %v639, %v879
        %v1236 = vsel %vm1208, %v640, %v881
        %v1238 = vsel %vm1208, %v641, %v883
        %v1240 = vsel %vm1208, %v642, %v885
        %vm1241 = vcmask 48128
        %v1243 = vsel %vm1241, %v1210, %v968
        %v1245 = vsel %vm1241, %v1212, %v970
        %v1247 = vsel %vm1241, %v1214, %v972
        %v1249 = vsel %vm1241, %v1216, %v974
        %v1251 = vsel %vm1241, %v1218, %v976
        %v1253 = vsel %vm1241, %v1220, %v978
        %v1255 = vsel %vm1241, %v1222, %v980
        %v1257 = vsel %vm1241, %v1224, %v982
        %v1259 = vsel %vm1241, %v1226, %v984
        %v1261 = vsel %vm1241, %v1228, %v986
        %v1263 = vsel %vm1241, %v1230, %v988
        %v1265 = vsel %vm1241, %v1232, %v990
        %v1267 = vsel %vm1241, %v1234, %v992
        %v1269 = vsel %vm1241, %v1236, %v994
        %v1271 = vsel %vm1241, %v1238, %v996
        %v1273 = vsel %vm1241, %v1240, %v998
        %vm1274 = vcmask 72704
        %v1276 = vsel %vm1274, %v1243, %v1001
        %v1278 = vsel %vm1274, %v1245, %v1003
        %v1280 = vsel %vm1274, %v1247, %v1005
        %v1282 = vsel %vm1274, %v1249, %v1007
        %v1284 = vsel %vm1274, %v1251, %v1009
        %v1286 = vsel %vm1274, %v1253, %v1011
        %v1288 = vsel %vm1274, %v1255, %v1013
        %v1290 = vsel %vm1274, %v1257, %v1015
        %v1292 = vsel %vm1274, %v1259, %v1017
        %v1294 = vsel %vm1274, %v1261, %v1019
        %v1296 = vsel %vm1274, %v1263, %v1021
        %v1298 = vsel %vm1274, %v1265, %v1023
        %v1300 = vsel %vm1274, %v1267, %v1025
        %v1302 = vsel %vm1274, %v1269, %v1027
        %v1304 = vsel %vm1274, %v1271, %v1029
        %v1306 = vsel %vm1274, %v1273, %v1031
        %vm1307 = vcmask 97280
        %v1309 = vsel %vm1307, %v1276, %v1045
        %v1311 = vsel %vm1307, %v1278, %v1047
        %v1313 = vsel %vm1307, %v1280, %v1049
        %v1315 = vsel %vm1307, %v1282, %v1051
        %v1317 = vsel %vm1307, %v1284, %v1053
        %v1319 = vsel %vm1307, %v1286, %v1055
        %v1321 = vsel %vm1307, %v1288, %v1057
        %v1323 = vsel %vm1307, %v1290, %v1059
        %v1325 = vsel %vm1307, %v1292, %v1061
        %v1327 = vsel %vm1307, %v1294, %v1063
        %v1329 = vsel %vm1307, %v1296, %v1065
        %v1331 = vsel %vm1307, %v1298, %v1067
        %v1333 = vsel %vm1307, %v1300, %v1069
        %v1335 = vsel %vm1307, %v1302, %v1071
        %v1337 = vsel %vm1307, %v1304, %v1073
        %v1339 = vsel %vm1307, %v1306, %v1075
        %vm1340 = vcmask 121856
        %v1342 = vsel %vm1340, %v1309, %v1081
        %v1344 = vsel %vm1340, %v1311, %v1083
        %v1346 = vsel %vm1340, %v1313, %v1085
        %v1348 = vsel %vm1340, %v1315, %v1087
        %v1350 = vsel %vm1340, %v1317, %v1089
        %v1352 = vsel %vm1340, %v1319, %v1091
        %v1354 = vsel %vm1340, %v1321, %v1093
        %v1356 = vsel %vm1340, %v1323, %v1095
        %v1358 = vsel %vm1340, %v1325, %v1097
        %v1360 = vsel %vm1340, %v1327, %v1099
        %v1362 = vsel %vm1340, %v1329, %v1101
        %v1364 = vsel %vm1340, %v1331, %v1103
        %v1366 = vsel %vm1340, %v1333, %v1105
        %v1368 = vsel %vm1340, %v1335, %v1107
        %v1370 = vsel %vm1340, %v1337, %v1109
        %v1372 = vsel %vm1340, %v1339, %v1111
        %vm1373 = vcmask 146432
        %v1375 = vsel %vm1373, %v1342, %v1113
        %v1377 = vsel %vm1373, %v1344, %v1115
        %v1379 = vsel %vm1373, %v1346, %v1117
        %v1381 = vsel %vm1373, %v1348, %v1119
        %v1383 = vsel %vm1373, %v1350, %v1121
        %v1385 = vsel %vm1373, %v1352, %v1123
        %v1387 = vsel %vm1373, %v1354, %v1125
        %v1389 = vsel %vm1373, %v1356, %v1127
        %v1391 = vsel %vm1373, %v1358, %v1129
        %v1393 = vsel %vm1373, %v1360, %v1131
        %v1395 = vsel %vm1373, %v1362, %v1133
        %v1397 = vsel %vm1373, %v1364, %v1135
        %v1399 = vsel %vm1373, %v1366, %v1137
        %v1401 = vsel %vm1373, %v1368, %v1139
        %v1403 = vsel %vm1373, %v1370, %v1141
        %v1405 = vsel %vm1373, %v1372, %v1143
        %vm1406 = vcmask 171008
        %v1408 = vsel %vm1406, %v1375, %v1145
        %v1410 = vsel %vm1406, %v1377, %v1147
        %v1412 = vsel %vm1406, %v1379, %v1149
        %v1414 = vsel %vm1406, %v1381, %v1151
        %v1416 = vsel %vm1406, %v1383, %v1153
        %v1418 = vsel %vm1406, %v1385, %v1155
        %v1420 = vsel %vm1406, %v1387, %v1157
        %v1422 = vsel %vm1406, %v1389, %v1159
        %v1424 = vsel %vm1406, %v1391, %v1161
        %v1426 = vsel %vm1406, %v1393, %v1163
        %v1428 = vsel %vm1406, %v1395, %v1165
        %v1430 = vsel %vm1406, %v1397, %v1167
        %v1432 = vsel %vm1406, %v1399, %v1169
        %v1434 = vsel %vm1406, %v1401, %v1171
        %v1436 = vsel %vm1406, %v1403, %v1173
        %v1438 = vsel %vm1406, %v1405, %v1175
        %vm1439 = vcmask 195584
        %v1441 = vsel %vm1439, %v1408, %v1177
        %v1443 = vsel %vm1439, %v1410, %v1179
        %v1445 = vsel %vm1439, %v1412, %v1181
        %v1447 = vsel %vm1439, %v1414, %v1183
        %v1449 = vsel %vm1439, %v1416, %v1185
        %v1451 = vsel %vm1439, %v1418, %v1187
        %v1453 = vsel %vm1439, %v1420, %v1189
        %v1455 = vsel %vm1439, %v1422, %v1191
        %v1457 = vsel %vm1439, %v1424, %v1193
        %v1459 = vsel %vm1439, %v1426, %v1195
        %v1461 = vsel %vm1439, %v1428, %v1197
        %v1463 = vsel %vm1439, %v1430, %v1199
        %v1465 = vsel %vm1439, %v1432, %v1201
        %v1467 = vsel %vm1439, %v1434, %v1203
        %v1469 = vsel %vm1439, %v1436, %v1205
        %v1471 = vsel %vm1439, %v1438, %v1207
        %v1472 = vld [vmem:[%s1] sm:$0xf]
        %v1473 = vld [vmem:[%s1 + $0x4] sm:$0xf]
        %v1474 = vld [vmem:[%s1 + $0x8] sm:$0xf]
        %v1475 = vld [vmem:[%s1 + $0xc] sm:$0x3]
        %v1480 = vunpack.c.l.b16 %v1472
        %v1481 = vunpack.c.l.b16 %v1473
        %v1482 = vunpack.c.l.b16 %v1474
        %v1483 = vunpack.c.l.b16 %v1475
        %v1484 = vpack.c.b16 %v1481, %v1480
        %v1485 = vpack.c.b16 %v1483, %v1482
        %vm1487 = vcmask 220160
        %v1488 = vsel %vm1487, %v1441, 0
        %v1490 = vsel %vm1487, %v1443, 0
        %v1492 = vsel %vm1487, %v1445, 0
        %v1494 = vsel %vm1487, %v1447, 0
        %v1496 = vsel %vm1487, %v1449, 0
        %v1498 = vsel %vm1487, %v1451, 0
        %v1500 = vsel %vm1487, %v1453, 0
        %v1502 = vsel %vm1487, %v1455, 0
        %v1504 = vsel %vm1487, %v1457, 0
        %v1506 = vsel %vm1487, %v1459, 0
        %v1508 = vsel %vm1487, %v1461, 0
        %v1510 = vsel %vm1487, %v1463, 0
        %v1512 = vsel %vm1487, %v1465, 0
        %v1514 = vsel %vm1487, %v1467, 0
        %v1516 = vsel %vm1487, %v1469, 0
        %v1518 = vsel %vm1487, %v1471, 0
        %vm1520 = vcmask 1044480
        %vm1521 = vcmask 1045504
        %v1522 = vsel %vm1520, 4294967295, 65535
        %v1523 = vsel %vm1521, %v1522, 0
        %v1525 = vand.u32 %v1485, %v1523
        %1527 = vmatprep.subr.bf16.mxu0 0
        %1528 = vmatpush1.bf16.msra.mxu0 0
        %1529 = vmatprep.subr.bf16.mxu0 0
        %1530 = vmatpush1.bf16.msra.mxu0 0
        %1531 = vmatprep.subr.bf16.mxu0 0
        %1532 = vmatpush1.bf16.msra.mxu0 0
        %1533 = vmatprep.subr.bf16.mxu0 0
        %1534 = vmatpush1.bf16.msra.mxu0 0
        %1535 = vmatprep.subr.bf16.mxu0 0
        %1536 = vmatpush1.bf16.msra.mxu0 0
        %1537 = vmatprep.subr.bf16.mxu0 0
        %1538 = vmatpush1.bf16.msra.mxu0 0
        %1539 = vmatprep.subr.bf16.mxu0 0
        %1540 = vmatpush1.bf16.msra.mxu0 %v1525
        %1541 = vmatprep.subr.bf16.mxu0 0
        %1542 = vmatpush1.bf16.msra.mxu0 %v1484
        %1543 = vmatprep.subr.bf16.mxu0 0
        %1544 = vmatpush2.bf16.msra.mxu0 0
        %1545 = vmatprep.subr.bf16.mxu0 0
        %1546 = vmatpush2.bf16.msra.mxu0 0
        %1547 = vmatprep.subr.bf16.mxu0 0
        %1548 = vmatpush2.bf16.msra.mxu0 0
        %1549 = vmatprep.subr.bf16.mxu0 0
        %1550 = vmatpush2.bf16.msra.mxu0 0
        %1551 = vmatprep.subr.bf16.mxu0 0
        %1552 = vmatpush2.bf16.msra.mxu0 0
        %1553 = vmatprep.subr.bf16.mxu0 0
        %1554 = vmatpush2.bf16.msra.mxu0 0
        %1555 = vmatprep.subr.bf16.mxu0 0
        %1556 = vmatpush2.bf16.msra.mxu0 0
        %1557 = vmatprep.subr.bf16.mxu0 0
        %1558 = vmatpush2.bf16.msra.mxu0 0
        %1559 = vmatprep.mubr.bf16.mxu0 0
        %1560 = vmatmul.mubr.bf16.gmra.mxu0 %v1488
        %v1561 = vpop.f32.mrf.mxu0
        %v1562 = vadd.f32 0.0, %v1561
        %v1563 = vpop.f32.mrf.mxu0
        %v1564 = vpop.f32.mrf.mxu0
        %v1565 = vadd.f32 0.0, %v1564
        %v1566 = vpop.f32.mrf.mxu0
        %1567 = vmatprep.mubr.bf16.mxu0 0
        %1568 = vmatmul.mubr.bf16.gmra.mxu0 %v1490
        %v1569 = vpop.f32.mrf.mxu0
        %v1570 = vadd.f32 0.0, %v1569
        %v1571 = vpop.f32.mrf.mxu0
        %v1572 = vpop.f32.mrf.mxu0
        %v1573 = vadd.f32 0.0, %v1572
        %v1574 = vpop.f32.mrf.mxu0
        %1575 = vmatprep.mubr.bf16.mxu0 0
        %1576 = vmatmul.mubr.bf16.gmra.mxu0 %v1492
        %v1577 = vpop.f32.mrf.mxu0
        %v1578 = vadd.f32 0.0, %v1577
        %v1579 = vpop.f32.mrf.mxu0
        %v1580 = vpop.f32.mrf.mxu0
        %v1581 = vadd.f32 0.0, %v1580
        %v1582 = vpop.f32.mrf.mxu0
        %1583 = vmatprep.mubr.bf16.mxu0 0
        %1584 = vmatmul.mubr.bf16.gmra.mxu0 %v1494
        %v1585 = vpop.f32.mrf.mxu0
        %v1586 = vadd.f32 0.0, %v1585
        %v1587 = vpop.f32.mrf.mxu0
        %v1588 = vpop.f32.mrf.mxu0
        %v1589 = vadd.f32 0.0, %v1588
        %v1590 = vpop.f32.mrf.mxu0
        %1591 = vmatprep.mubr.bf16.mxu0 0
        %1592 = vmatmul.mubr.bf16.gmra.mxu0 %v1496
        %v1593 = vpop.f32.mrf.mxu0
        %v1594 = vadd.f32 0.0, %v1593
        %v1595 = vpop.f32.mrf.mxu0
        %v1596 = vpop.f32.mrf.mxu0
        %v1597 = vadd.f32 0.0, %v1596
        %v1598 = vpop.f32.mrf.mxu0
        %1599 = vmatprep.mubr.bf16.mxu0 0
        %1600 = vmatmul.mubr.bf16.gmra.mxu0 %v1498
        %v1601 = vpop.f32.mrf.mxu0
        %v1602 = vadd.f32 0.0, %v1601
        %v1603 = vpop.f32.mrf.mxu0
        %v1604 = vpop.f32.mrf.mxu0
        %v1605 = vadd.f32 0.0, %v1604
        %v1606 = vpop.f32.mrf.mxu0
        %1607 = vmatprep.mubr.bf16.mxu0 0
        %1608 = vmatmul.mubr.bf16.gmra.mxu0 %v1500
        %v1609 = vpop.f32.mrf.mxu0
        %v1610 = vadd.f32 0.0, %v1609
        %v1611 = vpop.f32.mrf.mxu0
        %v1612 = vpop.f32.mrf.mxu0
        %v1613 = vadd.f32 0.0, %v1612
        %v1614 = vpop.f32.mrf.mxu0
        %1615 = vmatprep.mubr.bf16.mxu0 0
        %1616 = vmatmul.mubr.bf16.gmra.mxu0 %v1502
        %v1617 = vpop.f32.mrf.mxu0
        %v1618 = vadd.f32 0.0, %v1617
        %v1619 = vpop.f32.mrf.mxu0
        %v1620 = vpop.f32.mrf.mxu0
        %v1621 = vadd.f32 0.0, %v1620
        %v1622 = vpop.f32.mrf.mxu0
        %1623 = vmatprep.mubr.bf16.mxu0 0
        %1624 = vmatmul.mubr.bf16.gmra.mxu0 %v1504
        %v1625 = vpop.f32.mrf.mxu0
        %v1626 = vadd.f32 0.0, %v1625
        %v1627 = vpop.f32.mrf.mxu0
        %v1628 = vpop.f32.mrf.mxu0
        %v1629 = vadd.f32 0.0, %v1628
        %v1630 = vpop.f32.mrf.mxu0
        %1631 = vmatprep.mubr.bf16.mxu0 0
        %1632 = vmatmul.mubr.bf16.gmra.mxu0 %v1506
        %v1633 = vpop.f32.mrf.mxu0
        %v1634 = vadd.f32 0.0, %v1633
        %v1635 = vpop.f32.mrf.mxu0
        %v1636 = vpop.f32.mrf.mxu0
        %v1637 = vadd.f32 0.0, %v1636
        %v1638 = vpop.f32.mrf.mxu0
        %1639 = vmatprep.mubr.bf16.mxu0 0
        %1640 = vmatmul.mubr.bf16.gmra.mxu0 %v1508
        %v1641 = vpop.f32.mrf.mxu0
        %v1642 = vadd.f32 0.0, %v1641
        %v1643 = vpop.f32.mrf.mxu0
        %v1644 = vpop.f32.mrf.mxu0
        %v1645 = vadd.f32 0.0, %v1644
        %v1646 = vpop.f32.mrf.mxu0
        %1647 = vmatprep.mubr.bf16.mxu0 0
        %1648 = vmatmul.mubr.bf16.gmra.mxu0 %v1510
        %v1649 = vpop.f32.mrf.mxu0
        %v1650 = vadd.f32 0.0, %v1649
        %v1651 = vpop.f32.mrf.mxu0
        %v1652 = vpop.f32.mrf.mxu0
        %v1653 = vadd.f32 0.0, %v1652
        %v1654 = vpop.f32.mrf.mxu0
        %1655 = vmatprep.mubr.bf16.mxu0 0
        %1656 = vmatmul.mubr.bf16.gmra.mxu0 %v1512
        %v1657 = vpop.f32.mrf.mxu0
        %v1658 = vadd.f32 0.0, %v1657
        %v1659 = vpop.f32.mrf.mxu0
        %v1660 = vpop.f32.mrf.mxu0
        %v1661 = vadd.f32 0.0, %v1660
        %v1662 = vpop.f32.mrf.mxu0
        %1663 = vmatprep.mubr.bf16.mxu0 0
        %1664 = vmatmul.mubr.bf16.gmra.mxu0 %v1514
        %v1665 = vpop.f32.mrf.mxu0
        %v1666 = vadd.f32 0.0, %v1665
        %v1667 = vpop.f32.mrf.mxu0
        %v1668 = vpop.f32.mrf.mxu0
        %v1669 = vadd.f32 0.0, %v1668
        %v1670 = vpop.f32.mrf.mxu0
        %1671 = vmatprep.mubr.bf16.mxu0 0
        %1672 = vmatmul.mubr.bf16.gmra.mxu0 %v1516
        %v1673 = vpop.f32.mrf.mxu0
        %v1674 = vadd.f32 0.0, %v1673
        %v1675 = vpop.f32.mrf.mxu0
        %v1676 = vpop.f32.mrf.mxu0
        %v1677 = vadd.f32 0.0, %v1676
        %v1678 = vpop.f32.mrf.mxu0
        %1679 = vmatprep.mubr.bf16.mxu0 0
        %1680 = vmatmul.mubr.bf16.gmra.mxu0 %v1518
        %v1681 = vpop.f32.mrf.mxu0
        %v1682 = vadd.f32 0.0, %v1681
        %v1683 = vpop.f32.mrf.mxu0
        %v1684 = vpop.f32.mrf.mxu0
        %v1685 = vadd.f32 0.0, %v1684
        %v1686 = vpop.f32.mrf.mxu0
        %1687 = vdwg.mxu0
        %v1688 = vld [vmem:[%s2] sm:$0x1]
        %v1690 = vlaneseq
        %v1691 = vshrl.u32 %v1690, 7
        %v1692 = vsub.s32 0, %v1691
        %v1693 = vrot.slane %v1688, %v1692
        %v1695 = vmul.f32 %v1562, %v1693
        %v1696 = vmul.f32 %v1565, %v1693
        %v1697 = vmul.f32 %v1570, %v1693
        %v1698 = vmul.f32 %v1573, %v1693
        %v1699 = vmul.f32 %v1578, %v1693
        %v1700 = vmul.f32 %v1581, %v1693
        %v1701 = vmul.f32 %v1586, %v1693
        %v1702 = vmul.f32 %v1589, %v1693
        %v1703 = vmul.f32 %v1594, %v1693
        %v1704 = vmul.f32 %v1597, %v1693
        %v1705 = vmul.f32 %v1602, %v1693
        %v1706 = vmul.f32 %v1605, %v1693
        %v1707 = vmul.f32 %v1610, %v1693
        %v1708 = vmul.f32 %v1613, %v1693
        %v1709 = vmul.f32 %v1618, %v1693
        %v1710 = vmul.f32 %v1621, %v1693
        %v1711 = vmul.f32 %v1626, %v1693
        %v1712 = vmul.f32 %v1629, %v1693
        %v1713 = vmul.f32 %v1634, %v1693
        %v1714 = vmul.f32 %v1637, %v1693
        %v1715 = vmul.f32 %v1642, %v1693
        %v1716 = vmul.f32 %v1645, %v1693
        %v1717 = vmul.f32 %v1650, %v1693
        %v1718 = vmul.f32 %v1653, %v1693
        %v1719 = vmul.f32 %v1658, %v1693
        %v1720 = vmul.f32 %v1661, %v1693
        %v1721 = vmul.f32 %v1666, %v1693
        %v1722 = vmul.f32 %v1669, %v1693
        %v1723 = vmul.f32 %v1674, %v1693
        %v1724 = vmul.f32 %v1677, %v1693
        %v1725 = vmul.f32 %v1682, %v1693
        %v1726 = vmul.f32 %v1685, %v1693
        %v1727 = vld [vmem:[%s3] sm:$0x1]
        %v1729 = vlaneseq
        %v1730 = vshrl.u32 %v1729, 7
        %v1731 = vsub.s32 0, %v1730
        %v1732 = vrot.slane %v1727, %v1731
        %v1734 = vadd.f32 %v1695, %v1732
        %v1735 = vadd.f32 %v1696, %v1732
        %v1736 = vadd.f32 %v1697, %v1732
        %v1737 = vadd.f32 %v1698, %v1732
        %v1738 = vadd.f32 %v1699, %v1732
        %v1739 = vadd.f32 %v1700, %v1732
        %v1740 = vadd.f32 %v1701, %v1732
        %v1741 = vadd.f32 %v1702, %v1732
        %v1742 = vadd.f32 %v1703, %v1732
        %v1743 = vadd.f32 %v1704, %v1732
        %v1744 = vadd.f32 %v1705, %v1732
        %v1745 = vadd.f32 %v1706, %v1732
        %v1746 = vadd.f32 %v1707, %v1732
        %v1747 = vadd.f32 %v1708, %v1732
        %v1748 = vadd.f32 %v1709, %v1732
        %v1749 = vadd.f32 %v1710, %v1732
        %v1750 = vadd.f32 %v1711, %v1732
        %v1751 = vadd.f32 %v1712, %v1732
        %v1752 = vadd.f32 %v1713, %v1732
        %v1753 = vadd.f32 %v1714, %v1732
        %v1754 = vadd.f32 %v1715, %v1732
        %v1755 = vadd.f32 %v1716, %v1732
        %v1756 = vadd.f32 %v1717, %v1732
        %v1757 = vadd.f32 %v1718, %v1732
        %v1758 = vadd.f32 %v1719, %v1732
        %v1759 = vadd.f32 %v1720, %v1732
        %v1760 = vadd.f32 %v1721, %v1732
        %v1761 = vadd.f32 %v1722, %v1732
        %v1762 = vadd.f32 %v1723, %v1732
        %v1763 = vadd.f32 %v1724, %v1732
        %v1764 = vadd.f32 %v1725, %v1732
        %v1765 = vadd.f32 %v1726, %v1732
        %v1766 = vmax.f32 %v1734, 0.0
        %v1767 = vmax.f32 %v1735, 0.0
        %v1768 = vmax.f32 %v1736, 0.0
        %v1769 = vmax.f32 %v1737, 0.0
        %v1770 = vmax.f32 %v1738, 0.0
        %v1771 = vmax.f32 %v1739, 0.0
        %v1772 = vmax.f32 %v1740, 0.0
        %v1773 = vmax.f32 %v1741, 0.0
        %v1774 = vmax.f32 %v1742, 0.0
        %v1775 = vmax.f32 %v1743, 0.0
        %v1776 = vmax.f32 %v1744, 0.0
        %v1777 = vmax.f32 %v1745, 0.0
        %v1778 = vmax.f32 %v1746, 0.0
        %v1779 = vmax.f32 %v1747, 0.0
        %v1780 = vmax.f32 %v1748, 0.0
        %v1781 = vmax.f32 %v1749, 0.0
        %v1782 = vmax.f32 %v1750, 0.0
        %v1783 = vmax.f32 %v1751, 0.0
        %v1784 = vmax.f32 %v1752, 0.0
        %v1785 = vmax.f32 %v1753, 0.0
        %v1786 = vmax.f32 %v1754, 0.0
        %v1787 = vmax.f32 %v1755, 0.0
        %v1788 = vmax.f32 %v1756, 0.0
        %v1789 = vmax.f32 %v1757, 0.0
        %v1790 = vmax.f32 %v1758, 0.0
        %v1791 = vmax.f32 %v1759, 0.0
        %v1792 = vmax.f32 %v1760, 0.0
        %v1793 = vmax.f32 %v1761, 0.0
        %v1794 = vmax.f32 %v1762, 0.0
        %v1795 = vmax.f32 %v1763, 0.0
        %v1796 = vmax.f32 %v1764, 0.0
        %v1797 = vmax.f32 %v1765, 0.0
        %v1798 = vpack.c.bf16 %v1767, %v1766
        %v1799 = vpack.c.bf16 %v1769, %v1768
        %v1800 = vpack.c.bf16 %v1771, %v1770
        %v1801 = vpack.c.bf16 %v1773, %v1772
        %v1802 = vpack.c.bf16 %v1775, %v1774
        %v1803 = vpack.c.bf16 %v1777, %v1776
        %v1804 = vpack.c.bf16 %v1779, %v1778
        %v1805 = vpack.c.bf16 %v1781, %v1780
        %v1806 = vpack.c.bf16 %v1783, %v1782
        %v1807 = vpack.c.bf16 %v1785, %v1784
        %v1808 = vpack.c.bf16 %v1787, %v1786
        %v1809 = vpack.c.bf16 %v1789, %v1788
        %v1810 = vpack.c.bf16 %v1791, %v1790
        %v1811 = vpack.c.bf16 %v1793, %v1792
        %v1812 = vpack.c.bf16 %v1795, %v1794
        %v1813 = vpack.c.bf16 %v1797, %v1796
        %v1815 = vshrl.u32 %v1798, 16
        %v1817 = vrot.slane %v1815, 7
        %v1818 = vshll.u32 %v1798, 16
        %v1820 = vor.u32 %v1817, %v1818
        %v1822 = vshrl.u32 %v1799, 16
        %v1824 = vrot.slane %v1822, 7
        %v1825 = vshll.u32 %v1799, 16
        %v1827 = vor.u32 %v1824, %v1825
        %v1829 = vshrl.u32 %v1800, 16
        %v1831 = vrot.slane %v1829, 7
        %v1832 = vshll.u32 %v1800, 16
        %v1834 = vor.u32 %v1831, %v1832
        %v1836 = vshrl.u32 %v1801, 16
        %v1838 = vrot.slane %v1836, 7
        %v1839 = vshll.u32 %v1801, 16
        %v1841 = vor.u32 %v1838, %v1839
        %v1843 = vshrl.u32 %v1802, 16
        %v1845 = vrot.slane %v1843, 7
        %v1846 = vshll.u32 %v1802, 16
        %v1848 = vor.u32 %v1845, %v1846
        %v1850 = vshrl.u32 %v1803, 16
        %v1852 = vrot.slane %v1850, 7
        %v1853 = vshll.u32 %v1803, 16
        %v1855 = vor.u32 %v1852, %v1853
        %v1857 = vshrl.u32 %v1804, 16
        %v1859 = vrot.slane %v1857, 7
        %v1860 = vshll.u32 %v1804, 16
        %v1862 = vor.u32 %v1859, %v1860
        %v1864 = vshrl.u32 %v1805, 16
        %v1866 = vrot.slane %v1864, 7
        %v1867 = vshll.u32 %v1805, 16
        %v1869 = vor.u32 %v1866, %v1867
        %v1871 = vshrl.u32 %v1806, 16
        %v1873 = vrot.slane %v1871, 7
        %v1874 = vshll.u32 %v1806, 16
        %v1876 = vor.u32 %v1873, %v1874
        %v1878 = vshrl.u32 %v1807, 16
        %v1880 = vrot.slane %v1878, 7
        %v1881 = vshll.u32 %v1807, 16
        %v1883 = vor.u32 %v1880, %v1881
        %v1885 = vshrl.u32 %v1808, 16
        %v1887 = vrot.slane %v1885, 7
        %v1888 = vshll.u32 %v1808, 16
        %v1890 = vor.u32 %v1887, %v1888
        %v1892 = vshrl.u32 %v1809, 16
        %v1894 = vrot.slane %v1892, 7
        %v1895 = vshll.u32 %v1809, 16
        %v1897 = vor.u32 %v1894, %v1895
        %v1899 = vshrl.u32 %v1810, 16
        %v1901 = vrot.slane %v1899, 7
        %v1902 = vshll.u32 %v1810, 16
        %v1904 = vor.u32 %v1901, %v1902
        %v1906 = vshrl.u32 %v1811, 16
        %v1908 = vrot.slane %v1906, 7
        %v1909 = vshll.u32 %v1811, 16
        %v1911 = vor.u32 %v1908, %v1909
        %v1913 = vshrl.u32 %v1812, 16
        %v1915 = vrot.slane %v1913, 7
        %v1916 = vshll.u32 %v1812, 16
        %v1918 = vor.u32 %v1915, %v1916
        %v1920 = vshrl.u32 %v1813, 16
        %v1922 = vrot.slane %v1920, 7
        %v1923 = vshll.u32 %v1813, 16
        %v1925 = vor.u32 %v1922, %v1923
        %v1958 = vsel %vm626, 0, %v1820
        %v1959 = vsel %vm626, 0, %v1827
        %v1960 = vsel %vm626, 0, %v1834
        %v1961 = vsel %vm626, 0, %v1841
        %v1962 = vsel %vm626, 0, %v1848
        %v1963 = vsel %vm626, 0, %v1855
        %v1964 = vsel %vm626, 0, %v1862
        %v1965 = vsel %vm626, 0, %v1869
        %v1966 = vsel %vm626, 0, %v1876
        %v1967 = vsel %vm626, 0, %v1883
        %v1968 = vsel %vm626, 0, %v1890
        %v1969 = vsel %vm626, 0, %v1897
        %v1970 = vsel %vm626, 0, %v1904
        %v1971 = vsel %vm626, 0, %v1911
        %v1972 = vsel %vm626, 0, %v1918
        %v1973 = vsel %vm626, 0, %v1925
        %v1974 = vsel %vm626, %v1817, 0
        %v1975 = vsel %vm626, %v1824, 0
        %v1976 = vsel %vm626, %v1831, 0
        %v1977 = vsel %vm626, %v1838, 0
        %v1978 = vsel %vm626, %v1845, 0
        %v1979 = vsel %vm626, %v1852, 0
        %v1980 = vsel %vm626, %v1859, 0
        %v1981 = vsel %vm626, %v1866, 0
        %v1982 = vsel %vm626, %v1873, 0
        %v1983 = vsel %vm626, %v1880, 0
        %v1984 = vsel %vm626, %v1887, 0
        %v1985 = vsel %vm626, %v1894, 0
        %v1986 = vsel %vm626, %v1901, 0
        %v1987 = vsel %vm626, %v1908, 0
        %v1988 = vsel %vm626, %v1915, 0
        %v1989 = vsel %vm626, %v1922, 0
        %v1991 = vshrl.u32 %v1958, 16
        %v1993 = vshll.u32 %v1958, 16
        %v1995 = vrot.slane %v1993, 1
        %v1996 = vor.u32 %v1991, %v1995
        %v1998 = vshll.u32 %v1974, 16
        %v2000 = vrot.slane %v1998, 1
        %v2001 = vsel %vm661, %v1996, %v2000
        %v2003 = vshrl.u32 %v1959, 16
        %v2005 = vshll.u32 %v1959, 16
        %v2007 = vrot.slane %v2005, 1
        %v2008 = vor.u32 %v2003, %v2007
        %v2010 = vshll.u32 %v1975, 16
        %v2012 = vrot.slane %v2010, 1
        %v2013 = vsel %vm661, %v2008, %v2012
        %v2015 = vshrl.u32 %v1960, 16
        %v2017 = vshll.u32 %v1960, 16
        %v2019 = vrot.slane %v2017, 1
        %v2020 = vor.u32 %v2015, %v2019
        %v2022 = vshll.u32 %v1976, 16
        %v2024 = vrot.slane %v2022, 1
        %v2025 = vsel %vm661, %v2020, %v2024
        %v2027 = vshrl.u32 %v1961, 16
        %v2029 = vshll.u32 %v1961, 16
        %v2031 = vrot.slane %v2029, 1
        %v2032 = vor.u32 %v2027, %v2031
        %v2034 = vshll.u32 %v1977, 16
        %v2036 = vrot.slane %v2034, 1
        %v2037 = vsel %vm661, %v2032, %v2036
        %v2039 = vshrl.u32 %v1962, 16
        %v2041 = vshll.u32 %v1962, 16
        %v2043 = vrot.slane %v2041, 1
        %v2044 = vor.u32 %v2039, %v2043
        %v2046 = vshll.u32 %v1978, 16
        %v2048 = vrot.slane %v2046, 1
        %v2049 = vsel %vm661, %v2044, %v2048
        %v2051 = vshrl.u32 %v1963, 16
        %v2053 = vshll.u32 %v1963, 16
        %v2055 = vrot.slane %v2053, 1
        %v2056 = vor.u32 %v2051, %v2055
        %v2058 = vshll.u32 %v1979, 16
        %v2060 = vrot.slane %v2058, 1
        %v2061 = vsel %vm661, %v2056, %v2060
        %v2063 = vshrl.u32 %v1964, 16
        %v2065 = vshll.u32 %v1964, 16
        %v2067 = vrot.slane %v2065, 1
        %v2068 = vor.u32 %v2063, %v2067
        %v2070 = vshll.u32 %v1980, 16
        %v2072 = vrot.slane %v2070, 1
        %v2073 = vsel %vm661, %v2068, %v2072
        %v2075 = vshrl.u32 %v1965, 16
        %v2077 = vshll.u32 %v1965, 16
        %v2079 = vrot.slane %v2077, 1
        %v2080 = vor.u32 %v2075, %v2079
        %v2082 = vshll.u32 %v1981, 16
        %v2084 = vrot.slane %v2082, 1
        %v2085 = vsel %vm661, %v2080, %v2084
        %v2087 = vshrl.u32 %v1966, 16
        %v2089 = vshll.u32 %v1966, 16
        %v2091 = vrot.slane %v2089, 1
        %v2092 = vor.u32 %v2087, %v2091
        %v2094 = vshll.u32 %v1982, 16
        %v2096 = vrot.slane %v2094, 1
        %v2097 = vsel %vm661, %v2092, %v2096
        %v2099 = vshrl.u32 %v1967, 16
        %v2101 = vshll.u32 %v1967, 16
        %v2103 = vrot.slane %v2101, 1
        %v2104 = vor.u32 %v2099, %v2103
        %v2106 = vshll.u32 %v1983, 16
        %v2108 = vrot.slane %v2106, 1
        %v2109 = vsel %vm661, %v2104, %v2108
        %v2111 = vshrl.u32 %v1968, 16
        %v2113 = vshll.u32 %v1968, 16
        %v2115 = vrot.slane %v2113, 1
        %v2116 = vor.u32 %v2111, %v2115
        %v2118 = vshll.u32 %v1984, 16
        %v2120 = vrot.slane %v2118, 1
        %v2121 = vsel %vm661, %v2116, %v2120
        %v2123 = vshrl.u32 %v1969, 16
        %v2125 = vshll.u32 %v1969, 16
        %v2127 = vrot.slane %v2125, 1
        %v2128 = vor.u32 %v2123, %v2127
        %v2130 = vshll.u32 %v1985, 16
        %v2132 = vrot.slane %v2130, 1
        %v2133 = vsel %vm661, %v2128, %v2132
        %v2135 = vshrl.u32 %v1970, 16
        %v2137 = vshll.u32 %v1970, 16
        %v2139 = vrot.slane %v2137, 1
        %v2140 = vor.u32 %v2135, %v2139
        %v2142 = vshll.u32 %v1986, 16
        %v2144 = vrot.slane %v2142, 1
        %v2145 = vsel %vm661, %v2140, %v2144
        %v2147 = vshrl.u32 %v1971, 16
        %v2149 = vshll.u32 %v1971, 16
        %v2151 = vrot.slane %v2149, 1
        %v2152 = vor.u32 %v2147, %v2151
        %v2154 = vshll.u32 %v1987, 16
        %v2156 = vrot.slane %v2154, 1
        %v2157 = vsel %vm661, %v2152, %v2156
        %v2159 = vshrl.u32 %v1972, 16
        %v2161 = vshll.u32 %v1972, 16
        %v2163 = vrot.slane %v2161, 1
        %v2164 = vor.u32 %v2159, %v2163
        %v2166 = vshll.u32 %v1988, 16
        %v2168 = vrot.slane %v2166, 1
        %v2169 = vsel %vm661, %v2164, %v2168
        %2170 = vrot.lane.b32.xlu0 %v673, 64
        %v2171 = vpop.permute.xlu0 %2170
        %2172 = vrot.lane.b32.xlu0 %v2001, 64
        %v2173 = vpop.permute.xlu0 %2172
        %2174 = vrot.lane.b32.xlu0 %v2013, 64
        %v2175 = vpop.permute.xlu0 %2174
        %2176 = vrot.lane.b32.xlu0 %v2025, 64
        %v2177 = vpop.permute.xlu0 %2176
        %2178 = vrot.lane.b32.xlu0 %v2037, 64
        %v2179 = vpop.permute.xlu0 %2178
        %2180 = vrot.lane.b32.xlu0 %v2049, 64
        %v2181 = vpop.permute.xlu0 %2180
        %2182 = vrot.lane.b32.xlu0 %v2061, 64
        %v2183 = vpop.permute.xlu0 %2182
        %2184 = vrot.lane.b32.xlu0 %v2073, 64
        %v2185 = vpop.permute.xlu0 %2184
        %2186 = vrot.lane.b32.xlu0 %v2085, 64
        %v2187 = vpop.permute.xlu0 %2186
        %2188 = vrot.lane.b32.xlu0 %v2097, 64
        %v2189 = vpop.permute.xlu0 %2188
        %2190 = vrot.lane.b32.xlu0 %v2109, 64
        %v2191 = vpop.permute.xlu0 %2190
        %2192 = vrot.lane.b32.xlu0 %v2121, 64
        %v2193 = vpop.permute.xlu0 %2192
        %2194 = vrot.lane.b32.xlu0 %v2133, 64
        %v2195 = vpop.permute.xlu0 %2194
        %2196 = vrot.lane.b32.xlu0 %v2145, 64
        %v2197 = vpop.permute.xlu0 %2196
        %2198 = vrot.lane.b32.xlu0 %v2157, 64
        %v2199 = vpop.permute.xlu0 %2198
        %2200 = vrot.lane.b32.xlu0 %v2169, 64
        %v2201 = vpop.permute.xlu0 %2200
        %v2232 = vrot.slane %v1958, 1
        %v2233 = vrot.slane %v1974, 1
        %v2234 = vsel %vm918, %v2232, %v2233
        %v2235 = vrot.slane %v1959, 1
        %v2236 = vrot.slane %v1975, 1
        %v2237 = vsel %vm918, %v2235, %v2236
        %v2238 = vrot.slane %v1960, 1
        %v2239 = vrot.slane %v1976, 1
        %v2240 = vsel %vm918, %v2238, %v2239
        %v2241 = vrot.slane %v1961, 1
        %v2242 = vrot.slane %v1977, 1
        %v2243 = vsel %vm918, %v2241, %v2242
        %v2244 = vrot.slane %v1962, 1
        %v2245 = vrot.slane %v1978, 1
        %v2246 = vsel %vm918, %v2244, %v2245
        %v2247 = vrot.slane %v1963, 1
        %v2248 = vrot.slane %v1979, 1
        %v2249 = vsel %vm918, %v2247, %v2248
        %v2250 = vrot.slane %v1964, 1
        %v2251 = vrot.slane %v1980, 1
        %v2252 = vsel %vm918, %v2250, %v2251
        %v2253 = vrot.slane %v1965, 1
        %v2254 = vrot.slane %v1981, 1
        %v2255 = vsel %vm918, %v2253, %v2254
        %v2256 = vrot.slane %v1966, 1
        %v2257 = vrot.slane %v1982, 1
        %v2258 = vsel %vm918, %v2256, %v2257
        %v2259 = vrot.slane %v1967, 1
        %v2260 = vrot.slane %v1983, 1
        %v2261 = vsel %vm918, %v2259, %v2260
        %v2262 = vrot.slane %v1968, 1
        %v2263 = vrot.slane %v1984, 1
        %v2264 = vsel %vm918, %v2262, %v2263
        %v2265 = vrot.slane %v1969, 1
        %v2266 = vrot.slane %v1985, 1
        %v2267 = vsel %vm918, %v2265, %v2266
        %v2268 = vrot.slane %v1970, 1
        %v2269 = vrot.slane %v1986, 1
        %v2270 = vsel %vm918, %v2268, %v2269
        %v2271 = vrot.slane %v1971, 1
        %v2272 = vrot.slane %v1987, 1
        %v2273 = vsel %vm918, %v2271, %v2272
        %v2274 = vrot.slane %v1972, 1
        %v2275 = vrot.slane %v1988, 1
        %v2276 = vsel %vm918, %v2274, %v2275
        %vm2277 = vcmask 523264
        %v2279 = vsel %vm2277, %v627, %v2171
        %v2282 = vsel %vm2277, %v1958, %v2173
        %v2285 = vsel %vm2277, %v1959, %v2175
        %v2288 = vsel %vm2277, %v1960, %v2177
        %v2291 = vsel %vm2277, %v1961, %v2179
        %v2294 = vsel %vm2277, %v1962, %v2181
        %v2297 = vsel %vm2277, %v1963, %v2183
        %v2300 = vsel %vm2277, %v1964, %v2185
        %v2303 = vsel %vm2277, %v1965, %v2187
        %v2306 = vsel %vm2277, %v1966, %v2189
        %v2309 = vsel %vm2277, %v1967, %v2191
        %v2312 = vsel %vm2277, %v1968, %v2193
        %v2315 = vsel %vm2277, %v1969, %v2195
        %v2318 = vsel %vm2277, %v1970, %v2197
        %v2321 = vsel %vm2277, %v1971, %v2199
        %v2324 = vsel %vm2277, %v1972, %v2201
        %v2326 = vld [vmem:[%s4] sm:$0xf]
        %v2327 = vld [vmem:[%s4 + $0x4] sm:$0xf]
        %v2328 = vld [vmem:[%s4 + $0x8] sm:$0xf]
        %v2329 = vld [vmem:[%s4 + $0xc] sm:$0xf]
        %v2330 = vld [vmem:[%s4 + $0x10] sm:$0xf]
        %v2331 = vld [vmem:[%s4 + $0x14] sm:$0xf]
        %v2332 = vld [vmem:[%s4 + $0x18] sm:$0xf]
        %v2333 = vld [vmem:[%s4 + $0x1c] sm:$0xf]
        %v2334 = vld [vmem:[%s4 + $0x20] sm:$0xf]
        %v2335 = vld [vmem:[%s4 + $0x24] sm:$0xf]
        %v2336 = vld [vmem:[%s4 + $0x28] sm:$0xf]
        %v2337 = vld [vmem:[%s4 + $0x2c] sm:$0xf]
        %v2338 = vld [vmem:[%s4 + $0x30] sm:$0xf]
        %v2339 = vld [vmem:[%s4 + $0x34] sm:$0xf]
        %v2340 = vld [vmem:[%s4 + $0x38] sm:$0xf]
        %v2341 = vld [vmem:[%s4 + $0x3c] sm:$0xf]
        %v2342 = vld [vmem:[%s4 + $0x40] sm:$0xf]
        %v2343 = vld [vmem:[%s4 + $0x44] sm:$0xf]
        %v2344 = vld [vmem:[%s4 + $0x48] sm:$0xf]
        %v2345 = vld [vmem:[%s4 + $0x4c] sm:$0xf]
        %v2346 = vld [vmem:[%s4 + $0x50] sm:$0xf]
        %v2347 = vld [vmem:[%s4 + $0x54] sm:$0xf]
        %v2348 = vld [vmem:[%s4 + $0x58] sm:$0xf]
        %v2349 = vld [vmem:[%s4 + $0x5c] sm:$0xf]
        %v2351 = vshrl.u32 %v1973, 16
        %v2353 = vshll.u32 %v1973, 16
        %v2355 = vrot.slane %v2353, 1
        %v2356 = vor.u32 %v2351, %v2355
        %v2358 = vshll.u32 %v1989, 16
        %v2360 = vrot.slane %v2358, 1
        %v2361 = vsel %vm661, %v2356, %v2360
        %2362 = vrot.lane.b32.xlu0 %v2361, 64
        %v2363 = vpop.permute.xlu0 %2362
        %v2366 = vrot.slane %v1973, 1
        %v2367 = vrot.slane %v1989, 1
        %v2368 = vsel %vm918, %v2366, %v2367
        %v2370 = vsel %vm2277, %v1973, %v2363
        %s2372 = scalar_lea.vmem %s4, 96
        %v2373 = vld [vmem:[%s2372] sm:$0xf]
        %v2374 = vld [vmem:[%s2372 + $0x4] sm:$0xf]
        %v2375 = vld [vmem:[%s2372 + $0x8] sm:$0xf]
        %v2376 = vld [vmem:[%s2372 + $0xc] sm:$0xf]
        %v2377 = vld [vmem:[%s2372 + $0x10] sm:$0xf]
        %v2378 = vld [vmem:[%s2372 + $0x14] sm:$0xf]
        %v2379 = vld [vmem:[%s2372 + $0x18] sm:$0xf]
        %v2380 = vld [vmem:[%s2372 + $0x1c] sm:$0xf]
        %v2381 = vld [vmem:[%s2372 + $0x20] sm:$0xf]
        %v2382 = vld [vmem:[%s2372 + $0x24] sm:$0xf]
        %v2383 = vld [vmem:[%s2372 + $0x28] sm:$0xf]
        %v2384 = vld [vmem:[%s2372 + $0x2c] sm:$0xf]
        %v2385 = vld [vmem:[%s2372 + $0x30] sm:$0xf]
        %v2386 = vld [vmem:[%s2372 + $0x34] sm:$0xf]
        %v2387 = vld [vmem:[%s2372 + $0x38] sm:$0xf]
        %v2388 = vld [vmem:[%s2372 + $0x3c] sm:$0xf]
        %v2389 = vld [vmem:[%s2372 + $0x40] sm:$0xf]
        %v2390 = vld [vmem:[%s2372 + $0x44] sm:$0xf]
        %v2391 = vld [vmem:[%s2372 + $0x48] sm:$0xf]
        %v2392 = vld [vmem:[%s2372 + $0x4c] sm:$0xf]
        %v2393 = vld [vmem:[%s2372 + $0x50] sm:$0xf]
        %v2394 = vld [vmem:[%s2372 + $0x54] sm:$0xf]
        %v2395 = vld [vmem:[%s2372 + $0x58] sm:$0xf]
        %v2396 = vld [vmem:[%s2372 + $0x5c] sm:$0xf]
        %v2421 = vunpack.c.l.b16 %v2373
        %v2422 = vunpack.c.l.b16 %v2374
        %v2423 = vunpack.c.l.b16 %v2375
        %v2424 = vunpack.c.l.b16 %v2376
        %v2425 = vunpack.c.l.b16 %v2377
        %v2426 = vunpack.c.l.b16 %v2378
        %v2427 = vunpack.c.l.b16 %v2379
        %v2428 = vunpack.c.l.b16 %v2380
        %v2429 = vunpack.c.l.b16 %v2381
        %v2430 = vunpack.c.l.b16 %v2382
        %v2431 = vunpack.c.l.b16 %v2383
        %v2432 = vunpack.c.l.b16 %v2384
        %v2433 = vunpack.c.l.b16 %v2385
        %v2434 = vunpack.c.l.b16 %v2386
        %v2435 = vunpack.c.l.b16 %v2387
        %v2436 = vunpack.c.l.b16 %v2388
        %v2437 = vunpack.c.l.b16 %v2389
        %v2438 = vunpack.c.l.b16 %v2390
        %v2439 = vunpack.c.l.b16 %v2391
        %v2440 = vunpack.c.l.b16 %v2392
        %v2441 = vunpack.c.l.b16 %v2393
        %v2442 = vunpack.c.l.b16 %v2394
        %v2443 = vunpack.c.l.b16 %v2395
        %v2444 = vunpack.c.l.b16 %v2396
        %v2445 = vpack.c.b16 %v2422, %v2421
        %v2446 = vpack.c.b16 %v2424, %v2423
        %v2447 = vpack.c.b16 %v2426, %v2425
        %v2448 = vpack.c.b16 %v2428, %v2427
        %v2449 = vpack.c.b16 %v2430, %v2429
        %v2450 = vpack.c.b16 %v2432, %v2431
        %v2451 = vpack.c.b16 %v2434, %v2433
        %v2452 = vpack.c.b16 %v2436, %v2435
        %v2453 = vpack.c.b16 %v2438, %v2437
        %v2454 = vpack.c.b16 %v2440, %v2439
        %v2455 = vpack.c.b16 %v2442, %v2441
        %v2456 = vpack.c.b16 %v2444, %v2443
        %v2470 = vsel %vm2277, %v2234, 0
        %v2473 = vsel %vm2277, %v2237, 0
        %v2476 = vsel %vm2277, %v2240, 0
        %v2479 = vsel %vm2277, %v2243, 0
        %v2482 = vsel %vm2277, %v2246, 0
        %v2485 = vsel %vm2277, %v2249, 0
        %v2488 = vsel %vm2277, %v2252, 0
        %v2491 = vsel %vm2277, %v2255, 0
        %v2494 = vsel %vm2277, %v2258, 0
        %v2497 = vsel %vm2277, %v2261, 0
        %v2500 = vsel %vm2277, %v2264, 0
        %v2503 = vsel %vm2277, %v2267, 0
        %v2506 = vsel %vm2277, %v2270, 0
        %v2509 = vsel %vm2277, %v2273, 0
        %v2512 = vsel %vm2277, %v2276, 0
        %v2515 = vsel %vm2277, %v2368, 0
        %2517 = vmatprep.subr.bf16.mxu0 0
        %2518 = vmatpush1.bf16.msra.mxu0 %v2452
        %2519 = vmatprep.subr.bf16.mxu0 0
        %2520 = vmatpush1.bf16.msra.mxu0 %v2451
        %2521 = vmatprep.subr.bf16.mxu0 0
        %2522 = vmatpush1.bf16.msra.mxu0 %v2450
        %2523 = vmatprep.subr.bf16.mxu0 0
        %2524 = vmatpush1.bf16.msra.mxu0 %v2449
        %2525 = vmatprep.subr.bf16.mxu0 0
        %2526 = vmatpush1.bf16.msra.mxu0 %v2448
        %2527 = vmatprep.subr.bf16.mxu0 0
        %2528 = vmatpush1.bf16.msra.mxu0 %v2447
        %2529 = vmatprep.subr.bf16.mxu0 0
        %2530 = vmatpush1.bf16.msra.mxu0 %v2446
        %2531 = vmatprep.subr.bf16.mxu0 0
        %2532 = vmatpush1.bf16.msra.mxu0 %v2445
        %2533 = vmatprep.subr.bf16.mxu0 0
        %2534 = vmatpush2.bf16.msra.mxu0 0
        %2535 = vmatprep.subr.bf16.mxu0 0
        %2536 = vmatpush2.bf16.msra.mxu0 0
        %2537 = vmatprep.subr.bf16.mxu0 0
        %2538 = vmatpush2.bf16.msra.mxu0 0
        %2539 = vmatprep.subr.bf16.mxu0 0
        %2540 = vmatpush2.bf16.msra.mxu0 0
        %2541 = vmatprep.subr.bf16.mxu0 0
        %2542 = vmatpush2.bf16.msra.mxu0 %v2456
        %2543 = vmatprep.subr.bf16.mxu0 0
        %2544 = vmatpush2.bf16.msra.mxu0 %v2455
        %2545 = vmatprep.subr.bf16.mxu0 0
        %2546 = vmatpush2.bf16.msra.mxu0 %v2454
        %2547 = vmatprep.subr.bf16.mxu0 0
        %2548 = vmatpush2.bf16.msra.mxu0 %v2453
        %2549 = vmatprep.mubr.bf16.mxu0 %v2470
        %2550 = vmatmul.mubr.bf16.gmra.mxu0 %v2282
        %v2551 = vpop.f32.mrf.mxu0
        %v2552 = vadd.f32 0.0, %v2551
        %v2553 = vpop.f32.mrf.mxu0
        %v2554 = vpop.f32.mrf.mxu0
        %v2555 = vadd.f32 0.0, %v2554
        %v2556 = vpop.f32.mrf.mxu0
        %2557 = vmatprep.mubr.bf16.mxu0 %v2473
        %2558 = vmatmul.mubr.bf16.gmra.mxu0 %v2285
        %v2559 = vpop.f32.mrf.mxu0
        %v2560 = vadd.f32 0.0, %v2559
        %v2561 = vpop.f32.mrf.mxu0
        %v2562 = vpop.f32.mrf.mxu0
        %v2563 = vadd.f32 0.0, %v2562
        %v2564 = vpop.f32.mrf.mxu0
        %2565 = vmatprep.mubr.bf16.mxu0 %v2476
        %2566 = vmatmul.mubr.bf16.gmra.mxu0 %v2288
        %v2567 = vpop.f32.mrf.mxu0
        %v2568 = vadd.f32 0.0, %v2567
        %v2569 = vpop.f32.mrf.mxu0
        %v2570 = vpop.f32.mrf.mxu0
        %v2571 = vadd.f32 0.0, %v2570
        %v2572 = vpop.f32.mrf.mxu0
        %2573 = vmatprep.mubr.bf16.mxu0 %v2479
        %2574 = vmatmul.mubr.bf16.gmra.mxu0 %v2291
        %v2575 = vpop.f32.mrf.mxu0
        %v2576 = vadd.f32 0.0, %v2575
        %v2577 = vpop.f32.mrf.mxu0
        %v2578 = vpop.f32.mrf.mxu0
        %v2579 = vadd.f32 0.0, %v2578
        %v2580 = vpop.f32.mrf.mxu0
        %2581 = vmatprep.mubr.bf16.mxu0 %v2482
        %2582 = vmatmul.mubr.bf16.gmra.mxu0 %v2294
        %v2583 = vpop.f32.mrf.mxu0
        %v2584 = vadd.f32 0.0, %v2583
        %v2585 = vpop.f32.mrf.mxu0
        %v2586 = vpop.f32.mrf.mxu0
        %v2587 = vadd.f32 0.0, %v2586
        %v2588 = vpop.f32.mrf.mxu0
        %2589 = vmatprep.mubr.bf16.mxu0 %v2485
        %2590 = vmatmul.mubr.bf16.gmra.mxu0 %v2297
        %v2591 = vpop.f32.mrf.mxu0
        %v2592 = vadd.f32 0.0, %v2591
        %v2593 = vpop.f32.mrf.mxu0
        %v2594 = vpop.f32.mrf.mxu0
        %v2595 = vadd.f32 0.0, %v2594
        %v2596 = vpop.f32.mrf.mxu0
        %2597 = vmatprep.mubr.bf16.mxu0 %v2488
        %2598 = vmatmul.mubr.bf16.gmra.mxu0 %v2300
        %v2599 = vpop.f32.mrf.mxu0
        %v2600 = vadd.f32 0.0, %v2599
        %v2601 = vpop.f32.mrf.mxu0
        %v2602 = vpop.f32.mrf.mxu0
        %v2603 = vadd.f32 0.0, %v2602
        %v2604 = vpop.f32.mrf.mxu0
        %2605 = vmatprep.mubr.bf16.mxu0 %v2491
        %2606 = vmatmul.mubr.bf16.gmra.mxu0 %v2303
        %v2607 = vpop.f32.mrf.mxu0
        %v2608 = vadd.f32 0.0, %v2607
        %v2609 = vpop.f32.mrf.mxu0
        %v2610 = vpop.f32.mrf.mxu0
        %v2611 = vadd.f32 0.0, %v2610
        %v2612 = vpop.f32.mrf.mxu0
        %2613 = vmatprep.mubr.bf16.mxu0 %v2494
        %2614 = vmatmul.mubr.bf16.gmra.mxu0 %v2306
        %v2615 = vpop.f32.mrf.mxu0
        %v2616 = vadd.f32 0.0, %v2615
        %v2617 = vpop.f32.mrf.mxu0
        %v2618 = vpop.f32.mrf.mxu0
        %v2619 = vadd.f32 0.0, %v2618
        %v2620 = vpop.f32.mrf.mxu0
        %2621 = vmatprep.mubr.bf16.mxu0 %v2497
        %2622 = vmatmul.mubr.bf16.gmra.mxu0 %v2309
        %v2623 = vpop.f32.mrf.mxu0
        %v2624 = vadd.f32 0.0, %v2623
        %v2625 = vpop.f32.mrf.mxu0
        %v2626 = vpop.f32.mrf.mxu0
        %v2627 = vadd.f32 0.0, %v2626
        %v2628 = vpop.f32.mrf.mxu0
        %2629 = vmatprep.mubr.bf16.mxu0 %v2500
        %2630 = vmatmul.mubr.bf16.gmra.mxu0 %v2312
        %v2631 = vpop.f32.mrf.mxu0
        %v2632 = vadd.f32 0.0, %v2631
        %v2633 = vpop.f32.mrf.mxu0
        %v2634 = vpop.f32.mrf.mxu0
        %v2635 = vadd.f32 0.0, %v2634
        %v2636 = vpop.f32.mrf.mxu0
        %2637 = vmatprep.mubr.bf16.mxu0 %v2503
        %2638 = vmatmul.mubr.bf16.gmra.mxu0 %v2315
        %v2639 = vpop.f32.mrf.mxu0
        %v2640 = vadd.f32 0.0, %v2639
        %v2641 = vpop.f32.mrf.mxu0
        %v2642 = vpop.f32.mrf.mxu0
        %v2643 = vadd.f32 0.0, %v2642
        %v2644 = vpop.f32.mrf.mxu0
        %2645 = vmatprep.mubr.bf16.mxu0 %v2506
        %2646 = vmatmul.mubr.bf16.gmra.mxu0 %v2318
        %v2647 = vpop.f32.mrf.mxu0
        %v2648 = vadd.f32 0.0, %v2647
        %v2649 = vpop.f32.mrf.mxu0
        %v2650 = vpop.f32.mrf.mxu0
        %v2651 = vadd.f32 0.0, %v2650
        %v2652 = vpop.f32.mrf.mxu0
        %2653 = vmatprep.mubr.bf16.mxu0 %v2509
        %2654 = vmatmul.mubr.bf16.gmra.mxu0 %v2321
        %v2655 = vpop.f32.mrf.mxu0
        %v2656 = vadd.f32 0.0, %v2655
        %v2657 = vpop.f32.mrf.mxu0
        %v2658 = vpop.f32.mrf.mxu0
        %v2659 = vadd.f32 0.0, %v2658
        %v2660 = vpop.f32.mrf.mxu0
        %2661 = vmatprep.mubr.bf16.mxu0 %v2512
        %2662 = vmatmul.mubr.bf16.gmra.mxu0 %v2324
        %v2663 = vpop.f32.mrf.mxu0
        %v2664 = vadd.f32 0.0, %v2663
        %v2665 = vpop.f32.mrf.mxu0
        %v2666 = vpop.f32.mrf.mxu0
        %v2667 = vadd.f32 0.0, %v2666
        %v2668 = vpop.f32.mrf.mxu0
        %2669 = vmatprep.mubr.bf16.mxu0 %v2515
        %2670 = vmatmul.mubr.bf16.gmra.mxu0 %v2370
        %v2671 = vpop.f32.mrf.mxu0
        %v2672 = vadd.f32 0.0, %v2671
        %v2673 = vpop.f32.mrf.mxu0
        %v2674 = vpop.f32.mrf.mxu0
        %v2675 = vadd.f32 0.0, %v2674
        %v2676 = vpop.f32.mrf.mxu0
        %2677 = vdwg.mxu0
        %v2702 = vunpack.c.l.b16 %v2326
        %v2703 = vunpack.c.l.b16 %v2327
        %v2704 = vunpack.c.l.b16 %v2328
        %v2705 = vunpack.c.l.b16 %v2329
        %v2706 = vunpack.c.l.b16 %v2330
        %v2707 = vunpack.c.l.b16 %v2331
        %v2708 = vunpack.c.l.b16 %v2332
        %v2709 = vunpack.c.l.b16 %v2333
        %v2710 = vunpack.c.l.b16 %v2334
        %v2711 = vunpack.c.l.b16 %v2335
        %v2712 = vunpack.c.l.b16 %v2336
        %v2713 = vunpack.c.l.b16 %v2337
        %v2714 = vunpack.c.l.b16 %v2338
        %v2715 = vunpack.c.l.b16 %v2339
        %v2716 = vunpack.c.l.b16 %v2340
        %v2717 = vunpack.c.l.b16 %v2341
        %v2718 = vunpack.c.l.b16 %v2342
        %v2719 = vunpack.c.l.b16 %v2343
        %v2720 = vunpack.c.l.b16 %v2344
        %v2721 = vunpack.c.l.b16 %v2345
        %v2722 = vunpack.c.l.b16 %v2346
        %v2723 = vunpack.c.l.b16 %v2347
        %v2724 = vunpack.c.l.b16 %v2348
        %v2725 = vunpack.c.l.b16 %v2349
        %v2726 = vpack.c.b16 %v2703, %v2702
        %v2727 = vpack.c.b16 %v2705, %v2704
        %v2728 = vpack.c.b16 %v2707, %v2706
        %v2729 = vpack.c.b16 %v2709, %v2708
        %v2730 = vpack.c.b16 %v2711, %v2710
        %v2731 = vpack.c.b16 %v2713, %v2712
        %v2732 = vpack.c.b16 %v2715, %v2714
        %v2733 = vpack.c.b16 %v2717, %v2716
        %v2734 = vpack.c.b16 %v2719, %v2718
        %v2735 = vpack.c.b16 %v2721, %v2720
        %v2736 = vpack.c.b16 %v2723, %v2722
        %v2737 = vpack.c.b16 %v2725, %v2724
        %v2751 = vsel %vm2277, %v921, 0
        %2753 = vmatprep.subr.bf16.mxu0 0
        %2754 = vmatpush1.bf16.msra.mxu0 %v2733
        %2755 = vmatprep.subr.bf16.mxu0 0
        %2756 = vmatpush1.bf16.msra.mxu0 %v2732
        %2757 = vmatprep.subr.bf16.mxu0 0
        %2758 = vmatpush1.bf16.msra.mxu0 %v2731
        %2759 = vmatprep.subr.bf16.mxu0 0
        %2760 = vmatpush1.bf16.msra.mxu0 %v2730
        %2761 = vmatprep.subr.bf16.mxu0 0
        %2762 = vmatpush1.bf16.msra.mxu0 %v2729
        %2763 = vmatprep.subr.bf16.mxu0 0
        %2764 = vmatpush1.bf16.msra.mxu0 %v2728
        %2765 = vmatprep.subr.bf16.mxu0 0
        %2766 = vmatpush1.bf16.msra.mxu0 %v2727
        %2767 = vmatprep.subr.bf16.mxu0 0
        %2768 = vmatpush1.bf16.msra.mxu0 %v2726
        %2769 = vmatprep.subr.bf16.mxu0 0
        %2770 = vmatpush2.bf16.msra.mxu0 0
        %2771 = vmatprep.subr.bf16.mxu0 0
        %2772 = vmatpush2.bf16.msra.mxu0 0
        %2773 = vmatprep.subr.bf16.mxu0 0
        %2774 = vmatpush2.bf16.msra.mxu0 0
        %2775 = vmatprep.subr.bf16.mxu0 0
        %2776 = vmatpush2.bf16.msra.mxu0 0
        %2777 = vmatprep.subr.bf16.mxu0 0
        %2778 = vmatpush2.bf16.msra.mxu0 %v2737
        %2779 = vmatprep.subr.bf16.mxu0 0
        %2780 = vmatpush2.bf16.msra.mxu0 %v2736
        %2781 = vmatprep.subr.bf16.mxu0 0
        %2782 = vmatpush2.bf16.msra.mxu0 %v2735
        %2783 = vmatprep.subr.bf16.mxu0 0
        %2784 = vmatpush2.bf16.msra.mxu0 %v2734
        %2785 = vmatprep.mubr.bf16.mxu0 %v2751
        %2786 = vmatmul.mubr.bf16.gmra.mxu0 %v2279
        %v2787 = vpop.f32.mrf.mxu0
        %v2788 = vadd.f32 %v2552, %v2787
        %v2789 = vpop.f32.mrf.mxu0
        %v2790 = vpop.f32.mrf.mxu0
        %v2791 = vadd.f32 %v2555, %v2790
        %v2792 = vpop.f32.mrf.mxu0
        %2793 = vmatprep.mubr.bf16.mxu0 %v2470
        %2794 = vmatmul.mubr.bf16.gmra.mxu0 %v2282
        %v2795 = vpop.f32.mrf.mxu0
        %v2796 = vadd.f32 %v2560, %v2795
        %v2797 = vpop.f32.mrf.mxu0
        %v2798 = vpop.f32.mrf.mxu0
        %v2799 = vadd.f32 %v2563, %v2798
        %v2800 = vpop.f32.mrf.mxu0
        %2801 = vmatprep.mubr.bf16.mxu0 %v2473
        %2802 = vmatmul.mubr.bf16.gmra.mxu0 %v2285
        %v2803 = vpop.f32.mrf.mxu0
        %v2804 = vadd.f32 %v2568, %v2803
        %v2805 = vpop.f32.mrf.mxu0
        %v2806 = vpop.f32.mrf.mxu0
        %v2807 = vadd.f32 %v2571, %v2806
        %v2808 = vpop.f32.mrf.mxu0
        %2809 = vmatprep.mubr.bf16.mxu0 %v2476
        %2810 = vmatmul.mubr.bf16.gmra.mxu0 %v2288
        %v2811 = vpop.f32.mrf.mxu0
        %v2812 = vadd.f32 %v2576, %v2811
        %v2813 = vpop.f32.mrf.mxu0
        %v2814 = vpop.f32.mrf.mxu0
        %v2815 = vadd.f32 %v2579, %v2814
        %v2816 = vpop.f32.mrf.mxu0
        %2817 = vmatprep.mubr.bf16.mxu0 %v2479
        %2818 = vmatmul.mubr.bf16.gmra.mxu0 %v2291
        %v2819 = vpop.f32.mrf.mxu0
        %v2820 = vadd.f32 %v2584, %v2819
        %v2821 = vpop.f32.mrf.mxu0
        %v2822 = vpop.f32.mrf.mxu0
        %v2823 = vadd.f32 %v2587, %v2822
        %v2824 = vpop.f32.mrf.mxu0
        %2825 = vmatprep.mubr.bf16.mxu0 %v2482
        %2826 = vmatmul.mubr.bf16.gmra.mxu0 %v2294
        %v2827 = vpop.f32.mrf.mxu0
        %v2828 = vadd.f32 %v2592, %v2827
        %v2829 = vpop.f32.mrf.mxu0
        %v2830 = vpop.f32.mrf.mxu0
        %v2831 = vadd.f32 %v2595, %v2830
        %v2832 = vpop.f32.mrf.mxu0
        %2833 = vmatprep.mubr.bf16.mxu0 %v2485
        %2834 = vmatmul.mubr.bf16.gmra.mxu0 %v2297
        %v2835 = vpop.f32.mrf.mxu0
        %v2836 = vadd.f32 %v2600, %v2835
        %v2837 = vpop.f32.mrf.mxu0
        %v2838 = vpop.f32.mrf.mxu0
        %v2839 = vadd.f32 %v2603, %v2838
        %v2840 = vpop.f32.mrf.mxu0
        %2841 = vmatprep.mubr.bf16.mxu0 %v2488
        %2842 = vmatmul.mubr.bf16.gmra.mxu0 %v2300
        %v2843 = vpop.f32.mrf.mxu0
        %v2844 = vadd.f32 %v2608, %v2843
        %v2845 = vpop.f32.mrf.mxu0
        %v2846 = vpop.f32.mrf.mxu0
        %v2847 = vadd.f32 %v2611, %v2846
        %v2848 = vpop.f32.mrf.mxu0
        %2849 = vmatprep.mubr.bf16.mxu0 %v2491
        %2850 = vmatmul.mubr.bf16.gmra.mxu0 %v2303
        %v2851 = vpop.f32.mrf.mxu0
        %v2852 = vadd.f32 %v2616, %v2851
        %v2853 = vpop.f32.mrf.mxu0
        %v2854 = vpop.f32.mrf.mxu0
        %v2855 = vadd.f32 %v2619, %v2854
        %v2856 = vpop.f32.mrf.mxu0
        %2857 = vmatprep.mubr.bf16.mxu0 %v2494
        %2858 = vmatmul.mubr.bf16.gmra.mxu0 %v2306
        %v2859 = vpop.f32.mrf.mxu0
        %v2860 = vadd.f32 %v2624, %v2859
        %v2861 = vpop.f32.mrf.mxu0
        %v2862 = vpop.f32.mrf.mxu0
        %v2863 = vadd.f32 %v2627, %v2862
        %v2864 = vpop.f32.mrf.mxu0
        %2865 = vmatprep.mubr.bf16.mxu0 %v2497
        %2866 = vmatmul.mubr.bf16.gmra.mxu0 %v2309
        %v2867 = vpop.f32.mrf.mxu0
        %v2868 = vadd.f32 %v2632, %v2867
        %v2869 = vpop.f32.mrf.mxu0
        %v2870 = vpop.f32.mrf.mxu0
        %v2871 = vadd.f32 %v2635, %v2870
        %v2872 = vpop.f32.mrf.mxu0
        %2873 = vmatprep.mubr.bf16.mxu0 %v2500
        %2874 = vmatmul.mubr.bf16.gmra.mxu0 %v2312
        %v2875 = vpop.f32.mrf.mxu0
        %v2876 = vadd.f32 %v2640, %v2875
        %v2877 = vpop.f32.mrf.mxu0
        %v2878 = vpop.f32.mrf.mxu0
        %v2879 = vadd.f32 %v2643, %v2878
        %v2880 = vpop.f32.mrf.mxu0
        %2881 = vmatprep.mubr.bf16.mxu0 %v2503
        %2882 = vmatmul.mubr.bf16.gmra.mxu0 %v2315
        %v2883 = vpop.f32.mrf.mxu0
        %v2884 = vadd.f32 %v2648, %v2883
        %v2885 = vpop.f32.mrf.mxu0
        %v2886 = vpop.f32.mrf.mxu0
        %v2887 = vadd.f32 %v2651, %v2886
        %v2888 = vpop.f32.mrf.mxu0
        %2889 = vmatprep.mubr.bf16.mxu0 %v2506
        %2890 = vmatmul.mubr.bf16.gmra.mxu0 %v2318
        %v2891 = vpop.f32.mrf.mxu0
        %v2892 = vadd.f32 %v2656, %v2891
        %v2893 = vpop.f32.mrf.mxu0
        %v2894 = vpop.f32.mrf.mxu0
        %v2895 = vadd.f32 %v2659, %v2894
        %v2896 = vpop.f32.mrf.mxu0
        %2897 = vmatprep.mubr.bf16.mxu0 %v2509
        %2898 = vmatmul.mubr.bf16.gmra.mxu0 %v2321
        %v2899 = vpop.f32.mrf.mxu0
        %v2900 = vadd.f32 %v2664, %v2899
        %v2901 = vpop.f32.mrf.mxu0
        %v2902 = vpop.f32.mrf.mxu0
        %v2903 = vadd.f32 %v2667, %v2902
        %v2904 = vpop.f32.mrf.mxu0
        %2905 = vmatprep.mubr.bf16.mxu0 %v2512
        %2906 = vmatmul.mubr.bf16.gmra.mxu0 %v2324
        %v2907 = vpop.f32.mrf.mxu0
        %v2908 = vadd.f32 %v2672, %v2907
        %v2909 = vpop.f32.mrf.mxu0
        %v2910 = vpop.f32.mrf.mxu0
        %v2911 = vadd.f32 %v2675, %v2910
        %v2912 = vpop.f32.mrf.mxu0
        %2913 = vdwg.mxu0
        %s2914 = scalar_lea.vmem %s4, 192
        %v2915 = vld [vmem:[%s2914] sm:$0xf]
        %v2916 = vld [vmem:[%s2914 + $0x4] sm:$0xf]
        %v2917 = vld [vmem:[%s2914 + $0x8] sm:$0xf]
        %v2918 = vld [vmem:[%s2914 + $0xc] sm:$0xf]
        %v2919 = vld [vmem:[%s2914 + $0x10] sm:$0xf]
        %v2920 = vld [vmem:[%s2914 + $0x14] sm:$0xf]
        %v2921 = vld [vmem:[%s2914 + $0x18] sm:$0xf]
        %v2922 = vld [vmem:[%s2914 + $0x1c] sm:$0xf]
        %v2923 = vld [vmem:[%s2914 + $0x20] sm:$0xf]
        %v2924 = vld [vmem:[%s2914 + $0x24] sm:$0xf]
        %v2925 = vld [vmem:[%s2914 + $0x28] sm:$0xf]
        %v2926 = vld [vmem:[%s2914 + $0x2c] sm:$0xf]
        %v2927 = vld [vmem:[%s2914 + $0x30] sm:$0xf]
        %v2928 = vld [vmem:[%s2914 + $0x34] sm:$0xf]
        %v2929 = vld [vmem:[%s2914 + $0x38] sm:$0xf]
        %v2930 = vld [vmem:[%s2914 + $0x3c] sm:$0xf]
        %v2931 = vld [vmem:[%s2914 + $0x40] sm:$0xf]
        %v2932 = vld [vmem:[%s2914 + $0x44] sm:$0xf]
        %v2933 = vld [vmem:[%s2914 + $0x48] sm:$0xf]
        %v2934 = vld [vmem:[%s2914 + $0x4c] sm:$0xf]
        %v2935 = vld [vmem:[%s2914 + $0x50] sm:$0xf]
        %v2936 = vld [vmem:[%s2914 + $0x54] sm:$0xf]
        %v2937 = vld [vmem:[%s2914 + $0x58] sm:$0xf]
        %v2938 = vld [vmem:[%s2914 + $0x5c] sm:$0xf]
        %v2963 = vunpack.c.l.b16 %v2915
        %v2964 = vunpack.c.l.b16 %v2916
        %v2965 = vunpack.c.l.b16 %v2917
        %v2966 = vunpack.c.l.b16 %v2918
        %v2967 = vunpack.c.l.b16 %v2919
        %v2968 = vunpack.c.l.b16 %v2920
        %v2969 = vunpack.c.l.b16 %v2921
        %v2970 = vunpack.c.l.b16 %v2922
        %v2971 = vunpack.c.l.b16 %v2923
        %v2972 = vunpack.c.l.b16 %v2924
        %v2973 = vunpack.c.l.b16 %v2925
        %v2974 = vunpack.c.l.b16 %v2926
        %v2975 = vunpack.c.l.b16 %v2927
        %v2976 = vunpack.c.l.b16 %v2928
        %v2977 = vunpack.c.l.b16 %v2929
        %v2978 = vunpack.c.l.b16 %v2930
        %v2979 = vunpack.c.l.b16 %v2931
        %v2980 = vunpack.c.l.b16 %v2932
        %v2981 = vunpack.c.l.b16 %v2933
        %v2982 = vunpack.c.l.b16 %v2934
        %v2983 = vunpack.c.l.b16 %v2935
        %v2984 = vunpack.c.l.b16 %v2936
        %v2985 = vunpack.c.l.b16 %v2937
        %v2986 = vunpack.c.l.b16 %v2938
        %v2987 = vpack.c.b16 %v2964, %v2963
        %v2988 = vpack.c.b16 %v2966, %v2965
        %v2989 = vpack.c.b16 %v2968, %v2967
        %v2990 = vpack.c.b16 %v2970, %v2969
        %v2991 = vpack.c.b16 %v2972, %v2971
        %v2992 = vpack.c.b16 %v2974, %v2973
        %v2993 = vpack.c.b16 %v2976, %v2975
        %v2994 = vpack.c.b16 %v2978, %v2977
        %v2995 = vpack.c.b16 %v2980, %v2979
        %v2996 = vpack.c.b16 %v2982, %v2981
        %v2997 = vpack.c.b16 %v2984, %v2983
        %v2998 = vpack.c.b16 %v2986, %v2985
        %3011 = vmatprep.subr.bf16.mxu0 0
        %3012 = vmatpush1.bf16.msra.mxu0 %v2994
        %3013 = vmatprep.subr.bf16.mxu0 0
        %3014 = vmatpush1.bf16.msra.mxu0 %v2993
        %3015 = vmatprep.subr.bf16.mxu0 0
        %3016 = vmatpush1.bf16.msra.mxu0 %v2992
        %3017 = vmatprep.subr.bf16.mxu0 0
        %3018 = vmatpush1.bf16.msra.mxu0 %v2991
        %3019 = vmatprep.subr.bf16.mxu0 0
        %3020 = vmatpush1.bf16.msra.mxu0 %v2990
        %3021 = vmatprep.subr.bf16.mxu0 0
        %3022 = vmatpush1.bf16.msra.mxu0 %v2989
        %3023 = vmatprep.subr.bf16.mxu0 0
        %3024 = vmatpush1.bf16.msra.mxu0 %v2988
        %3025 = vmatprep.subr.bf16.mxu0 0
        %3026 = vmatpush1.bf16.msra.mxu0 %v2987
        %3027 = vmatprep.subr.bf16.mxu0 0
        %3028 = vmatpush2.bf16.msra.mxu0 0
        %3029 = vmatprep.subr.bf16.mxu0 0
        %3030 = vmatpush2.bf16.msra.mxu0 0
        %3031 = vmatprep.subr.bf16.mxu0 0
        %3032 = vmatpush2.bf16.msra.mxu0 0
        %3033 = vmatprep.subr.bf16.mxu0 0
        %3034 = vmatpush2.bf16.msra.mxu0 0
        %3035 = vmatprep.subr.bf16.mxu0 0
        %3036 = vmatpush2.bf16.msra.mxu0 %v2998
        %3037 = vmatprep.subr.bf16.mxu0 0
        %3038 = vmatpush2.bf16.msra.mxu0 %v2997
        %3039 = vmatprep.subr.bf16.mxu0 0
        %3040 = vmatpush2.bf16.msra.mxu0 %v2996
        %3041 = vmatprep.subr.bf16.mxu0 0
        %3042 = vmatpush2.bf16.msra.mxu0 %v2995
        %3043 = vmatprep.mubr.bf16.mxu0 %v2473
        %3044 = vmatmul.mubr.bf16.gmra.mxu0 %v2285
        %v3045 = vpop.f32.mrf.mxu0
        %v3046 = vadd.f32 0.0, %v3045
        %v3047 = vpop.f32.mrf.mxu0
        %v3048 = vpop.f32.mrf.mxu0
        %v3049 = vadd.f32 0.0, %v3048
        %v3050 = vpop.f32.mrf.mxu0
        %3051 = vmatprep.mubr.bf16.mxu0 %v2476
        %3052 = vmatmul.mubr.bf16.gmra.mxu0 %v2288
        %v3053 = vpop.f32.mrf.mxu0
        %v3054 = vadd.f32 0.0, %v3053
        %v3055 = vpop.f32.mrf.mxu0
        %v3056 = vpop.f32.mrf.mxu0
        %v3057 = vadd.f32 0.0, %v3056
        %v3058 = vpop.f32.mrf.mxu0
        %3059 = vmatprep.mubr.bf16.mxu0 %v2479
        %3060 = vmatmul.mubr.bf16.gmra.mxu0 %v2291
        %v3061 = vpop.f32.mrf.mxu0
        %v3062 = vadd.f32 0.0, %v3061
        %v3063 = vpop.f32.mrf.mxu0
        %v3064 = vpop.f32.mrf.mxu0
        %v3065 = vadd.f32 0.0, %v3064
        %v3066 = vpop.f32.mrf.mxu0
        %3067 = vmatprep.mubr.bf16.mxu0 %v2482
        %3068 = vmatmul.mubr.bf16.gmra.mxu0 %v2294
        %v3069 = vpop.f32.mrf.mxu0
        %v3070 = vadd.f32 0.0, %v3069
        %v3071 = vpop.f32.mrf.mxu0
        %v3072 = vpop.f32.mrf.mxu0
        %v3073 = vadd.f32 0.0, %v3072
        %v3074 = vpop.f32.mrf.mxu0
        %3075 = vmatprep.mubr.bf16.mxu0 %v2485
        %3076 = vmatmul.mubr.bf16.gmra.mxu0 %v2297
        %v3077 = vpop.f32.mrf.mxu0
        %v3078 = vadd.f32 0.0, %v3077
        %v3079 = vpop.f32.mrf.mxu0
        %v3080 = vpop.f32.mrf.mxu0
        %v3081 = vadd.f32 0.0, %v3080
        %v3082 = vpop.f32.mrf.mxu0
        %3083 = vmatprep.mubr.bf16.mxu0 %v2488
        %3084 = vmatmul.mubr.bf16.gmra.mxu0 %v2300
        %v3085 = vpop.f32.mrf.mxu0
        %v3086 = vadd.f32 0.0, %v3085
        %v3087 = vpop.f32.mrf.mxu0
        %v3088 = vpop.f32.mrf.mxu0
        %v3089 = vadd.f32 0.0, %v3088
        %v3090 = vpop.f32.mrf.mxu0
        %3091 = vmatprep.mubr.bf16.mxu0 %v2491
        %3092 = vmatmul.mubr.bf16.gmra.mxu0 %v2303
        %v3093 = vpop.f32.mrf.mxu0
        %v3094 = vadd.f32 0.0, %v3093
        %v3095 = vpop.f32.mrf.mxu0
        %v3096 = vpop.f32.mrf.mxu0
        %v3097 = vadd.f32 0.0, %v3096
        %v3098 = vpop.f32.mrf.mxu0
        %3099 = vmatprep.mubr.bf16.mxu0 %v2494
        %3100 = vmatmul.mubr.bf16.gmra.mxu0 %v2306
        %v3101 = vpop.f32.mrf.mxu0
        %v3102 = vadd.f32 0.0, %v3101
        %v3103 = vpop.f32.mrf.mxu0
        %v3104 = vpop.f32.mrf.mxu0
        %v3105 = vadd.f32 0.0, %v3104
        %v3106 = vpop.f32.mrf.mxu0
        %3107 = vmatprep.mubr.bf16.mxu0 %v2497
        %3108 = vmatmul.mubr.bf16.gmra.mxu0 %v2309
        %v3109 = vpop.f32.mrf.mxu0
        %v3110 = vadd.f32 0.0, %v3109
        %v3111 = vpop.f32.mrf.mxu0
        %v3112 = vpop.f32.mrf.mxu0
        %v3113 = vadd.f32 0.0, %v3112
        %v3114 = vpop.f32.mrf.mxu0
        %3115 = vmatprep.mubr.bf16.mxu0 %v2500
        %3116 = vmatmul.mubr.bf16.gmra.mxu0 %v2312
        %v3117 = vpop.f32.mrf.mxu0
        %v3118 = vadd.f32 0.0, %v3117
        %v3119 = vpop.f32.mrf.mxu0
        %v3120 = vpop.f32.mrf.mxu0
        %v3121 = vadd.f32 0.0, %v3120
        %v3122 = vpop.f32.mrf.mxu0
        %3123 = vmatprep.mubr.bf16.mxu0 %v2503
        %3124 = vmatmul.mubr.bf16.gmra.mxu0 %v2315
        %v3125 = vpop.f32.mrf.mxu0
        %v3126 = vadd.f32 0.0, %v3125
        %v3127 = vpop.f32.mrf.mxu0
        %v3128 = vpop.f32.mrf.mxu0
        %v3129 = vadd.f32 0.0, %v3128
        %v3130 = vpop.f32.mrf.mxu0
        %3131 = vmatprep.mubr.bf16.mxu0 %v2506
        %3132 = vmatmul.mubr.bf16.gmra.mxu0 %v2318
        %v3133 = vpop.f32.mrf.mxu0
        %v3134 = vadd.f32 0.0, %v3133
        %v3135 = vpop.f32.mrf.mxu0
        %v3136 = vpop.f32.mrf.mxu0
        %v3137 = vadd.f32 0.0, %v3136
        %v3138 = vpop.f32.mrf.mxu0
        %3139 = vmatprep.mubr.bf16.mxu0 %v2509
        %3140 = vmatmul.mubr.bf16.gmra.mxu0 %v2321
        %v3141 = vpop.f32.mrf.mxu0
        %v3142 = vadd.f32 0.0, %v3141
        %v3143 = vpop.f32.mrf.mxu0
        %v3144 = vpop.f32.mrf.mxu0
        %v3145 = vadd.f32 0.0, %v3144
        %v3146 = vpop.f32.mrf.mxu0
        %3147 = vmatprep.mubr.bf16.mxu0 %v2512
        %3148 = vmatmul.mubr.bf16.gmra.mxu0 %v2324
        %v3149 = vpop.f32.mrf.mxu0
        %v3150 = vadd.f32 0.0, %v3149
        %v3151 = vpop.f32.mrf.mxu0
        %v3152 = vpop.f32.mrf.mxu0
        %v3153 = vadd.f32 0.0, %v3152
        %v3154 = vpop.f32.mrf.mxu0
        %3155 = vmatprep.mubr.bf16.mxu0 %v2515
        %3156 = vmatmul.mubr.bf16.gmra.mxu0 %v2370
        %v3157 = vpop.f32.mrf.mxu0
        %v3158 = vadd.f32 0.0, %v3157
        %v3159 = vpop.f32.mrf.mxu0
        %v3160 = vpop.f32.mrf.mxu0
        %v3161 = vadd.f32 0.0, %v3160
        %v3162 = vpop.f32.mrf.mxu0
        %3163 = vmatprep.mubr.bf16.mxu0 %v2751
        %3164 = vmatmul.mubr.bf16.gmra.mxu0 %v2279
        %v3165 = vpop.f32.mrf.mxu0
        %v3166 = vadd.f32 0.0, %v3165
        %v3167 = vpop.f32.mrf.mxu0
        %v3168 = vpop.f32.mrf.mxu0
        %v3169 = vadd.f32 0.0, %v3168
        %v3170 = vpop.f32.mrf.mxu0
        %3171 = vdwg.mxu0
        %v3172 = vadd.f32 %v2788, %v3046
        %v3173 = vadd.f32 %v2791, %v3049
        %v3174 = vadd.f32 %v2796, %v3054
        %v3175 = vadd.f32 %v2799, %v3057
        %v3176 = vadd.f32 %v2804, %v3062
        %v3177 = vadd.f32 %v2807, %v3065
        %v3178 = vadd.f32 %v2812, %v3070
        %v3179 = vadd.f32 %v2815, %v3073
        %v3180 = vadd.f32 %v2820, %v3078
        %v3181 = vadd.f32 %v2823, %v3081
        %v3182 = vadd.f32 %v2828, %v3086
        %v3183 = vadd.f32 %v2831, %v3089
        %v3184 = vadd.f32 %v2836, %v3094
        %v3185 = vadd.f32 %v2839, %v3097
        %v3186 = vadd.f32 %v2844, %v3102
        %v3187 = vadd.f32 %v2847, %v3105
        %v3188 = vadd.f32 %v2852, %v3110
        %v3189 = vadd.f32 %v2855, %v3113
        %v3190 = vadd.f32 %v2860, %v3118
        %v3191 = vadd.f32 %v2863, %v3121
        %v3192 = vadd.f32 %v2868, %v3126
        %v3193 = vadd.f32 %v2871, %v3129
        %v3194 = vadd.f32 %v2876, %v3134
        %v3195 = vadd.f32 %v2879, %v3137
        %v3196 = vadd.f32 %v2884, %v3142
        %v3197 = vadd.f32 %v2887, %v3145
        %v3198 = vadd.f32 %v2892, %v3150
        %v3199 = vadd.f32 %v2895, %v3153
        %v3200 = vadd.f32 %v2900, %v3158
        %v3201 = vadd.f32 %v2903, %v3161
        %v3202 = vadd.f32 %v2908, %v3166
        %v3203 = vadd.f32 %v2911, %v3169
        %v3204 = vld [vmem:[%s5] sm:$0x1]
        %v3206 = vlaneseq
        %v3207 = vshrl.u32 %v3206, 7
        %v3208 = vsub.s32 0, %v3207
        %v3209 = vrot.slane %v3204, %v3208
        %v3211 = vmul.f32 %v3172, %v3209
        %v3212 = vmul.f32 %v3173, %v3209
        %v3213 = vmul.f32 %v3174, %v3209
        %v3214 = vmul.f32 %v3175, %v3209
        %v3215 = vmul.f32 %v3176, %v3209
        %v3216 = vmul.f32 %v3177, %v3209
        %v3217 = vmul.f32 %v3178, %v3209
        %v3218 = vmul.f32 %v3179, %v3209
        %v3219 = vmul.f32 %v3180, %v3209
        %v3220 = vmul.f32 %v3181, %v3209
        %v3221 = vmul.f32 %v3182, %v3209
        %v3222 = vmul.f32 %v3183, %v3209
        %v3223 = vmul.f32 %v3184, %v3209
        %v3224 = vmul.f32 %v3185, %v3209
        %v3225 = vmul.f32 %v3186, %v3209
        %v3226 = vmul.f32 %v3187, %v3209
        %v3227 = vmul.f32 %v3188, %v3209
        %v3228 = vmul.f32 %v3189, %v3209
        %v3229 = vmul.f32 %v3190, %v3209
        %v3230 = vmul.f32 %v3191, %v3209
        %v3231 = vmul.f32 %v3192, %v3209
        %v3232 = vmul.f32 %v3193, %v3209
        %v3233 = vmul.f32 %v3194, %v3209
        %v3234 = vmul.f32 %v3195, %v3209
        %v3235 = vmul.f32 %v3196, %v3209
        %v3236 = vmul.f32 %v3197, %v3209
        %v3237 = vmul.f32 %v3198, %v3209
        %v3238 = vmul.f32 %v3199, %v3209
        %v3239 = vmul.f32 %v3200, %v3209
        %v3240 = vmul.f32 %v3201, %v3209
        %v3241 = vmul.f32 %v3202, %v3209
        %v3242 = vmul.f32 %v3203, %v3209
        %v3243 = vld [vmem:[%s6] sm:$0x1]
        %v3245 = vlaneseq
        %v3246 = vshrl.u32 %v3245, 7
        %v3247 = vsub.s32 0, %v3246
        %v3248 = vrot.slane %v3243, %v3247
        %v3250 = vadd.f32 %v3211, %v3248
        %v3251 = vadd.f32 %v3212, %v3248
        %v3252 = vadd.f32 %v3213, %v3248
        %v3253 = vadd.f32 %v3214, %v3248
        %v3254 = vadd.f32 %v3215, %v3248
        %v3255 = vadd.f32 %v3216, %v3248
        %v3256 = vadd.f32 %v3217, %v3248
        %v3257 = vadd.f32 %v3218, %v3248
        %v3258 = vadd.f32 %v3219, %v3248
        %v3259 = vadd.f32 %v3220, %v3248
        %v3260 = vadd.f32 %v3221, %v3248
        %v3261 = vadd.f32 %v3222, %v3248
        %v3262 = vadd.f32 %v3223, %v3248
        %v3263 = vadd.f32 %v3224, %v3248
        %v3264 = vadd.f32 %v3225, %v3248
        %v3265 = vadd.f32 %v3226, %v3248
        %v3266 = vadd.f32 %v3227, %v3248
        %v3267 = vadd.f32 %v3228, %v3248
        %v3268 = vadd.f32 %v3229, %v3248
        %v3269 = vadd.f32 %v3230, %v3248
        %v3270 = vadd.f32 %v3231, %v3248
        %v3271 = vadd.f32 %v3232, %v3248
        %v3272 = vadd.f32 %v3233, %v3248
        %v3273 = vadd.f32 %v3234, %v3248
        %v3274 = vadd.f32 %v3235, %v3248
        %v3275 = vadd.f32 %v3236, %v3248
        %v3276 = vadd.f32 %v3237, %v3248
        %v3277 = vadd.f32 %v3238, %v3248
        %v3278 = vadd.f32 %v3239, %v3248
        %v3279 = vadd.f32 %v3240, %v3248
        %v3280 = vadd.f32 %v3241, %v3248
        %v3281 = vadd.f32 %v3242, %v3248
        %v3282 = vmax.f32 %v3250, 0.0
        %v3283 = vmax.f32 %v3251, 0.0
        %v3284 = vmax.f32 %v3252, 0.0
        %v3285 = vmax.f32 %v3253, 0.0
        %v3286 = vmax.f32 %v3254, 0.0
        %v3287 = vmax.f32 %v3255, 0.0
        %v3288 = vmax.f32 %v3256, 0.0
        %v3289 = vmax.f32 %v3257, 0.0
        %v3290 = vmax.f32 %v3258, 0.0
        %v3291 = vmax.f32 %v3259, 0.0
        %v3292 = vmax.f32 %v3260, 0.0
        %v3293 = vmax.f32 %v3261, 0.0
        %v3294 = vmax.f32 %v3262, 0.0
        %v3295 = vmax.f32 %v3263, 0.0
        %v3296 = vmax.f32 %v3264, 0.0
        %v3297 = vmax.f32 %v3265, 0.0
        %v3298 = vmax.f32 %v3266, 0.0
        %v3299 = vmax.f32 %v3267, 0.0
        %v3300 = vmax.f32 %v3268, 0.0
        %v3301 = vmax.f32 %v3269, 0.0
        %v3302 = vmax.f32 %v3270, 0.0
        %v3303 = vmax.f32 %v3271, 0.0
        %v3304 = vmax.f32 %v3272, 0.0
        %v3305 = vmax.f32 %v3273, 0.0
        %v3306 = vmax.f32 %v3274, 0.0
        %v3307 = vmax.f32 %v3275, 0.0
        %v3308 = vmax.f32 %v3276, 0.0
        %v3309 = vmax.f32 %v3277, 0.0
        %v3310 = vmax.f32 %v3278, 0.0
        %v3311 = vmax.f32 %v3279, 0.0
        %v3312 = vmax.f32 %v3280, 0.0
        %v3313 = vmax.f32 %v3281, 0.0
        %v3314 = vpack.c.bf16 %v3283, %v3282
        %v3315 = vpack.c.bf16 %v3285, %v3284
        %v3316 = vpack.c.bf16 %v3287, %v3286
        %v3317 = vpack.c.bf16 %v3289, %v3288
        %v3318 = vpack.c.bf16 %v3291, %v3290
        %v3319 = vpack.c.bf16 %v3293, %v3292
        %v3320 = vpack.c.bf16 %v3295, %v3294
        %v3321 = vpack.c.bf16 %v3297, %v3296
        %v3322 = vpack.c.bf16 %v3299, %v3298
        %v3323 = vpack.c.bf16 %v3301, %v3300
        %v3324 = vpack.c.bf16 %v3303, %v3302
        %v3325 = vpack.c.bf16 %v3305, %v3304
        %v3326 = vpack.c.bf16 %v3307, %v3306
        %v3327 = vpack.c.bf16 %v3309, %v3308
        %v3328 = vpack.c.bf16 %v3311, %v3310
        %v3329 = vpack.c.bf16 %v3313, %v3312
        %v3331 = vshrl.u32 %v3314, 16
        %v3333 = vrot.slane %v3331, 7
        %v3334 = vshll.u32 %v3314, 16
        %v3336 = vor.u32 %v3333, %v3334
        %v3338 = vshrl.u32 %v3315, 16
        %v3340 = vrot.slane %v3338, 7
        %v3341 = vshll.u32 %v3315, 16
        %v3343 = vor.u32 %v3340, %v3341
        %v3345 = vshrl.u32 %v3316, 16
        %v3347 = vrot.slane %v3345, 7
        %v3348 = vshll.u32 %v3316, 16
        %v3350 = vor.u32 %v3347, %v3348
        %v3352 = vshrl.u32 %v3317, 16
        %v3354 = vrot.slane %v3352, 7
        %v3355 = vshll.u32 %v3317, 16
        %v3357 = vor.u32 %v3354, %v3355
        %v3359 = vshrl.u32 %v3318, 16
        %v3361 = vrot.slane %v3359, 7
        %v3362 = vshll.u32 %v3318, 16
        %v3364 = vor.u32 %v3361, %v3362
        %v3366 = vshrl.u32 %v3319, 16
        %v3368 = vrot.slane %v3366, 7
        %v3369 = vshll.u32 %v3319, 16
        %v3371 = vor.u32 %v3368, %v3369
        %v3373 = vshrl.u32 %v3320, 16
        %v3375 = vrot.slane %v3373, 7
        %v3376 = vshll.u32 %v3320, 16
        %v3378 = vor.u32 %v3375, %v3376
        %v3380 = vshrl.u32 %v3321, 16
        %v3382 = vrot.slane %v3380, 7
        %v3383 = vshll.u32 %v3321, 16
        %v3385 = vor.u32 %v3382, %v3383
        %v3387 = vshrl.u32 %v3322, 16
        %v3389 = vrot.slane %v3387, 7
        %v3390 = vshll.u32 %v3322, 16
        %v3392 = vor.u32 %v3389, %v3390
        %v3394 = vshrl.u32 %v3323, 16
        %v3396 = vrot.slane %v3394, 7
        %v3397 = vshll.u32 %v3323, 16
        %v3399 = vor.u32 %v3396, %v3397
        %v3401 = vshrl.u32 %v3324, 16
        %v3403 = vrot.slane %v3401, 7
        %v3404 = vshll.u32 %v3324, 16
        %v3406 = vor.u32 %v3403, %v3404
        %v3408 = vshrl.u32 %v3325, 16
        %v3410 = vrot.slane %v3408, 7
        %v3411 = vshll.u32 %v3325, 16
        %v3413 = vor.u32 %v3410, %v3411
        %v3415 = vshrl.u32 %v3326, 16
        %v3417 = vrot.slane %v3415, 7
        %v3418 = vshll.u32 %v3326, 16
        %v3420 = vor.u32 %v3417, %v3418
        %v3422 = vshrl.u32 %v3327, 16
        %v3424 = vrot.slane %v3422, 7
        %v3425 = vshll.u32 %v3327, 16
        %v3427 = vor.u32 %v3424, %v3425
        %v3429 = vshrl.u32 %v3328, 16
        %v3431 = vrot.slane %v3429, 7
        %v3432 = vshll.u32 %v3328, 16
        %v3434 = vor.u32 %v3431, %v3432
        %v3436 = vshrl.u32 %v3329, 16
        %v3438 = vrot.slane %v3436, 7
        %v3439 = vshll.u32 %v3329, 16
        %v3441 = vor.u32 %v3438, %v3439
        %v3474 = vsel %vm626, 0, %v3336
        %v3475 = vsel %vm626, 0, %v3343
        %v3476 = vsel %vm626, 0, %v3350
        %v3477 = vsel %vm626, 0, %v3357
        %v3478 = vsel %vm626, 0, %v3364
        %v3479 = vsel %vm626, 0, %v3371
        %v3480 = vsel %vm626, 0, %v3378
        %v3481 = vsel %vm626, 0, %v3385
        %v3482 = vsel %vm626, 0, %v3392
        %v3483 = vsel %vm626, 0, %v3399
        %v3484 = vsel %vm626, 0, %v3406
        %v3485 = vsel %vm626, 0, %v3413
        %v3486 = vsel %vm626, 0, %v3420
        %v3487 = vsel %vm626, 0, %v3427
        %v3488 = vsel %vm626, 0, %v3434
        %v3489 = vsel %vm626, 0, %v3441
        %v3490 = vsel %vm626, %v3333, 0
        %v3491 = vsel %vm626, %v3340, 0
        %v3492 = vsel %vm626, %v3347, 0
        %v3493 = vsel %vm626, %v3354, 0
        %v3494 = vsel %vm626, %v3361, 0
        %v3495 = vsel %vm626, %v3368, 0
        %v3496 = vsel %vm626, %v3375, 0
        %v3497 = vsel %vm626, %v3382, 0
        %v3498 = vsel %vm626, %v3389, 0
        %v3499 = vsel %vm626, %v3396, 0
        %v3500 = vsel %vm626, %v3403, 0
        %v3501 = vsel %vm626, %v3410, 0
        %v3502 = vsel %vm626, %v3417, 0
        %v3503 = vsel %vm626, %v3424, 0
        %v3504 = vsel %vm626, %v3431, 0
        %v3505 = vsel %vm626, %v3438, 0
        %v3507 = vshrl.u32 %v3474, 16
        %v3509 = vshll.u32 %v3474, 16
        %v3511 = vrot.slane %v3509, 1
        %v3512 = vor.u32 %v3507, %v3511
        %v3514 = vshll.u32 %v3490, 16
        %v3516 = vrot.slane %v3514, 1
        %v3517 = vsel %vm661, %v3512, %v3516
        %v3519 = vshrl.u32 %v3475, 16
        %v3521 = vshll.u32 %v3475, 16
        %v3523 = vrot.slane %v3521, 1
        %v3524 = vor.u32 %v3519, %v3523
        %v3526 = vshll.u32 %v3491, 16
        %v3528 = vrot.slane %v3526, 1
        %v3529 = vsel %vm661, %v3524, %v3528
        %v3531 = vshrl.u32 %v3476, 16
        %v3533 = vshll.u32 %v3476, 16
        %v3535 = vrot.slane %v3533, 1
        %v3536 = vor.u32 %v3531, %v3535
        %v3538 = vshll.u32 %v3492, 16
        %v3540 = vrot.slane %v3538, 1
        %v3541 = vsel %vm661, %v3536, %v3540
        %v3543 = vshrl.u32 %v3477, 16
        %v3545 = vshll.u32 %v3477, 16
        %v3547 = vrot.slane %v3545, 1
        %v3548 = vor.u32 %v3543, %v3547
        %v3550 = vshll.u32 %v3493, 16
        %v3552 = vrot.slane %v3550, 1
        %v3553 = vsel %vm661, %v3548, %v3552
        %v3555 = vshrl.u32 %v3478, 16
        %v3557 = vshll.u32 %v3478, 16
        %v3559 = vrot.slane %v3557, 1
        %v3560 = vor.u32 %v3555, %v3559
        %v3562 = vshll.u32 %v3494, 16
        %v3564 = vrot.slane %v3562, 1
        %v3565 = vsel %vm661, %v3560, %v3564
        %v3567 = vshrl.u32 %v3479, 16
        %v3569 = vshll.u32 %v3479, 16
        %v3571 = vrot.slane %v3569, 1
        %v3572 = vor.u32 %v3567, %v3571
        %v3574 = vshll.u32 %v3495, 16
        %v3576 = vrot.slane %v3574, 1
        %v3577 = vsel %vm661, %v3572, %v3576
        %v3579 = vshrl.u32 %v3480, 16
        %v3581 = vshll.u32 %v3480, 16
        %v3583 = vrot.slane %v3581, 1
        %v3584 = vor.u32 %v3579, %v3583
        %v3586 = vshll.u32 %v3496, 16
        %v3588 = vrot.slane %v3586, 1
        %v3589 = vsel %vm661, %v3584, %v3588
        %v3591 = vshrl.u32 %v3481, 16
        %v3593 = vshll.u32 %v3481, 16
        %v3595 = vrot.slane %v3593, 1
        %v3596 = vor.u32 %v3591, %v3595
        %v3598 = vshll.u32 %v3497, 16
        %v3600 = vrot.slane %v3598, 1
        %v3601 = vsel %vm661, %v3596, %v3600
        %v3603 = vshrl.u32 %v3482, 16
        %v3605 = vshll.u32 %v3482, 16
        %v3607 = vrot.slane %v3605, 1
        %v3608 = vor.u32 %v3603, %v3607
        %v3610 = vshll.u32 %v3498, 16
        %v3612 = vrot.slane %v3610, 1
        %v3613 = vsel %vm661, %v3608, %v3612
        %v3615 = vshrl.u32 %v3483, 16
        %v3617 = vshll.u32 %v3483, 16
        %v3619 = vrot.slane %v3617, 1
        %v3620 = vor.u32 %v3615, %v3619
        %v3622 = vshll.u32 %v3499, 16
        %v3624 = vrot.slane %v3622, 1
        %v3625 = vsel %vm661, %v3620, %v3624
        %v3627 = vshrl.u32 %v3484, 16
        %v3629 = vshll.u32 %v3484, 16
        %v3631 = vrot.slane %v3629, 1
        %v3632 = vor.u32 %v3627, %v3631
        %v3634 = vshll.u32 %v3500, 16
        %v3636 = vrot.slane %v3634, 1
        %v3637 = vsel %vm661, %v3632, %v3636
        %v3639 = vshrl.u32 %v3485, 16
        %v3641 = vshll.u32 %v3485, 16
        %v3643 = vrot.slane %v3641, 1
        %v3644 = vor.u32 %v3639, %v3643
        %v3646 = vshll.u32 %v3501, 16
        %v3648 = vrot.slane %v3646, 1
        %v3649 = vsel %vm661, %v3644, %v3648
        %v3651 = vshrl.u32 %v3486, 16
        %v3653 = vshll.u32 %v3486, 16
        %v3655 = vrot.slane %v3653, 1
        %v3656 = vor.u32 %v3651, %v3655
        %v3658 = vshll.u32 %v3502, 16
        %v3660 = vrot.slane %v3658, 1
        %v3661 = vsel %vm661, %v3656, %v3660
        %v3663 = vshrl.u32 %v3487, 16
        %v3665 = vshll.u32 %v3487, 16
        %v3667 = vrot.slane %v3665, 1
        %v3668 = vor.u32 %v3663, %v3667
        %v3670 = vshll.u32 %v3503, 16
        %v3672 = vrot.slane %v3670, 1
        %v3673 = vsel %vm661, %v3668, %v3672
        %v3675 = vshrl.u32 %v3488, 16
        %v3677 = vshll.u32 %v3488, 16
        %v3679 = vrot.slane %v3677, 1
        %v3680 = vor.u32 %v3675, %v3679
        %v3682 = vshll.u32 %v3504, 16
        %v3684 = vrot.slane %v3682, 1
        %v3685 = vsel %vm661, %v3680, %v3684
        %3686 = vrot.lane.b32.xlu0 %v3517, 64
        %v3687 = vpop.permute.xlu0 %3686
        %3688 = vrot.lane.b32.xlu0 %v3529, 64
        %v3689 = vpop.permute.xlu0 %3688
        %3690 = vrot.lane.b32.xlu0 %v3541, 64
        %v3691 = vpop.permute.xlu0 %3690
        %3692 = vrot.lane.b32.xlu0 %v3553, 64
        %v3693 = vpop.permute.xlu0 %3692
        %3694 = vrot.lane.b32.xlu0 %v3565, 64
        %v3695 = vpop.permute.xlu0 %3694
        %3696 = vrot.lane.b32.xlu0 %v3577, 64
        %v3697 = vpop.permute.xlu0 %3696
        %3698 = vrot.lane.b32.xlu0 %v3589, 64
        %v3699 = vpop.permute.xlu0 %3698
        %3700 = vrot.lane.b32.xlu0 %v3601, 64
        %v3701 = vpop.permute.xlu0 %3700
        %3702 = vrot.lane.b32.xlu0 %v3613, 64
        %v3703 = vpop.permute.xlu0 %3702
        %3704 = vrot.lane.b32.xlu0 %v3625, 64
        %v3705 = vpop.permute.xlu0 %3704
        %3706 = vrot.lane.b32.xlu0 %v3637, 64
        %v3707 = vpop.permute.xlu0 %3706
        %3708 = vrot.lane.b32.xlu0 %v3649, 64
        %v3709 = vpop.permute.xlu0 %3708
        %3710 = vrot.lane.b32.xlu0 %v3661, 64
        %v3711 = vpop.permute.xlu0 %3710
        %3712 = vrot.lane.b32.xlu0 %v3673, 64
        %v3713 = vpop.permute.xlu0 %3712
        %3714 = vrot.lane.b32.xlu0 %v3685, 64
        %v3715 = vpop.permute.xlu0 %3714
        %v3746 = vrot.slane %v3474, 1
        %v3747 = vrot.slane %v3490, 1
        %v3748 = vsel %vm918, %v3746, %v3747
        %v3749 = vrot.slane %v3475, 1
        %v3750 = vrot.slane %v3491, 1
        %v3751 = vsel %vm918, %v3749, %v3750
        %v3752 = vrot.slane %v3476, 1
        %v3753 = vrot.slane %v3492, 1
        %v3754 = vsel %vm918, %v3752, %v3753
        %v3755 = vrot.slane %v3477, 1
        %v3756 = vrot.slane %v3493, 1
        %v3757 = vsel %vm918, %v3755, %v3756
        %v3758 = vrot.slane %v3478, 1
        %v3759 = vrot.slane %v3494, 1
        %v3760 = vsel %vm918, %v3758, %v3759
        %v3761 = vrot.slane %v3479, 1
        %v3762 = vrot.slane %v3495, 1
        %v3763 = vsel %vm918, %v3761, %v3762
        %v3764 = vrot.slane %v3480, 1
        %v3765 = vrot.slane %v3496, 1
        %v3766 = vsel %vm918, %v3764, %v3765
        %v3767 = vrot.slane %v3481, 1
        %v3768 = vrot.slane %v3497, 1
        %v3769 = vsel %vm918, %v3767, %v3768
        %v3770 = vrot.slane %v3482, 1
        %v3771 = vrot.slane %v3498, 1
        %v3772 = vsel %vm918, %v3770, %v3771
        %v3773 = vrot.slane %v3483, 1
        %v3774 = vrot.slane %v3499, 1
        %v3775 = vsel %vm918, %v3773, %v3774
        %v3776 = vrot.slane %v3484, 1
        %v3777 = vrot.slane %v3500, 1
        %v3778 = vsel %vm918, %v3776, %v3777
        %v3779 = vrot.slane %v3485, 1
        %v3780 = vrot.slane %v3501, 1
        %v3781 = vsel %vm918, %v3779, %v3780
        %v3782 = vrot.slane %v3486, 1
        %v3783 = vrot.slane %v3502, 1
        %v3784 = vsel %vm918, %v3782, %v3783
        %v3785 = vrot.slane %v3487, 1
        %v3786 = vrot.slane %v3503, 1
        %v3787 = vsel %vm918, %v3785, %v3786
        %v3788 = vrot.slane %v3488, 1
        %v3789 = vrot.slane %v3504, 1
        %v3790 = vsel %vm918, %v3788, %v3789
        %v3792 = vsel %vm2277, %v3474, %v3687
        %v3795 = vsel %vm2277, %v3475, %v3689
        %v3798 = vsel %vm2277, %v3476, %v3691
        %v3801 = vsel %vm2277, %v3477, %v3693
        %v3804 = vsel %vm2277, %v3478, %v3695
        %v3807 = vsel %vm2277, %v3479, %v3697
        %v3810 = vsel %vm2277, %v3480, %v3699
        %v3813 = vsel %vm2277, %v3481, %v3701
        %v3816 = vsel %vm2277, %v3482, %v3703
        %v3819 = vsel %vm2277, %v3483, %v3705
        %v3822 = vsel %vm2277, %v3484, %v3707
        %v3825 = vsel %vm2277, %v3485, %v3709
        %v3828 = vsel %vm2277, %v3486, %v3711
        %v3831 = vsel %vm2277, %v3487, %v3713
        %v3834 = vsel %vm2277, %v3488, %v3715
        %v3836 = vld [vmem:[%s7] sm:$0xf]
        %v3837 = vld [vmem:[%s7 + $0x4] sm:$0xf]
        %v3838 = vld [vmem:[%s7 + $0x8] sm:$0xf]
        %v3839 = vld [vmem:[%s7 + $0xc] sm:$0xf]
        %v3840 = vld [vmem:[%s7 + $0x10] sm:$0xf]
        %v3841 = vld [vmem:[%s7 + $0x14] sm:$0xf]
        %v3842 = vld [vmem:[%s7 + $0x18] sm:$0xf]
        %v3843 = vld [vmem:[%s7 + $0x1c] sm:$0xf]
        %v3844 = vld [vmem:[%s7 + $0x20] sm:$0xf]
        %v3845 = vld [vmem:[%s7 + $0x24] sm:$0xf]
        %v3846 = vld [vmem:[%s7 + $0x28] sm:$0xf]
        %v3847 = vld [vmem:[%s7 + $0x2c] sm:$0xf]
        %v3848 = vld [vmem:[%s7 + $0x30] sm:$0xf]
        %v3849 = vld [vmem:[%s7 + $0x34] sm:$0xf]
        %v3850 = vld [vmem:[%s7 + $0x38] sm:$0xf]
        %v3851 = vld [vmem:[%s7 + $0x3c] sm:$0xf]
        %v3852 = vld [vmem:[%s7 + $0x40] sm:$0xf]
        %v3853 = vld [vmem:[%s7 + $0x44] sm:$0xf]
        %v3854 = vld [vmem:[%s7 + $0x48] sm:$0xf]
        %v3855 = vld [vmem:[%s7 + $0x4c] sm:$0xf]
        %v3856 = vld [vmem:[%s7 + $0x50] sm:$0xf]
        %v3857 = vld [vmem:[%s7 + $0x54] sm:$0xf]
        %v3858 = vld [vmem:[%s7 + $0x58] sm:$0xf]
        %v3859 = vld [vmem:[%s7 + $0x5c] sm:$0xf]
        %v3861 = vshrl.u32 %v3489, 16
        %v3863 = vshll.u32 %v3489, 16
        %v3865 = vrot.slane %v3863, 1
        %v3866 = vor.u32 %v3861, %v3865
        %v3868 = vshll.u32 %v3505, 16
        %v3870 = vrot.slane %v3868, 1
        %v3871 = vsel %vm661, %v3866, %v3870
        %3872 = vrot.lane.b32.xlu0 %v3871, 64
        %v3873 = vpop.permute.xlu0 %3872
        %v3876 = vrot.slane %v3489, 1
        %v3877 = vrot.slane %v3505, 1
        %v3878 = vsel %vm918, %v3876, %v3877
        %v3880 = vsel %vm2277, %v3489, %v3873
        %s3882 = scalar_lea.vmem %s7, 96
        %v3883 = vld [vmem:[%s3882] sm:$0xf]
        %v3884 = vld [vmem:[%s3882 + $0x4] sm:$0xf]
        %v3885 = vld [vmem:[%s3882 + $0x8] sm:$0xf]
        %v3886 = vld [vmem:[%s3882 + $0xc] sm:$0xf]
        %v3887 = vld [vmem:[%s3882 + $0x10] sm:$0xf]
        %v3888 = vld [vmem:[%s3882 + $0x14] sm:$0xf]
        %v3889 = vld [vmem:[%s3882 + $0x18] sm:$0xf]
        %v3890 = vld [vmem:[%s3882 + $0x1c] sm:$0xf]
        %v3891 = vld [vmem:[%s3882 + $0x20] sm:$0xf]
        %v3892 = vld [vmem:[%s3882 + $0x24] sm:$0xf]
        %v3893 = vld [vmem:[%s3882 + $0x28] sm:$0xf]
        %v3894 = vld [vmem:[%s3882 + $0x2c] sm:$0xf]
        %v3895 = vld [vmem:[%s3882 + $0x30] sm:$0xf]
        %v3896 = vld [vmem:[%s3882 + $0x34] sm:$0xf]
        %v3897 = vld [vmem:[%s3882 + $0x38] sm:$0xf]
        %v3898 = vld [vmem:[%s3882 + $0x3c] sm:$0xf]
        %v3899 = vld [vmem:[%s3882 + $0x40] sm:$0xf]
        %v3900 = vld [vmem:[%s3882 + $0x44] sm:$0xf]
        %v3901 = vld [vmem:[%s3882 + $0x48] sm:$0xf]
        %v3902 = vld [vmem:[%s3882 + $0x4c] sm:$0xf]
        %v3903 = vld [vmem:[%s3882 + $0x50] sm:$0xf]
        %v3904 = vld [vmem:[%s3882 + $0x54] sm:$0xf]
        %v3905 = vld [vmem:[%s3882 + $0x58] sm:$0xf]
        %v3906 = vld [vmem:[%s3882 + $0x5c] sm:$0xf]
        %v3931 = vunpack.c.l.b16 %v3883
        %v3932 = vunpack.c.l.b16 %v3884
        %v3933 = vunpack.c.l.b16 %v3885
        %v3934 = vunpack.c.l.b16 %v3886
        %v3935 = vunpack.c.l.b16 %v3887
        %v3936 = vunpack.c.l.b16 %v3888
        %v3937 = vunpack.c.l.b16 %v3889
        %v3938 = vunpack.c.l.b16 %v3890
        %v3939 = vunpack.c.l.b16 %v3891
        %v3940 = vunpack.c.l.b16 %v3892
        %v3941 = vunpack.c.l.b16 %v3893
        %v3942 = vunpack.c.l.b16 %v3894
        %v3943 = vunpack.c.l.b16 %v3895
        %v3944 = vunpack.c.l.b16 %v3896
        %v3945 = vunpack.c.l.b16 %v3897
        %v3946 = vunpack.c.l.b16 %v3898
        %v3947 = vunpack.c.l.b16 %v3899
        %v3948 = vunpack.c.l.b16 %v3900
        %v3949 = vunpack.c.l.b16 %v3901
        %v3950 = vunpack.c.l.b16 %v3902
        %v3951 = vunpack.c.l.b16 %v3903
        %v3952 = vunpack.c.l.b16 %v3904
        %v3953 = vunpack.c.l.b16 %v3905
        %v3954 = vunpack.c.l.b16 %v3906
        %v3955 = vpack.c.b16 %v3932, %v3931
        %v3956 = vpack.c.b16 %v3934, %v3933
        %v3957 = vpack.c.b16 %v3936, %v3935
        %v3958 = vpack.c.b16 %v3938, %v3937
        %v3959 = vpack.c.b16 %v3940, %v3939
        %v3960 = vpack.c.b16 %v3942, %v3941
        %v3961 = vpack.c.b16 %v3944, %v3943
        %v3962 = vpack.c.b16 %v3946, %v3945
        %v3963 = vpack.c.b16 %v3948, %v3947
        %v3964 = vpack.c.b16 %v3950, %v3949
        %v3965 = vpack.c.b16 %v3952, %v3951
        %v3966 = vpack.c.b16 %v3954, %v3953
        %v3980 = vsel %vm2277, %v3748, 0
        %v3983 = vsel %vm2277, %v3751, 0
        %v3986 = vsel %vm2277, %v3754, 0
        %v3989 = vsel %vm2277, %v3757, 0
        %v3992 = vsel %vm2277, %v3760, 0
        %v3995 = vsel %vm2277, %v3763, 0
        %v3998 = vsel %vm2277, %v3766, 0
        %v4001 = vsel %vm2277, %v3769, 0
        %v4004 = vsel %vm2277, %v3772, 0
        %v4007 = vsel %vm2277, %v3775, 0
        %v4010 = vsel %vm2277, %v3778, 0
        %v4013 = vsel %vm2277, %v3781, 0
        %v4016 = vsel %vm2277, %v3784, 0
        %v4019 = vsel %vm2277, %v3787, 0
        %v4022 = vsel %vm2277, %v3790, 0
        %v4025 = vsel %vm2277, %v3878, 0
        %4027 = vmatprep.subr.bf16.mxu0 0
        %4028 = vmatpush1.bf16.msra.mxu0 %v3962
        %4029 = vmatprep.subr.bf16.mxu0 0
        %4030 = vmatpush1.bf16.msra.mxu0 %v3961
        %4031 = vmatprep.subr.bf16.mxu0 0
        %4032 = vmatpush1.bf16.msra.mxu0 %v3960
        %4033 = vmatprep.subr.bf16.mxu0 0
        %4034 = vmatpush1.bf16.msra.mxu0 %v3959
        %4035 = vmatprep.subr.bf16.mxu0 0
        %4036 = vmatpush1.bf16.msra.mxu0 %v3958
        %4037 = vmatprep.subr.bf16.mxu0 0
        %4038 = vmatpush1.bf16.msra.mxu0 %v3957
        %4039 = vmatprep.subr.bf16.mxu0 0
        %4040 = vmatpush1.bf16.msra.mxu0 %v3956
        %4041 = vmatprep.subr.bf16.mxu0 0
        %4042 = vmatpush1.bf16.msra.mxu0 %v3955
        %4043 = vmatprep.subr.bf16.mxu0 0
        %4044 = vmatpush2.bf16.msra.mxu0 0
        %4045 = vmatprep.subr.bf16.mxu0 0
        %4046 = vmatpush2.bf16.msra.mxu0 0
        %4047 = vmatprep.subr.bf16.mxu0 0
        %4048 = vmatpush2.bf16.msra.mxu0 0
        %4049 = vmatprep.subr.bf16.mxu0 0
        %4050 = vmatpush2.bf16.msra.mxu0 0
        %4051 = vmatprep.subr.bf16.mxu0 0
        %4052 = vmatpush2.bf16.msra.mxu0 %v3966
        %4053 = vmatprep.subr.bf16.mxu0 0
        %4054 = vmatpush2.bf16.msra.mxu0 %v3965
        %4055 = vmatprep.subr.bf16.mxu0 0
        %4056 = vmatpush2.bf16.msra.mxu0 %v3964
        %4057 = vmatprep.subr.bf16.mxu0 0
        %4058 = vmatpush2.bf16.msra.mxu0 %v3963
        %4059 = vmatprep.mubr.bf16.mxu0 %v3980
        %4060 = vmatmul.mubr.bf16.gmra.mxu0 %v3792
        %v4061 = vpop.f32.mrf.mxu0
        %v4062 = vadd.f32 0.0, %v4061
        %v4063 = vpop.f32.mrf.mxu0
        %v4064 = vpop.f32.mrf.mxu0
        %v4065 = vadd.f32 0.0, %v4064
        %v4066 = vpop.f32.mrf.mxu0
        %4067 = vmatprep.mubr.bf16.mxu0 %v3983
        %4068 = vmatmul.mubr.bf16.gmra.mxu0 %v3795
        %v4069 = vpop.f32.mrf.mxu0
        %v4070 = vadd.f32 0.0, %v4069
        %v4071 = vpop.f32.mrf.mxu0
        %v4072 = vpop.f32.mrf.mxu0
        %v4073 = vadd.f32 0.0, %v4072
        %v4074 = vpop.f32.mrf.mxu0
        %4075 = vmatprep.mubr.bf16.mxu0 %v3986
        %4076 = vmatmul.mubr.bf16.gmra.mxu0 %v3798
        %v4077 = vpop.f32.mrf.mxu0
        %v4078 = vadd.f32 0.0, %v4077
        %v4079 = vpop.f32.mrf.mxu0
        %v4080 = vpop.f32.mrf.mxu0
        %v4081 = vadd.f32 0.0, %v4080
        %v4082 = vpop.f32.mrf.mxu0
        %4083 = vmatprep.mubr.bf16.mxu0 %v3989
        %4084 = vmatmul.mubr.bf16.gmra.mxu0 %v3801
        %v4085 = vpop.f32.mrf.mxu0
        %v4086 = vadd.f32 0.0, %v4085
        %v4087 = vpop.f32.mrf.mxu0
        %v4088 = vpop.f32.mrf.mxu0
        %v4089 = vadd.f32 0.0, %v4088
        %v4090 = vpop.f32.mrf.mxu0
        %4091 = vmatprep.mubr.bf16.mxu0 %v3992
        %4092 = vmatmul.mubr.bf16.gmra.mxu0 %v3804
        %v4093 = vpop.f32.mrf.mxu0
        %v4094 = vadd.f32 0.0, %v4093
        %v4095 = vpop.f32.mrf.mxu0
        %v4096 = vpop.f32.mrf.mxu0
        %v4097 = vadd.f32 0.0, %v4096
        %v4098 = vpop.f32.mrf.mxu0
        %4099 = vmatprep.mubr.bf16.mxu0 %v3995
        %4100 = vmatmul.mubr.bf16.gmra.mxu0 %v3807
        %v4101 = vpop.f32.mrf.mxu0
        %v4102 = vadd.f32 0.0, %v4101
        %v4103 = vpop.f32.mrf.mxu0
        %v4104 = vpop.f32.mrf.mxu0
        %v4105 = vadd.f32 0.0, %v4104
        %v4106 = vpop.f32.mrf.mxu0
        %4107 = vmatprep.mubr.bf16.mxu0 %v3998
        %4108 = vmatmul.mubr.bf16.gmra.mxu0 %v3810
        %v4109 = vpop.f32.mrf.mxu0
        %v4110 = vadd.f32 0.0, %v4109
        %v4111 = vpop.f32.mrf.mxu0
        %v4112 = vpop.f32.mrf.mxu0
        %v4113 = vadd.f32 0.0, %v4112
        %v4114 = vpop.f32.mrf.mxu0
        %4115 = vmatprep.mubr.bf16.mxu0 %v4001
        %4116 = vmatmul.mubr.bf16.gmra.mxu0 %v3813
        %v4117 = vpop.f32.mrf.mxu0
        %v4118 = vadd.f32 0.0, %v4117
        %v4119 = vpop.f32.mrf.mxu0
        %v4120 = vpop.f32.mrf.mxu0
        %v4121 = vadd.f32 0.0, %v4120
        %v4122 = vpop.f32.mrf.mxu0
        %4123 = vmatprep.mubr.bf16.mxu0 %v4004
        %4124 = vmatmul.mubr.bf16.gmra.mxu0 %v3816
        %v4125 = vpop.f32.mrf.mxu0
        %v4126 = vadd.f32 0.0, %v4125
        %v4127 = vpop.f32.mrf.mxu0
        %v4128 = vpop.f32.mrf.mxu0
        %v4129 = vadd.f32 0.0, %v4128
        %v4130 = vpop.f32.mrf.mxu0
        %4131 = vmatprep.mubr.bf16.mxu0 %v4007
        %4132 = vmatmul.mubr.bf16.gmra.mxu0 %v3819
        %v4133 = vpop.f32.mrf.mxu0
        %v4134 = vadd.f32 0.0, %v4133
        %v4135 = vpop.f32.mrf.mxu0
        %v4136 = vpop.f32.mrf.mxu0
        %v4137 = vadd.f32 0.0, %v4136
        %v4138 = vpop.f32.mrf.mxu0
        %4139 = vmatprep.mubr.bf16.mxu0 %v4010
        %4140 = vmatmul.mubr.bf16.gmra.mxu0 %v3822
        %v4141 = vpop.f32.mrf.mxu0
        %v4142 = vadd.f32 0.0, %v4141
        %v4143 = vpop.f32.mrf.mxu0
        %v4144 = vpop.f32.mrf.mxu0
        %v4145 = vadd.f32 0.0, %v4144
        %v4146 = vpop.f32.mrf.mxu0
        %4147 = vmatprep.mubr.bf16.mxu0 %v4013
        %4148 = vmatmul.mubr.bf16.gmra.mxu0 %v3825
        %v4149 = vpop.f32.mrf.mxu0
        %v4150 = vadd.f32 0.0, %v4149
        %v4151 = vpop.f32.mrf.mxu0
        %v4152 = vpop.f32.mrf.mxu0
        %v4153 = vadd.f32 0.0, %v4152
        %v4154 = vpop.f32.mrf.mxu0
        %4155 = vmatprep.mubr.bf16.mxu0 %v4016
        %4156 = vmatmul.mubr.bf16.gmra.mxu0 %v3828
        %v4157 = vpop.f32.mrf.mxu0
        %v4158 = vadd.f32 0.0, %v4157
        %v4159 = vpop.f32.mrf.mxu0
        %v4160 = vpop.f32.mrf.mxu0
        %v4161 = vadd.f32 0.0, %v4160
        %v4162 = vpop.f32.mrf.mxu0
        %4163 = vmatprep.mubr.bf16.mxu0 %v4019
        %4164 = vmatmul.mubr.bf16.gmra.mxu0 %v3831
        %v4165 = vpop.f32.mrf.mxu0
        %v4166 = vadd.f32 0.0, %v4165
        %v4167 = vpop.f32.mrf.mxu0
        %v4168 = vpop.f32.mrf.mxu0
        %v4169 = vadd.f32 0.0, %v4168
        %v4170 = vpop.f32.mrf.mxu0
        %4171 = vmatprep.mubr.bf16.mxu0 %v4022
        %4172 = vmatmul.mubr.bf16.gmra.mxu0 %v3834
        %v4173 = vpop.f32.mrf.mxu0
        %v4174 = vadd.f32 0.0, %v4173
        %v4175 = vpop.f32.mrf.mxu0
        %v4176 = vpop.f32.mrf.mxu0
        %v4177 = vadd.f32 0.0, %v4176
        %v4178 = vpop.f32.mrf.mxu0
        %4179 = vmatprep.mubr.bf16.mxu0 %v4025
        %4180 = vmatmul.mubr.bf16.gmra.mxu0 %v3880
        %v4181 = vpop.f32.mrf.mxu0
        %v4182 = vadd.f32 0.0, %v4181
        %v4183 = vpop.f32.mrf.mxu0
        %v4184 = vpop.f32.mrf.mxu0
        %v4185 = vadd.f32 0.0, %v4184
        %v4186 = vpop.f32.mrf.mxu0
        %4187 = vdwg.mxu0
        %v4212 = vunpack.c.l.b16 %v3836
        %v4213 = vunpack.c.l.b16 %v3837
        %v4214 = vunpack.c.l.b16 %v3838
        %v4215 = vunpack.c.l.b16 %v3839
        %v4216 = vunpack.c.l.b16 %v3840
        %v4217 = vunpack.c.l.b16 %v3841
        %v4218 = vunpack.c.l.b16 %v3842
        %v4219 = vunpack.c.l.b16 %v3843
        %v4220 = vunpack.c.l.b16 %v3844
        %v4221 = vunpack.c.l.b16 %v3845
        %v4222 = vunpack.c.l.b16 %v3846
        %v4223 = vunpack.c.l.b16 %v3847
        %v4224 = vunpack.c.l.b16 %v3848
        %v4225 = vunpack.c.l.b16 %v3849
        %v4226 = vunpack.c.l.b16 %v3850
        %v4227 = vunpack.c.l.b16 %v3851
        %v4228 = vunpack.c.l.b16 %v3852
        %v4229 = vunpack.c.l.b16 %v3853
        %v4230 = vunpack.c.l.b16 %v3854
        %v4231 = vunpack.c.l.b16 %v3855
        %v4232 = vunpack.c.l.b16 %v3856
        %v4233 = vunpack.c.l.b16 %v3857
        %v4234 = vunpack.c.l.b16 %v3858
        %v4235 = vunpack.c.l.b16 %v3859
        %v4236 = vpack.c.b16 %v4213, %v4212
        %v4237 = vpack.c.b16 %v4215, %v4214
        %v4238 = vpack.c.b16 %v4217, %v4216
        %v4239 = vpack.c.b16 %v4219, %v4218
        %v4240 = vpack.c.b16 %v4221, %v4220
        %v4241 = vpack.c.b16 %v4223, %v4222
        %v4242 = vpack.c.b16 %v4225, %v4224
        %v4243 = vpack.c.b16 %v4227, %v4226
        %v4244 = vpack.c.b16 %v4229, %v4228
        %v4245 = vpack.c.b16 %v4231, %v4230
        %v4246 = vpack.c.b16 %v4233, %v4232
        %v4247 = vpack.c.b16 %v4235, %v4234
        %4260 = vmatprep.subr.bf16.mxu0 0
        %4261 = vmatpush1.bf16.msra.mxu0 %v4243
        %4262 = vmatprep.subr.bf16.mxu0 0
        %4263 = vmatpush1.bf16.msra.mxu0 %v4242
        %4264 = vmatprep.subr.bf16.mxu0 0
        %4265 = vmatpush1.bf16.msra.mxu0 %v4241
        %4266 = vmatprep.subr.bf16.mxu0 0
        %4267 = vmatpush1.bf16.msra.mxu0 %v4240
        %4268 = vmatprep.subr.bf16.mxu0 0
        %4269 = vmatpush1.bf16.msra.mxu0 %v4239
        %4270 = vmatprep.subr.bf16.mxu0 0
        %4271 = vmatpush1.bf16.msra.mxu0 %v4238
        %4272 = vmatprep.subr.bf16.mxu0 0
        %4273 = vmatpush1.bf16.msra.mxu0 %v4237
        %4274 = vmatprep.subr.bf16.mxu0 0
        %4275 = vmatpush1.bf16.msra.mxu0 %v4236
        %4276 = vmatprep.subr.bf16.mxu0 0
        %4277 = vmatpush2.bf16.msra.mxu0 0
        %4278 = vmatprep.subr.bf16.mxu0 0
        %4279 = vmatpush2.bf16.msra.mxu0 0
        %4280 = vmatprep.subr.bf16.mxu0 0
        %4281 = vmatpush2.bf16.msra.mxu0 0
        %4282 = vmatprep.subr.bf16.mxu0 0
        %4283 = vmatpush2.bf16.msra.mxu0 0
        %4284 = vmatprep.subr.bf16.mxu0 0
        %4285 = vmatpush2.bf16.msra.mxu0 %v4247
        %4286 = vmatprep.subr.bf16.mxu0 0
        %4287 = vmatpush2.bf16.msra.mxu0 %v4246
        %4288 = vmatprep.subr.bf16.mxu0 0
        %4289 = vmatpush2.bf16.msra.mxu0 %v4245
        %4290 = vmatprep.subr.bf16.mxu0 0
        %4291 = vmatpush2.bf16.msra.mxu0 %v4244
        %4292 = vmatprep.mubr.bf16.mxu0 %v2751
        %4293 = vmatmul.mubr.bf16.gmra.mxu0 %v2279
        %v4294 = vpop.f32.mrf.mxu0
        %v4295 = vadd.f32 %v4062, %v4294
        %v4296 = vpop.f32.mrf.mxu0
        %v4297 = vpop.f32.mrf.mxu0
        %v4298 = vadd.f32 %v4065, %v4297
        %v4299 = vpop.f32.mrf.mxu0
        %4300 = vmatprep.mubr.bf16.mxu0 %v3980
        %4301 = vmatmul.mubr.bf16.gmra.mxu0 %v3792
        %v4302 = vpop.f32.mrf.mxu0
        %v4303 = vadd.f32 %v4070, %v4302
        %v4304 = vpop.f32.mrf.mxu0
        %v4305 = vpop.f32.mrf.mxu0
        %v4306 = vadd.f32 %v4073, %v4305
        %v4307 = vpop.f32.mrf.mxu0
        %4308 = vmatprep.mubr.bf16.mxu0 %v3983
        %4309 = vmatmul.mubr.bf16.gmra.mxu0 %v3795
        %v4310 = vpop.f32.mrf.mxu0
        %v4311 = vadd.f32 %v4078, %v4310
        %v4312 = vpop.f32.mrf.mxu0
        %v4313 = vpop.f32.mrf.mxu0
        %v4314 = vadd.f32 %v4081, %v4313
        %v4315 = vpop.f32.mrf.mxu0
        %4316 = vmatprep.mubr.bf16.mxu0 %v3986
        %4317 = vmatmul.mubr.bf16.gmra.mxu0 %v3798
        %v4318 = vpop.f32.mrf.mxu0
        %v4319 = vadd.f32 %v4086, %v4318
        %v4320 = vpop.f32.mrf.mxu0
        %v4321 = vpop.f32.mrf.mxu0
        %v4322 = vadd.f32 %v4089, %v4321
        %v4323 = vpop.f32.mrf.mxu0
        %4324 = vmatprep.mubr.bf16.mxu0 %v3989
        %4325 = vmatmul.mubr.bf16.gmra.mxu0 %v3801
        %v4326 = vpop.f32.mrf.mxu0
        %v4327 = vadd.f32 %v4094, %v4326
        %v4328 = vpop.f32.mrf.mxu0
        %v4329 = vpop.f32.mrf.mxu0
        %v4330 = vadd.f32 %v4097, %v4329
        %v4331 = vpop.f32.mrf.mxu0
        %4332 = vmatprep.mubr.bf16.mxu0 %v3992
        %4333 = vmatmul.mubr.bf16.gmra.mxu0 %v3804
        %v4334 = vpop.f32.mrf.mxu0
        %v4335 = vadd.f32 %v4102, %v4334
        %v4336 = vpop.f32.mrf.mxu0
        %v4337 = vpop.f32.mrf.mxu0
        %v4338 = vadd.f32 %v4105, %v4337
        %v4339 = vpop.f32.mrf.mxu0
        %4340 = vmatprep.mubr.bf16.mxu0 %v3995
        %4341 = vmatmul.mubr.bf16.gmra.mxu0 %v3807
        %v4342 = vpop.f32.mrf.mxu0
        %v4343 = vadd.f32 %v4110, %v4342
        %v4344 = vpop.f32.mrf.mxu0
        %v4345 = vpop.f32.mrf.mxu0
        %v4346 = vadd.f32 %v4113, %v4345
        %v4347 = vpop.f32.mrf.mxu0
        %4348 = vmatprep.mubr.bf16.mxu0 %v3998
        %4349 = vmatmul.mubr.bf16.gmra.mxu0 %v3810
        %v4350 = vpop.f32.mrf.mxu0
        %v4351 = vadd.f32 %v4118, %v4350
        %v4352 = vpop.f32.mrf.mxu0
        %v4353 = vpop.f32.mrf.mxu0
        %v4354 = vadd.f32 %v4121, %v4353
        %v4355 = vpop.f32.mrf.mxu0
        %4356 = vmatprep.mubr.bf16.mxu0 %v4001
        %4357 = vmatmul.mubr.bf16.gmra.mxu0 %v3813
        %v4358 = vpop.f32.mrf.mxu0
        %v4359 = vadd.f32 %v4126, %v4358
        %v4360 = vpop.f32.mrf.mxu0
        %v4361 = vpop.f32.mrf.mxu0
        %v4362 = vadd.f32 %v4129, %v4361
        %v4363 = vpop.f32.mrf.mxu0
        %4364 = vmatprep.mubr.bf16.mxu0 %v4004
        %4365 = vmatmul.mubr.bf16.gmra.mxu0 %v3816
        %v4366 = vpop.f32.mrf.mxu0
        %v4367 = vadd.f32 %v4134, %v4366
        %v4368 = vpop.f32.mrf.mxu0
        %v4369 = vpop.f32.mrf.mxu0
        %v4370 = vadd.f32 %v4137, %v4369
        %v4371 = vpop.f32.mrf.mxu0
        %4372 = vmatprep.mubr.bf16.mxu0 %v4007
        %4373 = vmatmul.mubr.bf16.gmra.mxu0 %v3819
        %v4374 = vpop.f32.mrf.mxu0
        %v4375 = vadd.f32 %v4142, %v4374
        %v4376 = vpop.f32.mrf.mxu0
        %v4377 = vpop.f32.mrf.mxu0
        %v4378 = vadd.f32 %v4145, %v4377
        %v4379 = vpop.f32.mrf.mxu0
        %4380 = vmatprep.mubr.bf16.mxu0 %v4010
        %4381 = vmatmul.mubr.bf16.gmra.mxu0 %v3822
        %v4382 = vpop.f32.mrf.mxu0
        %v4383 = vadd.f32 %v4150, %v4382
        %v4384 = vpop.f32.mrf.mxu0
        %v4385 = vpop.f32.mrf.mxu0
        %v4386 = vadd.f32 %v4153, %v4385
        %v4387 = vpop.f32.mrf.mxu0
        %4388 = vmatprep.mubr.bf16.mxu0 %v4013
        %4389 = vmatmul.mubr.bf16.gmra.mxu0 %v3825
        %v4390 = vpop.f32.mrf.mxu0
        %v4391 = vadd.f32 %v4158, %v4390
        %v4392 = vpop.f32.mrf.mxu0
        %v4393 = vpop.f32.mrf.mxu0
        %v4394 = vadd.f32 %v4161, %v4393
        %v4395 = vpop.f32.mrf.mxu0
        %4396 = vmatprep.mubr.bf16.mxu0 %v4016
        %4397 = vmatmul.mubr.bf16.gmra.mxu0 %v3828
        %v4398 = vpop.f32.mrf.mxu0
        %v4399 = vadd.f32 %v4166, %v4398
        %v4400 = vpop.f32.mrf.mxu0
        %v4401 = vpop.f32.mrf.mxu0
        %v4402 = vadd.f32 %v4169, %v4401
        %v4403 = vpop.f32.mrf.mxu0
        %4404 = vmatprep.mubr.bf16.mxu0 %v4019
        %4405 = vmatmul.mubr.bf16.gmra.mxu0 %v3831
        %v4406 = vpop.f32.mrf.mxu0
        %v4407 = vadd.f32 %v4174, %v4406
        %v4408 = vpop.f32.mrf.mxu0
        %v4409 = vpop.f32.mrf.mxu0
        %v4410 = vadd.f32 %v4177, %v4409
        %v4411 = vpop.f32.mrf.mxu0
        %4412 = vmatprep.mubr.bf16.mxu0 %v4022
        %4413 = vmatmul.mubr.bf16.gmra.mxu0 %v3834
        %v4414 = vpop.f32.mrf.mxu0
        %v4415 = vadd.f32 %v4182, %v4414
        %v4416 = vpop.f32.mrf.mxu0
        %v4417 = vpop.f32.mrf.mxu0
        %v4418 = vadd.f32 %v4185, %v4417
        %v4419 = vpop.f32.mrf.mxu0
        %4420 = vdwg.mxu0
        %s4421 = scalar_lea.vmem %s7, 192
        %v4422 = vld [vmem:[%s4421] sm:$0xf]
        %v4423 = vld [vmem:[%s4421 + $0x4] sm:$0xf]
        %v4424 = vld [vmem:[%s4421 + $0x8] sm:$0xf]
        %v4425 = vld [vmem:[%s4421 + $0xc] sm:$0xf]
        %v4426 = vld [vmem:[%s4421 + $0x10] sm:$0xf]
        %v4427 = vld [vmem:[%s4421 + $0x14] sm:$0xf]
        %v4428 = vld [vmem:[%s4421 + $0x18] sm:$0xf]
        %v4429 = vld [vmem:[%s4421 + $0x1c] sm:$0xf]
        %v4430 = vld [vmem:[%s4421 + $0x20] sm:$0xf]
        %v4431 = vld [vmem:[%s4421 + $0x24] sm:$0xf]
        %v4432 = vld [vmem:[%s4421 + $0x28] sm:$0xf]
        %v4433 = vld [vmem:[%s4421 + $0x2c] sm:$0xf]
        %v4434 = vld [vmem:[%s4421 + $0x30] sm:$0xf]
        %v4435 = vld [vmem:[%s4421 + $0x34] sm:$0xf]
        %v4436 = vld [vmem:[%s4421 + $0x38] sm:$0xf]
        %v4437 = vld [vmem:[%s4421 + $0x3c] sm:$0xf]
        %v4438 = vld [vmem:[%s4421 + $0x40] sm:$0xf]
        %v4439 = vld [vmem:[%s4421 + $0x44] sm:$0xf]
        %v4440 = vld [vmem:[%s4421 + $0x48] sm:$0xf]
        %v4441 = vld [vmem:[%s4421 + $0x4c] sm:$0xf]
        %v4442 = vld [vmem:[%s4421 + $0x50] sm:$0xf]
        %v4443 = vld [vmem:[%s4421 + $0x54] sm:$0xf]
        %v4444 = vld [vmem:[%s4421 + $0x58] sm:$0xf]
        %v4445 = vld [vmem:[%s4421 + $0x5c] sm:$0xf]
        %v4470 = vunpack.c.l.b16 %v4422
        %v4471 = vunpack.c.l.b16 %v4423
        %v4472 = vunpack.c.l.b16 %v4424
        %v4473 = vunpack.c.l.b16 %v4425
        %v4474 = vunpack.c.l.b16 %v4426
        %v4475 = vunpack.c.l.b16 %v4427
        %v4476 = vunpack.c.l.b16 %v4428
        %v4477 = vunpack.c.l.b16 %v4429
        %v4478 = vunpack.c.l.b16 %v4430
        %v4479 = vunpack.c.l.b16 %v4431
        %v4480 = vunpack.c.l.b16 %v4432
        %v4481 = vunpack.c.l.b16 %v4433
        %v4482 = vunpack.c.l.b16 %v4434
        %v4483 = vunpack.c.l.b16 %v4435
        %v4484 = vunpack.c.l.b16 %v4436
        %v4485 = vunpack.c.l.b16 %v4437
        %v4486 = vunpack.c.l.b16 %v4438
        %v4487 = vunpack.c.l.b16 %v4439
        %v4488 = vunpack.c.l.b16 %v4440
        %v4489 = vunpack.c.l.b16 %v4441
        %v4490 = vunpack.c.l.b16 %v4442
        %v4491 = vunpack.c.l.b16 %v4443
        %v4492 = vunpack.c.l.b16 %v4444
        %v4493 = vunpack.c.l.b16 %v4445
        %v4494 = vpack.c.b16 %v4471, %v4470
        %v4495 = vpack.c.b16 %v4473, %v4472
        %v4496 = vpack.c.b16 %v4475, %v4474
        %v4497 = vpack.c.b16 %v4477, %v4476
        %v4498 = vpack.c.b16 %v4479, %v4478
        %v4499 = vpack.c.b16 %v4481, %v4480
        %v4500 = vpack.c.b16 %v4483, %v4482
        %v4501 = vpack.c.b16 %v4485, %v4484
        %v4502 = vpack.c.b16 %v4487, %v4486
        %v4503 = vpack.c.b16 %v4489, %v4488
        %v4504 = vpack.c.b16 %v4491, %v4490
        %v4505 = vpack.c.b16 %v4493, %v4492
        %4518 = vmatprep.subr.bf16.mxu0 0
        %4519 = vmatpush1.bf16.msra.mxu0 %v4501
        %4520 = vmatprep.subr.bf16.mxu0 0
        %4521 = vmatpush1.bf16.msra.mxu0 %v4500
        %4522 = vmatprep.subr.bf16.mxu0 0
        %4523 = vmatpush1.bf16.msra.mxu0 %v4499
        %4524 = vmatprep.subr.bf16.mxu0 0
        %4525 = vmatpush1.bf16.msra.mxu0 %v4498
        %4526 = vmatprep.subr.bf16.mxu0 0
        %4527 = vmatpush1.bf16.msra.mxu0 %v4497
        %4528 = vmatprep.subr.bf16.mxu0 0
        %4529 = vmatpush1.bf16.msra.mxu0 %v4496
        %4530 = vmatprep.subr.bf16.mxu0 0
        %4531 = vmatpush1.bf16.msra.mxu0 %v4495
        %4532 = vmatprep.subr.bf16.mxu0 0
        %4533 = vmatpush1.bf16.msra.mxu0 %v4494
        %4534 = vmatprep.subr.bf16.mxu0 0
        %4535 = vmatpush2.bf16.msra.mxu0 0
        %4536 = vmatprep.subr.bf16.mxu0 0
        %4537 = vmatpush2.bf16.msra.mxu0 0
        %4538 = vmatprep.subr.bf16.mxu0 0
        %4539 = vmatpush2.bf16.msra.mxu0 0
        %4540 = vmatprep.subr.bf16.mxu0 0
        %4541 = vmatpush2.bf16.msra.mxu0 0
        %4542 = vmatprep.subr.bf16.mxu0 0
        %4543 = vmatpush2.bf16.msra.mxu0 %v4505
        %4544 = vmatprep.subr.bf16.mxu0 0
        %4545 = vmatpush2.bf16.msra.mxu0 %v4504
        %4546 = vmatprep.subr.bf16.mxu0 0
        %4547 = vmatpush2.bf16.msra.mxu0 %v4503
        %4548 = vmatprep.subr.bf16.mxu0 0
        %4549 = vmatpush2.bf16.msra.mxu0 %v4502
        %4550 = vmatprep.mubr.bf16.mxu0 %v3983
        %4551 = vmatmul.mubr.bf16.gmra.mxu0 %v3795
        %v4552 = vpop.f32.mrf.mxu0
        %v4553 = vadd.f32 0.0, %v4552
        %v4554 = vpop.f32.mrf.mxu0
        %v4555 = vpop.f32.mrf.mxu0
        %v4556 = vadd.f32 0.0, %v4555
        %v4557 = vpop.f32.mrf.mxu0
        %4558 = vmatprep.mubr.bf16.mxu0 %v3986
        %4559 = vmatmul.mubr.bf16.gmra.mxu0 %v3798
        %v4560 = vpop.f32.mrf.mxu0
        %v4561 = vadd.f32 0.0, %v4560
        %v4562 = vpop.f32.mrf.mxu0
        %v4563 = vpop.f32.mrf.mxu0
        %v4564 = vadd.f32 0.0, %v4563
        %v4565 = vpop.f32.mrf.mxu0
        %4566 = vmatprep.mubr.bf16.mxu0 %v3989
        %4567 = vmatmul.mubr.bf16.gmra.mxu0 %v3801
        %v4568 = vpop.f32.mrf.mxu0
        %v4569 = vadd.f32 0.0, %v4568
        %v4570 = vpop.f32.mrf.mxu0
        %v4571 = vpop.f32.mrf.mxu0
        %v4572 = vadd.f32 0.0, %v4571
        %v4573 = vpop.f32.mrf.mxu0
        %4574 = vmatprep.mubr.bf16.mxu0 %v3992
        %4575 = vmatmul.mubr.bf16.gmra.mxu0 %v3804
        %v4576 = vpop.f32.mrf.mxu0
        %v4577 = vadd.f32 0.0, %v4576
        %v4578 = vpop.f32.mrf.mxu0
        %v4579 = vpop.f32.mrf.mxu0
        %v4580 = vadd.f32 0.0, %v4579
        %v4581 = vpop.f32.mrf.mxu0
        %4582 = vmatprep.mubr.bf16.mxu0 %v3995
        %4583 = vmatmul.mubr.bf16.gmra.mxu0 %v3807
        %v4584 = vpop.f32.mrf.mxu0
        %v4585 = vadd.f32 0.0, %v4584
        %v4586 = vpop.f32.mrf.mxu0
        %v4587 = vpop.f32.mrf.mxu0
        %v4588 = vadd.f32 0.0, %v4587
        %v4589 = vpop.f32.mrf.mxu0
        %4590 = vmatprep.mubr.bf16.mxu0 %v3998
        %4591 = vmatmul.mubr.bf16.gmra.mxu0 %v3810
        %v4592 = vpop.f32.mrf.mxu0
        %v4593 = vadd.f32 0.0, %v4592
        %v4594 = vpop.f32.mrf.mxu0
        %v4595 = vpop.f32.mrf.mxu0
        %v4596 = vadd.f32 0.0, %v4595
        %v4597 = vpop.f32.mrf.mxu0
        %4598 = vmatprep.mubr.bf16.mxu0 %v4001
        %4599 = vmatmul.mubr.bf16.gmra.mxu0 %v3813
        %v4600 = vpop.f32.mrf.mxu0
        %v4601 = vadd.f32 0.0, %v4600
        %v4602 = vpop.f32.mrf.mxu0
        %v4603 = vpop.f32.mrf.mxu0
        %v4604 = vadd.f32 0.0, %v4603
        %v4605 = vpop.f32.mrf.mxu0
        %4606 = vmatprep.mubr.bf16.mxu0 %v4004
        %4607 = vmatmul.mubr.bf16.gmra.mxu0 %v3816
        %v4608 = vpop.f32.mrf.mxu0
        %v4609 = vadd.f32 0.0, %v4608
        %v4610 = vpop.f32.mrf.mxu0
        %v4611 = vpop.f32.mrf.mxu0
        %v4612 = vadd.f32 0.0, %v4611
        %v4613 = vpop.f32.mrf.mxu0
        %4614 = vmatprep.mubr.bf16.mxu0 %v4007
        %4615 = vmatmul.mubr.bf16.gmra.mxu0 %v3819
        %v4616 = vpop.f32.mrf.mxu0
        %v4617 = vadd.f32 0.0, %v4616
        %v4618 = vpop.f32.mrf.mxu0
        %v4619 = vpop.f32.mrf.mxu0
        %v4620 = vadd.f32 0.0, %v4619
        %v4621 = vpop.f32.mrf.mxu0
        %4622 = vmatprep.mubr.bf16.mxu0 %v4010
        %4623 = vmatmul.mubr.bf16.gmra.mxu0 %v3822
        %v4624 = vpop.f32.mrf.mxu0
        %v4625 = vadd.f32 0.0, %v4624
        %v4626 = vpop.f32.mrf.mxu0
        %v4627 = vpop.f32.mrf.mxu0
        %v4628 = vadd.f32 0.0, %v4627
        %v4629 = vpop.f32.mrf.mxu0
        %4630 = vmatprep.mubr.bf16.mxu0 %v4013
        %4631 = vmatmul.mubr.bf16.gmra.mxu0 %v3825
        %v4632 = vpop.f32.mrf.mxu0
        %v4633 = vadd.f32 0.0, %v4632
        %v4634 = vpop.f32.mrf.mxu0
        %v4635 = vpop.f32.mrf.mxu0
        %v4636 = vadd.f32 0.0, %v4635
        %v4637 = vpop.f32.mrf.mxu0
        %4638 = vmatprep.mubr.bf16.mxu0 %v4016
        %4639 = vmatmul.mubr.bf16.gmra.mxu0 %v3828
        %v4640 = vpop.f32.mrf.mxu0
        %v4641 = vadd.f32 0.0, %v4640
        %v4642 = vpop.f32.mrf.mxu0
        %v4643 = vpop.f32.mrf.mxu0
        %v4644 = vadd.f32 0.0, %v4643
        %v4645 = vpop.f32.mrf.mxu0
        %4646 = vmatprep.mubr.bf16.mxu0 %v4019
        %4647 = vmatmul.mubr.bf16.gmra.mxu0 %v3831
        %v4648 = vpop.f32.mrf.mxu0
        %v4649 = vadd.f32 0.0, %v4648
        %v4650 = vpop.f32.mrf.mxu0
        %v4651 = vpop.f32.mrf.mxu0
        %v4652 = vadd.f32 0.0, %v4651
        %v4653 = vpop.f32.mrf.mxu0
        %4654 = vmatprep.mubr.bf16.mxu0 %v4022
        %4655 = vmatmul.mubr.bf16.gmra.mxu0 %v3834
        %v4656 = vpop.f32.mrf.mxu0
        %v4657 = vadd.f32 0.0, %v4656
        %v4658 = vpop.f32.mrf.mxu0
        %v4659 = vpop.f32.mrf.mxu0
        %v4660 = vadd.f32 0.0, %v4659
        %v4661 = vpop.f32.mrf.mxu0
        %4662 = vmatprep.mubr.bf16.mxu0 %v4025
        %4663 = vmatmul.mubr.bf16.gmra.mxu0 %v3880
        %v4664 = vpop.f32.mrf.mxu0
        %v4665 = vadd.f32 0.0, %v4664
        %v4666 = vpop.f32.mrf.mxu0
        %v4667 = vpop.f32.mrf.mxu0
        %v4668 = vadd.f32 0.0, %v4667
        %v4669 = vpop.f32.mrf.mxu0
        %4670 = vmatprep.mubr.bf16.mxu0 %v2751
        %4671 = vmatmul.mubr.bf16.gmra.mxu0 %v2279
        %v4672 = vpop.f32.mrf.mxu0
        %v4673 = vadd.f32 0.0, %v4672
        %v4674 = vpop.f32.mrf.mxu0
        %v4675 = vpop.f32.mrf.mxu0
        %v4676 = vadd.f32 0.0, %v4675
        %v4677 = vpop.f32.mrf.mxu0
        %4678 = vdwg.mxu0
        %v4679 = vadd.f32 %v4295, %v4553
        %v4680 = vadd.f32 %v4298, %v4556
        %v4681 = vadd.f32 %v4303, %v4561
        %v4682 = vadd.f32 %v4306, %v4564
        %v4683 = vadd.f32 %v4311, %v4569
        %v4684 = vadd.f32 %v4314, %v4572
        %v4685 = vadd.f32 %v4319, %v4577
        %v4686 = vadd.f32 %v4322, %v4580
        %v4687 = vadd.f32 %v4327, %v4585
        %v4688 = vadd.f32 %v4330, %v4588
        %v4689 = vadd.f32 %v4335, %v4593
        %v4690 = vadd.f32 %v4338, %v4596
        %v4691 = vadd.f32 %v4343, %v4601
        %v4692 = vadd.f32 %v4346, %v4604
        %v4693 = vadd.f32 %v4351, %v4609
        %v4694 = vadd.f32 %v4354, %v4612
        %v4695 = vadd.f32 %v4359, %v4617
        %v4696 = vadd.f32 %v4362, %v4620
        %v4697 = vadd.f32 %v4367, %v4625
        %v4698 = vadd.f32 %v4370, %v4628
        %v4699 = vadd.f32 %v4375, %v4633
        %v4700 = vadd.f32 %v4378, %v4636
        %v4701 = vadd.f32 %v4383, %v4641
        %v4702 = vadd.f32 %v4386, %v4644
        %v4703 = vadd.f32 %v4391, %v4649
        %v4704 = vadd.f32 %v4394, %v4652
        %v4705 = vadd.f32 %v4399, %v4657
        %v4706 = vadd.f32 %v4402, %v4660
        %v4707 = vadd.f32 %v4407, %v4665
        %v4708 = vadd.f32 %v4410, %v4668
        %v4709 = vadd.f32 %v4415, %v4673
        %v4710 = vadd.f32 %v4418, %v4676
        %v4711 = vld [vmem:[%s8] sm:$0x1]
        %v4713 = vlaneseq
        %v4714 = vshrl.u32 %v4713, 7
        %v4715 = vsub.s32 0, %v4714
        %v4716 = vrot.slane %v4711, %v4715
        %v4718 = vmul.f32 %v4679, %v4716
        %v4719 = vmul.f32 %v4680, %v4716
        %v4720 = vmul.f32 %v4681, %v4716
        %v4721 = vmul.f32 %v4682, %v4716
        %v4722 = vmul.f32 %v4683, %v4716
        %v4723 = vmul.f32 %v4684, %v4716
        %v4724 = vmul.f32 %v4685, %v4716
        %v4725 = vmul.f32 %v4686, %v4716
        %v4726 = vmul.f32 %v4687, %v4716
        %v4727 = vmul.f32 %v4688, %v4716
        %v4728 = vmul.f32 %v4689, %v4716
        %v4729 = vmul.f32 %v4690, %v4716
        %v4730 = vmul.f32 %v4691, %v4716
        %v4731 = vmul.f32 %v4692, %v4716
        %v4732 = vmul.f32 %v4693, %v4716
        %v4733 = vmul.f32 %v4694, %v4716
        %v4734 = vmul.f32 %v4695, %v4716
        %v4735 = vmul.f32 %v4696, %v4716
        %v4736 = vmul.f32 %v4697, %v4716
        %v4737 = vmul.f32 %v4698, %v4716
        %v4738 = vmul.f32 %v4699, %v4716
        %v4739 = vmul.f32 %v4700, %v4716
        %v4740 = vmul.f32 %v4701, %v4716
        %v4741 = vmul.f32 %v4702, %v4716
        %v4742 = vmul.f32 %v4703, %v4716
        %v4743 = vmul.f32 %v4704, %v4716
        %v4744 = vmul.f32 %v4705, %v4716
        %v4745 = vmul.f32 %v4706, %v4716
        %v4746 = vmul.f32 %v4707, %v4716
        %v4747 = vmul.f32 %v4708, %v4716
        %v4748 = vmul.f32 %v4709, %v4716
        %v4749 = vmul.f32 %v4710, %v4716
        %v4750 = vld [vmem:[%s9] sm:$0x1]
        %v4752 = vlaneseq
        %v4753 = vshrl.u32 %v4752, 7
        %v4754 = vsub.s32 0, %v4753
        %v4755 = vrot.slane %v4750, %v4754
        %v4757 = vadd.f32 %v4718, %v4755
        %v4758 = vadd.f32 %v4719, %v4755
        %v4759 = vadd.f32 %v4720, %v4755
        %v4760 = vadd.f32 %v4721, %v4755
        %v4761 = vadd.f32 %v4722, %v4755
        %v4762 = vadd.f32 %v4723, %v4755
        %v4763 = vadd.f32 %v4724, %v4755
        %v4764 = vadd.f32 %v4725, %v4755
        %v4765 = vadd.f32 %v4726, %v4755
        %v4766 = vadd.f32 %v4727, %v4755
        %v4767 = vadd.f32 %v4728, %v4755
        %v4768 = vadd.f32 %v4729, %v4755
        %v4769 = vadd.f32 %v4730, %v4755
        %v4770 = vadd.f32 %v4731, %v4755
        %v4771 = vadd.f32 %v4732, %v4755
        %v4772 = vadd.f32 %v4733, %v4755
        %v4773 = vadd.f32 %v4734, %v4755
        %v4774 = vadd.f32 %v4735, %v4755
        %v4775 = vadd.f32 %v4736, %v4755
        %v4776 = vadd.f32 %v4737, %v4755
        %v4777 = vadd.f32 %v4738, %v4755
        %v4778 = vadd.f32 %v4739, %v4755
        %v4779 = vadd.f32 %v4740, %v4755
        %v4780 = vadd.f32 %v4741, %v4755
        %v4781 = vadd.f32 %v4742, %v4755
        %v4782 = vadd.f32 %v4743, %v4755
        %v4783 = vadd.f32 %v4744, %v4755
        %v4784 = vadd.f32 %v4745, %v4755
        %v4785 = vadd.f32 %v4746, %v4755
        %v4786 = vadd.f32 %v4747, %v4755
        %v4787 = vadd.f32 %v4748, %v4755
        %v4788 = vadd.f32 %v4749, %v4755
        %v4789 = vunpack.c.l.bf16 %v1798
        %v4790 = vunpack.c.h.bf16 %v1798
        %v4791 = vunpack.c.l.bf16 %v1799
        %v4792 = vunpack.c.h.bf16 %v1799
        %v4793 = vunpack.c.l.bf16 %v1800
        %v4794 = vunpack.c.h.bf16 %v1800
        %v4795 = vunpack.c.l.bf16 %v1801
        %v4796 = vunpack.c.h.bf16 %v1801
        %v4797 = vunpack.c.l.bf16 %v1802
        %v4798 = vunpack.c.h.bf16 %v1802
        %v4799 = vunpack.c.l.bf16 %v1803
        %v4800 = vunpack.c.h.bf16 %v1803
        %v4801 = vunpack.c.l.bf16 %v1804
        %v4802 = vunpack.c.h.bf16 %v1804
        %v4803 = vunpack.c.l.bf16 %v1805
        %v4804 = vunpack.c.h.bf16 %v1805
        %v4805 = vunpack.c.l.bf16 %v1806
        %v4806 = vunpack.c.h.bf16 %v1806
        %v4807 = vunpack.c.l.bf16 %v1807
        %v4808 = vunpack.c.h.bf16 %v1807
        %v4809 = vunpack.c.l.bf16 %v1808
        %v4810 = vunpack.c.h.bf16 %v1808
        %v4811 = vunpack.c.l.bf16 %v1809
        %v4812 = vunpack.c.h.bf16 %v1809
        %v4813 = vunpack.c.l.bf16 %v1810
        %v4814 = vunpack.c.h.bf16 %v1810
        %v4815 = vunpack.c.l.bf16 %v1811
        %v4816 = vunpack.c.h.bf16 %v1811
        %v4817 = vunpack.c.l.bf16 %v1812
        %v4818 = vunpack.c.h.bf16 %v1812
        %v4819 = vunpack.c.l.bf16 %v1813
        %v4820 = vunpack.c.h.bf16 %v1813
        %v4821 = vadd.f32 %v4757, %v4789
        %v4822 = vadd.f32 %v4758, %v4790
        %v4823 = vadd.f32 %v4759, %v4791
        %v4824 = vadd.f32 %v4760, %v4792
        %v4825 = vadd.f32 %v4761, %v4793
        %v4826 = vadd.f32 %v4762, %v4794
        %v4827 = vadd.f32 %v4763, %v4795
        %v4828 = vadd.f32 %v4764, %v4796
        %v4829 = vadd.f32 %v4765, %v4797
        %v4830 = vadd.f32 %v4766, %v4798
        %v4831 = vadd.f32 %v4767, %v4799
        %v4832 = vadd.f32 %v4768, %v4800
        %v4833 = vadd.f32 %v4769, %v4801
        %v4834 = vadd.f32 %v4770, %v4802
        %v4835 = vadd.f32 %v4771, %v4803
        %v4836 = vadd.f32 %v4772, %v4804
        %v4837 = vadd.f32 %v4773, %v4805
        %v4838 = vadd.f32 %v4774, %v4806
        %v4839 = vadd.f32 %v4775, %v4807
        %v4840 = vadd.f32 %v4776, %v4808
        %v4841 = vadd.f32 %v4777, %v4809
        %v4842 = vadd.f32 %v4778, %v4810
        %v4843 = vadd.f32 %v4779, %v4811
        %v4844 = vadd.f32 %v4780, %v4812
        %v4845 = vadd.f32 %v4781, %v4813
        %v4846 = vadd.f32 %v4782, %v4814
        %v4847 = vadd.f32 %v4783, %v4815
        %v4848 = vadd.f32 %v4784, %v4816
        %v4849 = vadd.f32 %v4785, %v4817
        %v4850 = vadd.f32 %v4786, %v4818
        %v4851 = vadd.f32 %v4787, %v4819
        %v4852 = vadd.f32 %v4788, %v4820
        %v4853 = vmax.f32 %v4821, 0.0
        %v4854 = vmax.f32 %v4822, 0.0
        %v4855 = vmax.f32 %v4823, 0.0
        %v4856 = vmax.f32 %v4824, 0.0
        %v4857 = vmax.f32 %v4825, 0.0
        %v4858 = vmax.f32 %v4826, 0.0
        %v4859 = vmax.f32 %v4827, 0.0
        %v4860 = vmax.f32 %v4828, 0.0
        %v4861 = vmax.f32 %v4829, 0.0
        %v4862 = vmax.f32 %v4830, 0.0
        %v4863 = vmax.f32 %v4831, 0.0
        %v4864 = vmax.f32 %v4832, 0.0
        %v4865 = vmax.f32 %v4833, 0.0
        %v4866 = vmax.f32 %v4834, 0.0
        %v4867 = vmax.f32 %v4835, 0.0
        %v4868 = vmax.f32 %v4836, 0.0
        %v4869 = vmax.f32 %v4837, 0.0
        %v4870 = vmax.f32 %v4838, 0.0
        %v4871 = vmax.f32 %v4839, 0.0
        %v4872 = vmax.f32 %v4840, 0.0
        %v4873 = vmax.f32 %v4841, 0.0
        %v4874 = vmax.f32 %v4842, 0.0
        %v4875 = vmax.f32 %v4843, 0.0
        %v4876 = vmax.f32 %v4844, 0.0
        %v4877 = vmax.f32 %v4845, 0.0
        %v4878 = vmax.f32 %v4846, 0.0
        %v4879 = vmax.f32 %v4847, 0.0
        %v4880 = vmax.f32 %v4848, 0.0
        %v4881 = vmax.f32 %v4849, 0.0
        %v4882 = vmax.f32 %v4850, 0.0
        %v4883 = vmax.f32 %v4851, 0.0
        %v4884 = vmax.f32 %v4852, 0.0
        %v4885 = vpack.c.bf16 %v4854, %v4853
        %v4886 = vpack.c.bf16 %v4856, %v4855
        %v4887 = vpack.c.bf16 %v4858, %v4857
        %v4888 = vpack.c.bf16 %v4860, %v4859
        %v4889 = vpack.c.bf16 %v4862, %v4861
        %v4890 = vpack.c.bf16 %v4864, %v4863
        %v4891 = vpack.c.bf16 %v4866, %v4865
        %v4892 = vpack.c.bf16 %v4868, %v4867
        %v4893 = vpack.c.bf16 %v4870, %v4869
        %v4894 = vpack.c.bf16 %v4872, %v4871
        %v4895 = vpack.c.bf16 %v4874, %v4873
        %v4896 = vpack.c.bf16 %v4876, %v4875
        %v4897 = vpack.c.bf16 %v4878, %v4877
        %v4898 = vpack.c.bf16 %v4880, %v4879
        %v4899 = vpack.c.bf16 %v4882, %v4881
        %v4900 = vpack.c.bf16 %v4884, %v4883
        %v4917 = vunpack.c.l.b16 %v4885
        %v4918 = vunpack.c.h.b16 %v4885
        %v4919 = vunpack.c.l.b16 %v4886
        %v4920 = vunpack.c.h.b16 %v4886
        %v4921 = vunpack.c.l.b16 %v4887
        %v4922 = vunpack.c.h.b16 %v4887
        %v4923 = vunpack.c.l.b16 %v4888
        %v4924 = vunpack.c.h.b16 %v4888
        %v4925 = vunpack.c.l.b16 %v4889
        %v4926 = vunpack.c.h.b16 %v4889
        %v4927 = vunpack.c.l.b16 %v4890
        %v4928 = vunpack.c.h.b16 %v4890
        %v4929 = vunpack.c.l.b16 %v4891
        %v4930 = vunpack.c.h.b16 %v4891
        %v4931 = vunpack.c.l.b16 %v4892
        %v4932 = vunpack.c.h.b16 %v4892
        %v4933 = vunpack.c.l.b16 %v4893
        %v4934 = vunpack.c.h.b16 %v4893
        %v4935 = vunpack.c.l.b16 %v4894
        %v4936 = vunpack.c.h.b16 %v4894
        %v4937 = vunpack.c.l.b16 %v4895
        %v4938 = vunpack.c.h.b16 %v4895
        %v4939 = vunpack.c.l.b16 %v4896
        %v4940 = vunpack.c.h.b16 %v4896
        %v4941 = vunpack.c.l.b16 %v4897
        %v4942 = vunpack.c.h.b16 %v4897
        %v4943 = vunpack.c.l.b16 %v4898
        %v4944 = vunpack.c.h.b16 %v4898
        %v4945 = vunpack.c.l.b16 %v4899
        %v4946 = vunpack.c.h.b16 %v4899
        %v4947 = vunpack.c.l.b16 %v4900
        %v4948 = vunpack.c.h.b16 %v4900
        %v4949 = vpack.c.b16 %v4917, %v4917
        %v4950 = vpack.c.b16 %v4918, %v4918
        %v4951 = vpack.c.b16 %v4919, %v4919
        %v4952 = vpack.c.b16 %v4920, %v4920
        %v4953 = vpack.c.b16 %v4921, %v4921
        %v4954 = vpack.c.b16 %v4922, %v4922
        %v4955 = vpack.c.b16 %v4923, %v4923
        %v4956 = vpack.c.b16 %v4924, %v4924
        %v4957 = vpack.c.b16 %v4925, %v4925
        %v4958 = vpack.c.b16 %v4926, %v4926
        %v4959 = vpack.c.b16 %v4927, %v4927
        %v4960 = vpack.c.b16 %v4928, %v4928
        %v4961 = vpack.c.b16 %v4929, %v4929
        %v4962 = vpack.c.b16 %v4930, %v4930
        %v4963 = vpack.c.b16 %v4931, %v4931
        %v4964 = vpack.c.b16 %v4932, %v4932
        %v4965 = vpack.c.b16 %v4933, %v4933
        %v4966 = vpack.c.b16 %v4934, %v4934
        %v4967 = vpack.c.b16 %v4935, %v4935
        %v4968 = vpack.c.b16 %v4936, %v4936
        %v4969 = vpack.c.b16 %v4937, %v4937
        %v4970 = vpack.c.b16 %v4938, %v4938
        %v4971 = vpack.c.b16 %v4939, %v4939
        %v4972 = vpack.c.b16 %v4940, %v4940
        %v4973 = vpack.c.b16 %v4941, %v4941
        %v4974 = vpack.c.b16 %v4942, %v4942
        %v4975 = vpack.c.b16 %v4943, %v4943
        %v4976 = vpack.c.b16 %v4944, %v4944
        %v4977 = vpack.c.b16 %v4945, %v4945
        %v4978 = vpack.c.b16 %v4946, %v4946
        %v4979 = vpack.c.b16 %v4947, %v4947
        %v4980 = vpack.c.b16 %v4948, %v4948
        %vm5013 = vcmask 519168
        %5014 = vst.msk [vmem:[%s352] sm:$0xf] %vm5013, %v4949
        %5015 = vst.msk [vmem:[%s352 + $0x4] sm:$0xf] %vm5013, %v4950
        %5016 = vst.msk [vmem:[%s352 + $0x8] sm:$0xf] %vm5013, %v4951
        %5017 = vst.msk [vmem:[%s352 + $0xc] sm:$0xf] %vm5013, %v4952
        %5018 = vst.msk [vmem:[%s352 + $0x10] sm:$0xf] %vm5013, %v4953
        %5019 = vst.msk [vmem:[%s352 + $0x14] sm:$0xf] %vm5013, %v4954
        %5020 = vst.msk [vmem:[%s352 + $0x18] sm:$0xf] %vm5013, %v4955
        %5021 = vst.msk [vmem:[%s352 + $0x1c] sm:$0xf] %vm5013, %v4956
        %5022 = vst.msk [vmem:[%s352 + $0x20] sm:$0xf] %vm5013, %v4957
        %5023 = vst.msk [vmem:[%s352 + $0x24] sm:$0xf] %vm5013, %v4958
        %5024 = vst.msk [vmem:[%s352 + $0x28] sm:$0xf] %vm5013, %v4959
        %5025 = vst.msk [vmem:[%s352 + $0x2c] sm:$0xf] %vm5013, %v4960
        %5026 = vst.msk [vmem:[%s352 + $0x30] sm:$0xf] %vm5013, %v4961
        %5027 = vst.msk [vmem:[%s352 + $0x34] sm:$0xf] %vm5013, %v4962
        %5028 = vst.msk [vmem:[%s352 + $0x38] sm:$0xf] %vm5013, %v4963
        %5029 = vst.msk [vmem:[%s352 + $0x3c] sm:$0xf] %vm5013, %v4964
        %5030 = vst.msk [vmem:[%s352 + $0x40] sm:$0xf] %vm5013, %v4965
        %5031 = vst.msk [vmem:[%s352 + $0x44] sm:$0xf] %vm5013, %v4966
        %5032 = vst.msk [vmem:[%s352 + $0x48] sm:$0xf] %vm5013, %v4967
        %5033 = vst.msk [vmem:[%s352 + $0x4c] sm:$0xf] %vm5013, %v4968
        %5034 = vst.msk [vmem:[%s352 + $0x50] sm:$0xf] %vm5013, %v4969
        %5035 = vst.msk [vmem:[%s352 + $0x54] sm:$0xf] %vm5013, %v4970
        %5036 = vst.msk [vmem:[%s352 + $0x58] sm:$0xf] %vm5013, %v4971
        %5037 = vst.msk [vmem:[%s352 + $0x5c] sm:$0xf] %vm5013, %v4972
        %5038 = vst.msk [vmem:[%s352 + $0x60] sm:$0xf] %vm5013, %v4973
        %5039 = vst.msk [vmem:[%s352 + $0x64] sm:$0xf] %vm5013, %v4974
        %5040 = vst.msk [vmem:[%s352 + $0x68] sm:$0xf] %vm5013, %v4975
        %5041 = vst.msk [vmem:[%s352 + $0x6c] sm:$0xf] %vm5013, %v4976
        %5042 = vst.msk [vmem:[%s352 + $0x70] sm:$0xf] %vm5013, %v4977
        %5043 = vst.msk [vmem:[%s352 + $0x74] sm:$0xf] %vm5013, %v4978
        %5044 = vst.msk [vmem:[%s352 + $0x78] sm:$0xf] %vm5013, %v4979
        %5045 = vst.msk [vmem:[%s352 + $0x7c] sm:$0xf] %vm5013, %v4980
        %s5046 = sand.u32 %s247, 1
        %s5047 = scalar_lea.sflag [#allocation3], %s5046
        %s5048 = sand.u32 %s247, 1
        %s5049 = smul.addr %s5048, 128
        %s5050 = scalar_lea.vmem [#allocation2], %s5049
        // Predicated region
        $region61: #{tpu_custom_call.1} parent=59 // pred_check
          %p5051 = pneg %p257
        $region62: #{tpu_custom_call.1} parent=59 // pred_check_branch
          %5053 = sbr.rel (%p5051) target = $region64
        $region63: #{tpu_custom_call.1} parent=59 // pred_region
          %s5055 = ssub.s32 2048, 2048
          %5056 = vsyncadd %s5047, %s5055
          %s5057 = smul.addr %s24, 32
          %s5058 = smul.addr %s5057, 64
          %s5059 = scalar_lea.hbm %s10, %s5058
          %s5060 = sshll.u32 %s5050, 4
          %s5061 = int_to_ptr.vmem [resolvable:$true] %s5060
          %5066 = dma.vmem_to_hbm [thread:$0]  %s5061, 2048, %s5059, %s5047, 64, 64, 4
        $region64: #{tpu_custom_call.1} parent=59 // pred_fallthru
          _
      $region60: #{tpu_custom_call.1} parent=5 // pred_fallthru
        _
      %p5067 = scmp.le.s32.totalorder 2, %s19
      // Predicated region
      $region65: #{tpu_custom_call.1} parent=5 // pred_check
        %p5068 = pneg %p5067
      $region66: #{tpu_custom_call.1} parent=5 // pred_check_branch
        %5070 = sbr.rel (%p5068) target = $region68
      $region67: #{tpu_custom_call.1} parent=5 // pred_region
        %s5071 = ssub.s32 %s19, 2
        // Predicated region
        $region69: #{tpu_custom_call.1} parent=67 // pred_check
          %p5072 = pneg %p263
        $region70: #{tpu_custom_call.1} parent=67 // pred_check_branch
          %5074 = sbr.rel (%p5072) target = $region72
        $region71: #{tpu_custom_call.1} parent=67 // pred_region
          %s5075 = sand.u32 %s248, 1
          %s5076 = scalar_lea.sflag [#allocation3], %s5075
          %s5077 = sand.u32 %s248, 1
          %s5078 = smul.addr %s5077, 128
          %s5079 = scalar_lea.vmem [#allocation2], %s5078
          %5080 = dma.done %s5076, 2048
        $region72: #{tpu_custom_call.1} parent=67 // pred_fallthru
          _
      $region68: #{tpu_custom_call.1} parent=5 // pred_fallthru
        _
    $region6: #{tpu_custom_call.1} parent=1 // loop_footer
      %s23 = sadd.s32 1, %s19
    $region7: #{tpu_custom_call.1} parent=1 // loop_footer_branch
      %18 = sbr.rel target = $region3
    $region8: #{tpu_custom_call.1} parent=1 // loop_exit
      _
    %5081 = vsyncpa [#allocation3], 1
    %s5082 = scalar_lea.sflag [#allocation3], 1
    %5083 = vsyncpa %s5082, 1

</llo_original>
